<compile_context>
chip_gen: v6e
topology: v6e:2x2x1
jax: 0.10.0
libtpu: 0.0.40
codegen_flags: <defaults>
</compile_context>

<pallas_src>
import functools

import jax
import jax.numpy as jnp
from jax import lax
from jax.experimental import pallas as pl
from jax.experimental.pallas import tpu as pltpu


# --------------------------------------------------------------------------
# Pallas kernel: fused bidirectional GRU over one batch tile
# --------------------------------------------------------------------------
def bigru_kernel(x_ref, m_ref, wif_ref, wib_ref, bi_ref, whh_ref, bhn_ref,
                 out_ref, gi_f_s, gi_b_s, bwd_s,
                 *, proj_chunk, fuse_recurrent, gate_dtype):
    T, BT, Dw = x_ref.shape
    Hp = whh_ref.shape[0] // 2
    H3 = 3 * Hp

    # ---- loop-invariant weight / bias loads (hoisted) ----
    w_if = wif_ref[...]                          # [Dw, 3Hp] bf16
    w_ib = wib_ref[...]                          # [Dw, 3Hp] bf16
    b_if = bi_ref[:, 0:H3]                       # [1, 3Hp] f32 (b_ih + b_hh for r,z)
    b_ib = bi_ref[:, H3:2 * H3]
    b_hn_f = jnp.broadcast_to(bhn_ref[:, 0:Hp].astype(gate_dtype), (BT, Hp))
    b_hn_b = jnp.broadcast_to(bhn_ref[:, Hp:2 * Hp].astype(gate_dtype), (BT, Hp))

    # ---- (1) input projections for all t / both dirs, chunked over T and
    #          written straight into bf16 VMEM scratch (no full-size f32 temp) ----
    n_chunks = T // proj_chunk

    @pl.loop(0, n_chunks)
    def _(c):
        t0 = pl.multiple_of(c * proj_chunk, proj_chunk)
        xc = x_ref[pl.ds(t0, proj_chunk)].reshape(proj_chunk * BT, Dw)
        gf = jnp.dot(xc, w_if, preferred_element_type=jnp.float32) + b_if
        gb = jnp.dot(xc, w_ib, preferred_element_type=jnp.float32) + b_ib
        gi_f_s[pl.ds(t0, proj_chunk)] = gf.astype(jnp.bfloat16).reshape(
            proj_chunk, BT, H3)
        gi_b_s[pl.ds(t0, proj_chunk)] = gb.astype(jnp.bfloat16).reshape(
            proj_chunk, BT, H3)

    # ---- GRU cell: gate math in `gate_dtype`, h carry / blend in f32 ----
    def gru_update(gi_t, gh_t, b_hn, h_prev):
        gi_t = gi_t.astype(gate_dtype)
        gh_t = gh_t.astype(gate_dtype)
        # PyTorch gate order (r, z, n); gate slices are 128-lane aligned.
        r = jax.nn.sigmoid(gi_t[:, 0:Hp] + gh_t[:, 0:Hp])
        z = jax.nn.sigmoid(gi_t[:, Hp:2 * Hp] + gh_t[:, Hp:2 * Hp])
        n = jnp.tanh(gi_t[:, 2 * Hp:H3] + r * (gh_t[:, 2 * Hp:H3] + b_hn))
        z32 = z.astype(jnp.float32)
        return (1.0 - z32) * n.astype(jnp.float32) + z32 * h_prev

    def masked_store(t, tb, hn_f, hn_b, h_f_prev, h_b_prev):
        # packed-sequence semantics: freeze h past the valid length, zero outputs
        mb_f = m_ref[t] > 0.0                    # [BT, 1] bool, broadcasts over Hp
        mb_b = m_ref[tb] > 0.0
        h_f = jnp.where(mb_f, hn_f, h_f_prev)
        h_b = jnp.where(mb_b, hn_b, h_b_prev)
        out_ref[t] = jnp.where(mb_f, h_f, 0.0).astype(out_ref.dtype)
        bwd_s[tb] = jnp.where(mb_b, h_b, 0.0).astype(bwd_s.dtype)
        return h_f, h_b

    unroll = True if T <= 32 else 4

    if fuse_recurrent:
        # v6e / v7x: one block-diagonal recurrent GEMM per step (K = 2*Hp = 256)
        w_hh = whh_ref[...]                      # [2Hp, 6Hp] bf16 block-diagonal

        def step(t, h_cat):                      # h_cat: [BT, 2Hp] f32
            tb = T - 1 - t
            gh = jnp.dot(h_cat.astype(jnp.bfloat16), w_hh,
                         preferred_element_type=jnp.float32)
            hn_f = gru_update(gi_f_s[t], gh[:, 0:H3], b_hn_f, h_cat[:, 0:Hp])
            hn_b = gru_update(gi_b_s[tb], gh[:, H3:2 * H3], b_hn_b,
                              h_cat[:, Hp:2 * Hp])
            h_f, h_b = masked_store(t, tb, hn_f, hn_b,
                                    h_cat[:, 0:Hp], h_cat[:, Hp:2 * Hp])
            return jnp.concatenate([h_f, h_b], axis=1)

        lax.fori_loop(0, T, step, jnp.zeros((BT, 2 * Hp), jnp.float32),
                      unroll=unroll)
    else:
        # v5e and older: MXU is 128-deep, keep the two native K=128 matmuls
        w_hh_f = whh_ref[0:Hp, 0:H3]
        w_hh_b = whh_ref[Hp:2 * Hp, H3:2 * H3]

        def step(t, carry):
            h_f, h_b = carry
            tb = T - 1 - t
            gh_f = jnp.dot(h_f.astype(jnp.bfloat16), w_hh_f,
                           preferred_element_type=jnp.float32)
            gh_b = jnp.dot(h_b.astype(jnp.bfloat16), w_hh_b,
                           preferred_element_type=jnp.float32)
            hn_f = gru_update(gi_f_s[t], gh_f, b_hn_f, h_f)
            hn_b = gru_update(gi_b_s[tb], gh_b, b_hn_b, h_b)
            return masked_store(t, tb, hn_f, hn_b, h_f, h_b)

        h0 = jnp.zeros((BT, Hp), jnp.float32)
        lax.fori_loop(0, T, step, (h0, h0), unroll=unroll)

    # ---- single bulk combine: average of the two directions (bf16 in, bf16 out) ----
    out_ref[...] = 0.5 * (out_ref[...] + bwd_s[...])


# --------------------------------------------------------------------------
# Parameter packing: PyTorch-layout GRU weights -> lane-padded kernel layout
# --------------------------------------------------------------------------
def _round_up(x, m):
    return (x + m - 1) // m * m


def _pad_gates(a, H, Hp):
    """[K, 3H] (gate order r,z,n) -> [K, 3Hp], each gate block lane-aligned."""
    K = a.shape[0]
    out = jnp.zeros((K, 3 * Hp), a.dtype)
    for g in range(3):
        out = out.at[:, g * Hp:g * Hp + H].set(a[:, g * H:(g + 1) * H])
    return out


def _pack_params(p, H, Hp):
    # input-projection weights, one [Dw, 3Hp] bf16 matrix per direction
    w_if = _pad_gates(p["wih_f_t"], H, Hp).astype(jnp.bfloat16)
    w_ib = _pad_gates(p["wih_b_t"], H, Hp).astype(jnp.bfloat16)

    # recurrent weights packed block-diagonally: [2Hp, 6Hp] bf16
    w_hh = jnp.zeros((2 * Hp, 6 * Hp), jnp.float32)
    w_hh = w_hh.at[0:H, 0:3 * Hp].set(_pad_gates(p["whh_f_t"], H, Hp))
    w_hh = w_hh.at[Hp:Hp + H, 3 * Hp:6 * Hp].set(_pad_gates(p["whh_b_t"], H, Hp))
    w_hh = w_hh.astype(jnp.bfloat16)

    def bias_i(bih, bhh):
        # fold b_hh for the r,z gates into the precomputed input projection;
        # the n-gate b_hh must stay inside the r*(.) term -> passed separately.
        bhh_rz = bhh.at[:, 2 * H:3 * H].set(0.0)
        return _pad_gates(bih + bhh_rz, H, Hp)

    b_i = jnp.concatenate([bias_i(p["bih_f"], p["bhh_f"]),
                           bias_i(p["bih_b"], p["bhh_b"])], axis=1)   # [1, 6Hp] f32

    def bhn(bhh):
        return jnp.zeros((1, Hp), jnp.float32).at[:, :H].set(bhh[:, 2 * H:3 * H])

    b_hn = jnp.concatenate([bhn(p["bhh_f"]), bhn(p["bhh_b"])], axis=1)  # [1, 2Hp]
    return w_if, w_ib, b_i, w_hh, b_hn


# --------------------------------------------------------------------------
# Tiling / VMEM budgeting helpers
# --------------------------------------------------------------------------
def _device_kind():
    try:
        return jax.devices()[0].device_kind.lower()
    except Exception:
        return ""


def _pick_proj_chunk(T, BT):
    """Largest divisor of T whose projection-GEMM M dim (chunk*BT) <= 1024 rows."""
    cap = max(1, 1024 // max(BT, 1))
    best = 1
    for c in range(1, min(T, cap) + 1):
        if T % c == 0:
            best = c
    return best


def _estimate_vmem_bytes(T, BT, Dw, Hp, proj_chunk):
    # per (batch-row, timestep): bf16 gi_f+gi_b (12Hp) + bf16 bwd (2Hp)
    #   + double-buffered bf16 out block (4Hp) + double-buffered bf16 x (4Dw) + mask
    per_row_t = 18 * Hp + 4 * Dw + 8
    slab = T * BT * per_row_t
    proj_tmp = 2 * proj_chunk * BT * 3 * Hp * 4      # f32 projection GEMM results
    weights = 2 * (2 * Dw * 3 * Hp * 2 + 2 * Hp * 6 * Hp * 2 + (6 + 2) * Hp * 4)
    recur_tmp = BT * Hp * 96                          # gh / gate temporaries per step
    return slab + proj_tmp + weights + recur_tmp + (2 << 20)   # + margin


# --------------------------------------------------------------------------
# Forward wrapper
# --------------------------------------------------------------------------
def text_rnn_forward(params, inputs, masks, *, batch_tile=None):
    """inputs: int32 [B, T] token ids;  masks: [B, T] {0,1}.  Returns [B, T, H]."""
    B, T = inputs.shape
    Dw = params["embedding"].shape[1]
    H = params["whh_f_t"].shape[0]
    Hp = max(128, _round_up(H, 128))                  # lane-dense hidden size

    kind = _device_kind()
    small_mxu = any(v in kind for v in ("v2", "v3", "v4", "v5"))  # 128-deep MXU
    fuse_recurrent = not small_mxu                    # K=256 fused GEMM on v6e/v7x
    gate_dtype = jnp.float32 if small_mxu else jnp.bfloat16       # v5e: no bf16 VPU/EUP
    phys_vmem = (64 << 20) if "v7" in kind else (128 << 20)       # per-core VMEM
    budget = int(0.8 * phys_vmem)

    # Embedding lookup + (eval-mode) dropout = identity; kernel consumes x as bf16.
    emb = jnp.take(params["embedding"], inputs, axis=0).astype(jnp.bfloat16)  # [B,T,Dw]
    x = jnp.transpose(emb, (1, 0, 2))                                         # [T,B,Dw]
    m = jnp.transpose(masks.astype(jnp.float32), (1, 0))[:, :, None]          # [T,B,1]

    # ---- batch-tile selection: big tiles, but fit the per-core VMEM budget ----
    if batch_tile is None:
        cap = 128 if small_mxu else 256               # fill MXU M rows on v6e/v7x
        BT = min(cap, _round_up(B, 8))
        b8 = _round_up(B, 8)
        if "v7" in kind and b8 >= 16 and b8 <= BT:
            BT = _round_up((b8 + 1) // 2, 8)          # >=2 tiles: use both TensorCores
        while BT > 8 and _estimate_vmem_bytes(T, BT, Dw, Hp,
                                              _pick_proj_chunk(T, BT)) > budget:
            BT = max(8, _round_up(BT // 2, 8))
    else:
        BT = batch_tile
    # TODO(synk): if even BT=8 exceeds `budget` (very large T), chunk T as a second
    # "arbitrary" grid axis with (h_f, h_b) carried in VMEM scratch across chunks.

    B_pad = _round_up(B, BT)
    if B_pad != B:
        x = jnp.pad(x, ((0, 0), (0, B_pad - B), (0, 0)))
        m = jnp.pad(m, ((0, 0), (0, B_pad - B), (0, 0)))
    nb = B_pad // BT

    proj_chunk = _pick_proj_chunk(T, BT)
    vmem_limit = int(min(phys_vmem,
                         max(32 << 20,
                             _estimate_vmem_bytes(T, BT, Dw, Hp, proj_chunk) + (8 << 20))))

    w_if, w_ib, b_i, w_hh, b_hn = _pack_params(params, H, Hp)

    kernel = functools.partial(bigru_kernel, proj_chunk=proj_chunk,
                               fuse_recurrent=fuse_recurrent, gate_dtype=gate_dtype)

    out = pl.pallas_call(
        kernel,
        out_shape=jax.ShapeDtypeStruct((T, B_pad, Hp), jnp.bfloat16),
        grid=(nb,),
        in_specs=[
            pl.BlockSpec((T, BT, Dw), lambda b: (0, b, 0)),   # x (batch-tiled, bf16)
            pl.BlockSpec((T, BT, 1), lambda b: (0, b, 0)),    # mask (batch-tiled)
            pl.BlockSpec(w_if.shape, lambda b: (0, 0)),       # W_ih fwd
            pl.BlockSpec(w_ib.shape, lambda b: (0, 0)),       # W_ih bwd
            pl.BlockSpec(b_i.shape, lambda b: (0, 0)),        # fused input biases
            pl.BlockSpec(w_hh.shape, lambda b: (0, 0)),       # block-diag W_hh
            pl.BlockSpec(b_hn.shape, lambda b: (0, 0)),       # b_hh (n gate)
        ],
        out_specs=pl.BlockSpec((T, BT, Hp), lambda b: (0, b, 0)),
        scratch_shapes=[
            pltpu.VMEM((T, BT, 3 * Hp), jnp.bfloat16),        # gi forward (bf16)
            pltpu.VMEM((T, BT, 3 * Hp), jnp.bfloat16),        # gi backward (bf16)
            pltpu.VMEM((T, BT, Hp), jnp.bfloat16),            # bwd direction outputs
        ],
        compiler_params=pltpu.CompilerParams(
            dimension_semantics=("parallel",),                # batch tiles independent
            vmem_limit_bytes=vmem_limit),
    )(x, m, w_if, w_ib, b_i, w_hh, b_hn)

    out = out[:, :B, :H]                         # drop batch + lane padding (bf16)
    out = jnp.transpose(out, (1, 0, 2))          # [B, T, H] post-processing in bf16
    return out.astype(jnp.float32)


# --------------------------------------------------------------------------
# Pure-JAX f32 reference (for checking)
# --------------------------------------------------------------------------
def _gru_cell(h, x, w_ih_t, w_hh_t, b_ih, b_hh, H):
    gi = jnp.dot(x, w_ih_t, preferred_element_type=jnp.float32) + b_ih
    gh = jnp.dot(h, w_hh_t, preferred_element_type=jnp.float32) + b_hh
    i_r, i_z, i_n = gi[:, 0:H], gi[:, H:2 * H], gi[:, 2 * H:3 * H]
    h_r, h_z, h_n = gh[:, 0:H], gh[:, H:2 * H], gh[:, 2 * H:3 * H]
    r = jax.nn.sigmoid(i_r + h_r)
    z = jax.nn.sigmoid(i_z + h_z)
    n = jnp.tanh(i_n + r * h_n)
    return (1.0 - z) * n + z * h


def _ref_dir(x, m, wih_t, whh_t, bih, bhh, reverse):
    B = x.shape[1]
    H = whh_t.shape[0]

    def step(h, inp):
        x_t, m_t = inp
        h_new = _gru_cell(h, x_t, wih_t, whh_t, bih, bhh, H)
        h = m_t * h_new + (1.0 - m_t) * h
        return h, h * m_t

    _, ys = lax.scan(step, jnp.zeros((B, H), jnp.float32), (x, m), reverse=reverse)
    return ys


def text_rnn_reference(params, inputs, masks):
    emb = jnp.take(params["embedding"], inputs, axis=0).astype(jnp.float32)
    x = jnp.transpose(emb, (1, 0, 2))
    m = jnp.transpose(masks.astype(jnp.float32), (1, 0))[:, :, None]
    fwd = _ref_dir(x, m, params["wih_f_t"], params["whh_f_t"],
                   params["bih_f"], params["bhh_f"], reverse=False)
    bwd = _ref_dir(x, m, params["wih_b_t"], params["whh_b_t"],
                   params["bih_b"], params["bhh_b"], reverse=True)
    return jnp.transpose(0.5 * (fwd + bwd), (1, 0, 2))


def init_params(key, num_words, dim_word, dim_embed):
    ks = jax.random.split(key, 9)
    s = 1.0 / jnp.sqrt(dim_embed)
    u = lambda k, shp: jax.random.uniform(k, shp, jnp.float32, -s, s)
    return {
        "embedding": jax.random.normal(ks[0], (num_words, dim_word), jnp.float32),
        # forward direction (stored transposed: [in, 3H], PyTorch gate order r,z,n)
        "wih_f_t": u(ks[1], (dim_word, 3 * dim_embed)),
        "whh_f_t": u(ks[2], (dim_embed, 3 * dim_embed)),
        "bih_f":   u(ks[3], (1, 3 * dim_embed)),
        "bhh_f":   u(ks[4], (1, 3 * dim_embed)),
        # backward direction
        "wih_b_t": u(ks[5], (dim_word, 3 * dim_embed)),
        "whh_b_t": u(ks[6], (dim_embed, 3 * dim_embed)),
        "bih_b":   u(ks[7], (1, 3 * dim_embed)),
        "bhh_b":   u(ks[8], (1, 3 * dim_embed)),
    }


if __name__ == "__main__":
    num_words, dim_word, dim_embed = 50, 16, 32
    B, T = 2, 8

    key = jax.random.PRNGKey(0)
    kp, ki = jax.random.split(key)
    params = init_params(kp, num_words, dim_word, dim_embed)

    inputs = jax.random.randint(ki, (B, T), 0, num_words, dtype=jnp.int32)
    seq_lens = jnp.array([T, 5], dtype=jnp.int32)
    masks = (jnp.arange(T)[None, :] < seq_lens[:, None]).astype(jnp.int32)

    out = jax.block_until_ready(text_rnn_forward(params, inputs, masks))
    ref = jax.block_until_ready(text_rnn_reference(params, inputs, masks))

    assert out.shape == (B, T, dim_embed)
    # bf16 MXU operands / bf16 scratch / (v6e+) bf16 gate math -> relaxed tolerance
    err = float(jnp.max(jnp.abs(out - ref)))
    assert jnp.allclose(out, ref, atol=4e-2, rtol=4e-2), f"mismatch, max abs err={err}"
    print("KERNEL_OK")
</pallas_src>

<mosaic_0001>
module attributes {stable_mosaic.version = 11 : i64} {
  func.func @bigru_kernel(%arg0: i32, %arg1: memref<8x8x16xbf16, #tpu.memory_space<vmem>>, %arg2: memref<8x8x1xf32, #tpu.memory_space<vmem>>, %arg3: memref<16x384xbf16, #tpu.memory_space<vmem>>, %arg4: memref<16x384xbf16, #tpu.memory_space<vmem>>, %arg5: memref<1x768xf32, #tpu.memory_space<vmem>>, %arg6: memref<256x768xbf16, #tpu.memory_space<vmem>>, %arg7: memref<1x256xf32, #tpu.memory_space<vmem>>, %arg8: memref<8x8x128xbf16, #tpu.memory_space<vmem>>, %arg9: memref<8x8x384xbf16, #tpu.memory_space<vmem>>, %arg10: memref<8x8x384xbf16, #tpu.memory_space<vmem>>, %arg11: memref<8x8x128xbf16, #tpu.memory_space<vmem>>) attributes {dimension_semantics = [#tpu.dimension_semantics<parallel>], iteration_bounds = array<i64: 1>, scalar_prefetch = 0 : i64, scratch_operands = 3 : i64, tpu.core_type = #tpu.core_type<tc>, window_params = [{transform_indices = @transform_0, window_bounds = array<i64: 8, 8, 16>}, {transform_indices = @transform_1, window_bounds = array<i64: 8, 8, 1>}, {pipeline_mode = #tpu.pipeline_mode<synchronous>, transform_indices = @transform_2, window_bounds = array<i64: 16, 384>}, {pipeline_mode = #tpu.pipeline_mode<synchronous>, transform_indices = @transform_3, window_bounds = array<i64: 16, 384>}, {pipeline_mode = #tpu.pipeline_mode<synchronous>, transform_indices = @transform_4, window_bounds = array<i64: 1, 768>}, {pipeline_mode = #tpu.pipeline_mode<synchronous>, transform_indices = @transform_5, window_bounds = array<i64: 256, 768>}, {pipeline_mode = #tpu.pipeline_mode<synchronous>, transform_indices = @transform_6, window_bounds = array<i64: 1, 256>}, {transform_indices = @transform_7, window_bounds = array<i64: 8, 8, 128>}]} {
    %c0 = arith.constant 0 : index
    %c0_0 = arith.constant 0 : index
    %0 = vector.load %arg3[%c0, %c0_0] : memref<16x384xbf16, #tpu.memory_space<vmem>>, vector<16x384xbf16>
    %c0_1 = arith.constant 0 : index
    %c0_2 = arith.constant 0 : index
    %1 = vector.load %arg4[%c0_1, %c0_2] : memref<16x384xbf16, #tpu.memory_space<vmem>>, vector<16x384xbf16>
    %c0_3 = arith.constant 0 : index
    %c0_4 = arith.constant 0 : index
    %2 = vector.load %arg5[%c0_3, %c0_4] : memref<1x768xf32, #tpu.memory_space<vmem>>, vector<1x384xf32>
    %c0_5 = arith.constant 0 : index
    %c384 = arith.constant 384 : index
    %3 = vector.load %arg5[%c0_5, %c384] : memref<1x768xf32, #tpu.memory_space<vmem>>, vector<1x384xf32>
    %c0_6 = arith.constant 0 : index
    %c0_7 = arith.constant 0 : index
    %4 = vector.load %arg7[%c0_6, %c0_7] : memref<1x256xf32, #tpu.memory_space<vmem>>, vector<1x128xf32>
    %5 = arith.truncf %4 : vector<1x128xf32> to vector<1x128xbf16>
    %6 = vector.shape_cast %5 : vector<1x128xbf16> to vector<1x128xbf16>
    %7 = vector.broadcast %6 : vector<1x128xbf16> to vector<8x128xbf16>
    %c0_8 = arith.constant 0 : index
    %c128 = arith.constant 128 : index
    %8 = vector.load %arg7[%c0_8, %c128] : memref<1x256xf32, #tpu.memory_space<vmem>>, vector<1x128xf32>
    %9 = arith.truncf %8 : vector<1x128xf32> to vector<1x128xbf16>
    %10 = vector.shape_cast %9 : vector<1x128xbf16> to vector<1x128xbf16>
    %11 = vector.broadcast %10 : vector<1x128xbf16> to vector<8x128xbf16>
    %c0_i32 = arith.constant 0 : i32
    %c1_i32 = arith.constant 1 : i32
    %12 = arith.muli %c0_i32, %c1_i32 : i32
    %c0_i32_9 = arith.constant 0 : i32
    %13 = arith.addi %c0_i32_9, %12 : i32
    %c8_i32 = arith.constant 8 : i32
    %14 = arith.muli %13, %c8_i32 : i32
    %15 = tpu.assume_multiple %14, 8 : i32
    %16 = arith.index_cast %15 : i32 to index
    %c0_10 = arith.constant 0 : index
    %c0_11 = arith.constant 0 : index
    %17 = vector.load %arg1[%16, %c0_10, %c0_11] : memref<8x8x16xbf16, #tpu.memory_space<vmem>>, vector<8x8x16xbf16>
    %18 = vector.shape_cast %17 : vector<8x8x16xbf16> to vector<64x16xbf16>
    %cst = arith.constant dense<0.000000e+00> : vector<64x384xf32>
    %19 = tpu.matmul %18, %0, %cst {dimension_numbers = #tpu.dot_dimension_numbers<[1], [0], [0], [1], [0, 0, 1, 1], [], []>} : vector<64x16xbf16>, vector<16x384xbf16>, vector<64x384xf32> -> vector<64x384xf32>
    %20 = vector.broadcast %2 : vector<1x384xf32> to vector<64x384xf32>
    %21 = arith.addf %19, %20 : vector<64x384xf32>
    %cst_12 = arith.constant dense<0.000000e+00> : vector<64x384xf32>
    %22 = tpu.matmul %18, %1, %cst_12 {dimension_numbers = #tpu.dot_dimension_numbers<[1], [0], [0], [1], [0, 0, 1, 1], [], []>} : vector<64x16xbf16>, vector<16x384xbf16>, vector<64x384xf32> -> vector<64x384xf32>
    %23 = vector.broadcast %3 : vector<1x384xf32> to vector<64x384xf32>
    %24 = arith.addf %22, %23 : vector<64x384xf32>
    %25 = arith.truncf %21 : vector<64x384xf32> to vector<64x384xbf16>
    %26 = vector.shape_cast %25 : vector<64x384xbf16> to vector<8x8x384xbf16>
    %27 = arith.index_cast %15 : i32 to index
    %c0_13 = arith.constant 0 : index
    %c0_14 = arith.constant 0 : index
    %28 = vector.load %arg9[%27, %c0_13, %c0_14] : memref<8x8x384xbf16, #tpu.memory_space<vmem>>, vector<8x8x384xbf16>
    tpu.vector_store %arg9[%27, %c0_13, %c0_14], %26 {strides = array<i32>} : memref<8x8x384xbf16, #tpu.memory_space<vmem>>, vector<8x8x384xbf16>,
    %29 = arith.truncf %24 : vector<64x384xf32> to vector<64x384xbf16>
    %30 = vector.shape_cast %29 : vector<64x384xbf16> to vector<8x8x384xbf16>
    %31 = arith.index_cast %15 : i32 to index
    %c0_15 = arith.constant 0 : index
    %c0_16 = arith.constant 0 : index
    %32 = vector.load %arg10[%31, %c0_15, %c0_16] : memref<8x8x384xbf16, #tpu.memory_space<vmem>>, vector<8x8x384xbf16>
    tpu.vector_store %arg10[%31, %c0_15, %c0_16], %30 {strides = array<i32>} : memref<8x8x384xbf16, #tpu.memory_space<vmem>>, vector<8x8x384xbf16>,
    %c1_i32_17 = arith.constant 1 : i32
    %c0_18 = arith.constant 0 : index
    %c0_19 = arith.constant 0 : index
    %33 = vector.load %arg6[%c0_18, %c0_19] : memref<256x768xbf16, #tpu.memory_space<vmem>>, vector<256x768xbf16>
    %cst_20 = arith.constant 0.000000e+00 : f32
    %34 = vector.broadcast %cst_20 : f32 to vector<8x256xf32>
    %c0_i32_21 = arith.constant 0 : i32
    %c7_i32 = arith.constant 7 : i32
    %35 = arith.subi %c7_i32, %c0_i32_21 : i32
    %36 = arith.truncf %34 : vector<8x256xf32> to vector<8x256xbf16>
    %cst_22 = arith.constant dense<0.000000e+00> : vector<8x768xf32>
    %37 = tpu.matmul %36, %33, %cst_22 {dimension_numbers = #tpu.dot_dimension_numbers<[1], [0], [0], [1], [0, 0, 1, 1], [], []>} : vector<8x256xbf16>, vector<256x768xbf16>, vector<8x768xf32> -> vector<8x768xf32>
    %38 = arith.index_cast %c0_i32_21 : i32 to index
    %c0_23 = arith.constant 0 : index
    %c0_24 = arith.constant 0 : index
    %39 = vector.load %arg9[%38, %c0_23, %c0_24] : memref<8x8x384xbf16, #tpu.memory_space<vmem>>, vector<1x8x384xbf16>
    %40 = vector.shape_cast %39 : vector<1x8x384xbf16> to vector<8x384xbf16>
    %41 = vector.extract_strided_slice %37 {offsets = [0, 0], sizes = [8, 384], strides = [1, 1]} : vector<8x768xf32> to vector<8x384xf32>
    %42 = vector.extract_strided_slice %34 {offsets = [0, 0], sizes = [8, 128], strides = [1, 1]} : vector<8x256xf32> to vector<8x128xf32>
    %43 = arith.truncf %41 : vector<8x384xf32> to vector<8x384xbf16>
    %44 = vector.extract_strided_slice %40 {offsets = [0, 0], sizes = [8, 128], strides = [1, 1]} : vector<8x384xbf16> to vector<8x128xbf16>
    %45 = vector.extract_strided_slice %43 {offsets = [0, 0], sizes = [8, 128], strides = [1, 1]} : vector<8x384xbf16> to vector<8x128xbf16>
    %46 = arith.addf %44, %45 : vector<8x128xbf16>
    %47 = arith.negf %46 : vector<8x128xbf16>
    %48 = math.exp %47 : vector<8x128xbf16>
    %cst_25 = arith.constant 1.000000e+00 : bf16
    %49 = vector.broadcast %cst_25 : bf16 to vector<8x128xbf16>
    %50 = arith.addf %49, %48 : vector<8x128xbf16>
    %51 = arith.divf %49, %50 : vector<8x128xbf16>
    %52 = vector.extract_strided_slice %40 {offsets = [0, 128], sizes = [8, 128], strides = [1, 1]} : vector<8x384xbf16> to vector<8x128xbf16>
    %53 = vector.extract_strided_slice %43 {offsets = [0, 128], sizes = [8, 128], strides = [1, 1]} : vector<8x384xbf16> to vector<8x128xbf16>
    %54 = arith.addf %52, %53 : vector<8x128xbf16>
    %55 = arith.negf %54 : vector<8x128xbf16>
    %56 = math.exp %55 : vector<8x128xbf16>
    %cst_26 = arith.constant 1.000000e+00 : bf16
    %57 = vector.broadcast %cst_26 : bf16 to vector<8x128xbf16>
    %58 = arith.addf %57, %56 : vector<8x128xbf16>
    %59 = arith.divf %57, %58 : vector<8x128xbf16>
    %60 = vector.extract_strided_slice %40 {offsets = [0, 256], sizes = [8, 128], strides = [1, 1]} : vector<8x384xbf16> to vector<8x128xbf16>
    %61 = vector.extract_strided_slice %43 {offsets = [0, 256], sizes = [8, 128], strides = [1, 1]} : vector<8x384xbf16> to vector<8x128xbf16>
    %62 = arith.addf %61, %7 : vector<8x128xbf16>
    %63 = arith.mulf %51, %62 : vector<8x128xbf16>
    %64 = arith.addf %60, %63 : vector<8x128xbf16>
    %65 = math.tanh %64 : vector<8x128xbf16>
    %66 = arith.extf %59 : vector<8x128xbf16> to vector<8x128xf32>
    %cst_27 = arith.constant 1.000000e+00 : f32
    %67 = vector.broadcast %cst_27 : f32 to vector<8x128xf32>
    %68 = arith.subf %67, %66 : vector<8x128xf32>
    %69 = arith.extf %65 : vector<8x128xbf16> to vector<8x128xf32>
    %70 = arith.mulf %68, %69 : vector<8x128xf32>
    %71 = arith.mulf %66, %42 : vector<8x128xf32>
    %72 = arith.addf %70, %71 : vector<8x128xf32>
    %73 = arith.index_cast %35 : i32 to index
    %c0_28 = arith.constant 0 : index
    %c0_29 = arith.constant 0 : index
    %74 = vector.load %arg10[%73, %c0_28, %c0_29] : memref<8x8x384xbf16, #tpu.memory_space<vmem>>, vector<1x8x384xbf16>
    %75 = vector.shape_cast %74 : vector<1x8x384xbf16> to vector<8x384xbf16>
    %76 = vector.extract_strided_slice %37 {offsets = [0, 384], sizes = [8, 384], strides = [1, 1]} : vector<8x768xf32> to vector<8x384xf32>
    %77 = vector.extract_strided_slice %34 {offsets = [0, 128], sizes = [8, 128], strides = [1, 1]} : vector<8x256xf32> to vector<8x128xf32>
    %78 = arith.truncf %76 : vector<8x384xf32> to vector<8x384xbf16>
    %79 = vector.extract_strided_slice %75 {offsets = [0, 0], sizes = [8, 128], strides = [1, 1]} : vector<8x384xbf16> to vector<8x128xbf16>
    %80 = vector.extract_strided_slice %78 {offsets = [0, 0], sizes = [8, 128], strides = [1, 1]} : vector<8x384xbf16> to vector<8x128xbf16>
    %81 = arith.addf %79, %80 : vector<8x128xbf16>
    %82 = arith.negf %81 : vector<8x128xbf16>
    %83 = math.exp %82 : vector<8x128xbf16>
    %cst_30 = arith.constant 1.000000e+00 : bf16
    %84 = vector.broadcast %cst_30 : bf16 to vector<8x128xbf16>
    %85 = arith.addf %84, %83 : vector<8x128xbf16>
    %86 = arith.divf %84, %85 : vector<8x128xbf16>
    %87 = vector.extract_strided_slice %75 {offsets = [0, 128], sizes = [8, 128], strides = [1, 1]} : vector<8x384xbf16> to vector<8x128xbf16>
    %88 = vector.extract_strided_slice %78 {offsets = [0, 128], sizes = [8, 128], strides = [1, 1]} : vector<8x384xbf16> to vector<8x128xbf16>
    %89 = arith.addf %87, %88 : vector<8x128xbf16>
    %90 = arith.negf %89 : vector<8x128xbf16>
    %91 = math.exp %90 : vector<8x128xbf16>
    %cst_31 = arith.constant 1.000000e+00 : bf16
    %92 = vector.broadcast %cst_31 : bf16 to vector<8x128xbf16>
    %93 = arith.addf %92, %91 : vector<8x128xbf16>
    %94 = arith.divf %92, %93 : vector<8x128xbf16>
    %95 = vector.extract_strided_slice %75 {offsets = [0, 256], sizes = [8, 128], strides = [1, 1]} : vector<8x384xbf16> to vector<8x128xbf16>
    %96 = vector.extract_strided_slice %78 {offsets = [0, 256], sizes = [8, 128], strides = [1, 1]} : vector<8x384xbf16> to vector<8x128xbf16>
    %97 = arith.addf %96, %11 : vector<8x128xbf16>
    %98 = arith.mulf %86, %97 : vector<8x128xbf16>
    %99 = arith.addf %95, %98 : vector<8x128xbf16>
    %100 = math.tanh %99 : vector<8x128xbf16>
    %101 = arith.extf %94 : vector<8x128xbf16> to vector<8x128xf32>
    %cst_32 = arith.constant 1.000000e+00 : f32
    %102 = vector.broadcast %cst_32 : f32 to vector<8x128xf32>
    %103 = arith.subf %102, %101 : vector<8x128xf32>
    %104 = arith.extf %100 : vector<8x128xbf16> to vector<8x128xf32>
    %105 = arith.mulf %103, %104 : vector<8x128xf32>
    %106 = arith.mulf %101, %77 : vector<8x128xf32>
    %107 = arith.addf %105, %106 : vector<8x128xf32>
    %108 = vector.extract_strided_slice %34 {offsets = [0, 0], sizes = [8, 128], strides = [1, 1]} : vector<8x256xf32> to vector<8x128xf32>
    %109 = vector.extract_strided_slice %34 {offsets = [0, 128], sizes = [8, 128], strides = [1, 1]} : vector<8x256xf32> to vector<8x128xf32>
    %110 = arith.index_cast %c0_i32_21 : i32 to index
    %c0_33 = arith.constant 0 : index
    %c0_34 = arith.constant 0 : index
    %111 = vector.load %arg2[%110, %c0_33, %c0_34] : memref<8x8x1xf32, #tpu.memory_space<vmem>>, vector<1x8x1xf32>
    %112 = vector.shape_cast %111 : vector<1x8x1xf32> to vector<8x1xf32>
    %cst_35 = arith.constant 0.000000e+00 : f32
    %113 = vector.broadcast %cst_35 : f32 to vector<8x1xf32>
    %114 = arith.cmpf ogt, %112, %113 : vector<8x1xf32>
    %115 = arith.index_cast %35 : i32 to index
    %c0_36 = arith.constant 0 : index
    %c0_37 = arith.constant 0 : index
    %116 = vector.load %arg2[%115, %c0_36, %c0_37] : memref<8x8x1xf32, #tpu.memory_space<vmem>>, vector<1x8x1xf32>
    %117 = vector.shape_cast %116 : vector<1x8x1xf32> to vector<8x1xf32>
    %cst_38 = arith.constant 0.000000e+00 : f32
    %118 = vector.broadcast %cst_38 : f32 to vector<8x1xf32>
    %119 = arith.cmpf ogt, %117, %118 : vector<8x1xf32>
    %120 = vector.shape_cast %114 : vector<8x1xi1> to vector<8x1xi1>
    %121 = vector.broadcast %120 : vector<8x1xi1> to vector<8x128xi1>
    %122 = arith.select %121, %72, %108 : vector<8x128xi1>, vector<8x128xf32>
    %123 = vector.shape_cast %119 : vector<8x1xi1> to vector<8x1xi1>
    %124 = vector.broadcast %123 : vector<8x1xi1> to vector<8x128xi1>
    %125 = arith.select %124, %107, %109 : vector<8x128xi1>, vector<8x128xf32>
    %cst_39 = arith.constant 0.000000e+00 : f32
    %126 = vector.shape_cast %114 : vector<8x1xi1> to vector<8x1xi1>
    %127 = vector.broadcast %126 : vector<8x1xi1> to vector<8x128xi1>
    %128 = vector.broadcast %cst_39 : f32 to vector<8x128xf32>
    %129 = arith.select %127, %122, %128 : vector<8x128xi1>, vector<8x128xf32>
    %130 = arith.truncf %129 : vector<8x128xf32> to vector<8x128xbf16>
    %131 = arith.index_cast %c0_i32_21 : i32 to index
    %c0_40 = arith.constant 0 : index
    %c0_41 = arith.constant 0 : index
    %132 = vector.load %arg8[%131, %c0_40, %c0_41] : memref<8x8x128xbf16, #tpu.memory_space<vmem>>, vector<1x8x128xbf16>
    %133 = vector.shape_cast %132 : vector<1x8x128xbf16> to vector<8x128xbf16>
    %134 = vector.shape_cast %130 : vector<8x128xbf16> to vector<1x8x128xbf16>
    tpu.vector_store %arg8[%131, %c0_40, %c0_41], %134 {strides = array<i32>} : memref<8x8x128xbf16, #tpu.memory_space<vmem>>, vector<1x8x128xbf16>,
    %cst_42 = arith.constant 0.000000e+00 : f32
    %135 = vector.shape_cast %119 : vector<8x1xi1> to vector<8x1xi1>
    %136 = vector.broadcast %135 : vector<8x1xi1> to vector<8x128xi1>
    %137 = vector.broadcast %cst_42 : f32 to vector<8x128xf32>
    %138 = arith.select %136, %125, %137 : vector<8x128xi1>, vector<8x128xf32>
    %139 = arith.truncf %138 : vector<8x128xf32> to vector<8x128xbf16>
    %140 = arith.index_cast %35 : i32 to index
    %c0_43 = arith.constant 0 : index
    %c0_44 = arith.constant 0 : index
    %141 = vector.load %arg11[%140, %c0_43, %c0_44] : memref<8x8x128xbf16, #tpu.memory_space<vmem>>, vector<1x8x128xbf16>
    %142 = vector.shape_cast %141 : vector<1x8x128xbf16> to vector<8x128xbf16>
    %143 = vector.shape_cast %139 : vector<8x128xbf16> to vector<1x8x128xbf16>
    tpu.vector_store %arg11[%140, %c0_43, %c0_44], %143 {strides = array<i32>} : memref<8x8x128xbf16, #tpu.memory_space<vmem>>, vector<1x8x128xbf16>,
    %144 = tpu.concatenate %122, %125 in 1 : vector<8x128xf32>, vector<8x128xf32> -> vector<8x256xf32>
    %c1_i32_45 = arith.constant 1 : i32
    %c7_i32_46 = arith.constant 7 : i32
    %145 = arith.subi %c7_i32_46, %c1_i32_45 : i32
    %146 = arith.truncf %144 : vector<8x256xf32> to vector<8x256xbf16>
    %cst_47 = arith.constant dense<0.000000e+00> : vector<8x768xf32>
    %147 = tpu.matmul %146, %33, %cst_47 {dimension_numbers = #tpu.dot_dimension_numbers<[1], [0], [0], [1], [0, 0, 1, 1], [], []>} : vector<8x256xbf16>, vector<256x768xbf16>, vector<8x768xf32> -> vector<8x768xf32>
    %148 = arith.index_cast %c1_i32_45 : i32 to index
    %c0_48 = arith.constant 0 : index
    %c0_49 = arith.constant 0 : index
    %149 = vector.load %arg9[%148, %c0_48, %c0_49] : memref<8x8x384xbf16, #tpu.memory_space<vmem>>, vector<1x8x384xbf16>
    %150 = vector.shape_cast %149 : vector<1x8x384xbf16> to vector<8x384xbf16>
    %151 = vector.extract_strided_slice %147 {offsets = [0, 0], sizes = [8, 384], strides = [1, 1]} : vector<8x768xf32> to vector<8x384xf32>
    %152 = vector.extract_strided_slice %144 {offsets = [0, 0], sizes = [8, 128], strides = [1, 1]} : vector<8x256xf32> to vector<8x128xf32>
    %153 = arith.truncf %151 : vector<8x384xf32> to vector<8x384xbf16>
    %154 = vector.extract_strided_slice %150 {offsets = [0, 0], sizes = [8, 128], strides = [1, 1]} : vector<8x384xbf16> to vector<8x128xbf16>
    %155 = vector.extract_strided_slice %153 {offsets = [0, 0], sizes = [8, 128], strides = [1, 1]} : vector<8x384xbf16> to vector<8x128xbf16>
    %156 = arith.addf %154, %155 : vector<8x128xbf16>
    %157 = arith.negf %156 : vector<8x128xbf16>
    %158 = math.exp %157 : vector<8x128xbf16>
    %cst_50 = arith.constant 1.000000e+00 : bf16
    %159 = vector.broadcast %cst_50 : bf16 to vector<8x128xbf16>
    %160 = arith.addf %159, %158 : vector<8x128xbf16>
    %161 = arith.divf %159, %160 : vector<8x128xbf16>
    %162 = vector.extract_strided_slice %150 {offsets = [0, 128], sizes = [8, 128], strides = [1, 1]} : vector<8x384xbf16> to vector<8x128xbf16>
    %163 = vector.extract_strided_slice %153 {offsets = [0, 128], sizes = [8, 128], strides = [1, 1]} : vector<8x384xbf16> to vector<8x128xbf16>
    %164 = arith.addf %162, %163 : vector<8x128xbf16>
    %165 = arith.negf %164 : vector<8x128xbf16>
    %166 = math.exp %165 : vector<8x128xbf16>
    %cst_51 = arith.constant 1.000000e+00 : bf16
    %167 = vector.broadcast %cst_51 : bf16 to vector<8x128xbf16>
    %168 = arith.addf %167, %166 : vector<8x128xbf16>
    %169 = arith.divf %167, %168 : vector<8x128xbf16>
    %170 = vector.extract_strided_slice %150 {offsets = [0, 256], sizes = [8, 128], strides = [1, 1]} : vector<8x384xbf16> to vector<8x128xbf16>
    %171 = vector.extract_strided_slice %153 {offsets = [0, 256], sizes = [8, 128], strides = [1, 1]} : vector<8x384xbf16> to vector<8x128xbf16>
    %172 = arith.addf %171, %7 : vector<8x128xbf16>
    %173 = arith.mulf %161, %172 : vector<8x128xbf16>
    %174 = arith.addf %170, %173 : vector<8x128xbf16>
    %175 = math.tanh %174 : vector<8x128xbf16>
    %176 = arith.extf %169 : vector<8x128xbf16> to vector<8x128xf32>
    %cst_52 = arith.constant 1.000000e+00 : f32
    %177 = vector.broadcast %cst_52 : f32 to vector<8x128xf32>
    %178 = arith.subf %177, %176 : vector<8x128xf32>
    %179 = arith.extf %175 : vector<8x128xbf16> to vector<8x128xf32>
    %180 = arith.mulf %178, %179 : vector<8x128xf32>
    %181 = arith.mulf %176, %152 : vector<8x128xf32>
    %182 = arith.addf %180, %181 : vector<8x128xf32>
    %183 = arith.index_cast %145 : i32 to index
    %c0_53 = arith.constant 0 : index
    %c0_54 = arith.constant 0 : index
    %184 = vector.load %arg10[%183, %c0_53, %c0_54] : memref<8x8x384xbf16, #tpu.memory_space<vmem>>, vector<1x8x384xbf16>
    %185 = vector.shape_cast %184 : vector<1x8x384xbf16> to vector<8x384xbf16>
    %186 = vector.extract_strided_slice %147 {offsets = [0, 384], sizes = [8, 384], strides = [1, 1]} : vector<8x768xf32> to vector<8x384xf32>
    %187 = vector.extract_strided_slice %144 {offsets = [0, 128], sizes = [8, 128], strides = [1, 1]} : vector<8x256xf32> to vector<8x128xf32>
    %188 = arith.truncf %186 : vector<8x384xf32> to vector<8x384xbf16>
    %189 = vector.extract_strided_slice %185 {offsets = [0, 0], sizes = [8, 128], strides = [1, 1]} : vector<8x384xbf16> to vector<8x128xbf16>
    %190 = vector.extract_strided_slice %188 {offsets = [0, 0], sizes = [8, 128], strides = [1, 1]} : vector<8x384xbf16> to vector<8x128xbf16>
    %191 = arith.addf %189, %190 : vector<8x128xbf16>
    %192 = arith.negf %191 : vector<8x128xbf16>
    %193 = math.exp %192 : vector<8x128xbf16>
    %cst_55 = arith.constant 1.000000e+00 : bf16
    %194 = vector.broadcast %cst_55 : bf16 to vector<8x128xbf16>
    %195 = arith.addf %194, %193 : vector<8x128xbf16>
    %196 = arith.divf %194, %195 : vector<8x128xbf16>
    %197 = vector.extract_strided_slice %185 {offsets = [0, 128], sizes = [8, 128], strides = [1, 1]} : vector<8x384xbf16> to vector<8x128xbf16>
    %198 = vector.extract_strided_slice %188 {offsets = [0, 128], sizes = [8, 128], strides = [1, 1]} : vector<8x384xbf16> to vector<8x128xbf16>
    %199 = arith.addf %197, %198 : vector<8x128xbf16>
    %200 = arith.negf %199 : vector<8x128xbf16>
    %201 = math.exp %200 : vector<8x128xbf16>
    %cst_56 = arith.constant 1.000000e+00 : bf16
    %202 = vector.broadcast %cst_56 : bf16 to vector<8x128xbf16>
    %203 = arith.addf %202, %201 : vector<8x128xbf16>
    %204 = arith.divf %202, %203 : vector<8x128xbf16>
    %205 = vector.extract_strided_slice %185 {offsets = [0, 256], sizes = [8, 128], strides = [1, 1]} : vector<8x384xbf16> to vector<8x128xbf16>
    %206 = vector.extract_strided_slice %188 {offsets = [0, 256], sizes = [8, 128], strides = [1, 1]} : vector<8x384xbf16> to vector<8x128xbf16>
    %207 = arith.addf %206, %11 : vector<8x128xbf16>
    %208 = arith.mulf %196, %207 : vector<8x128xbf16>
    %209 = arith.addf %205, %208 : vector<8x128xbf16>
    %210 = math.tanh %209 : vector<8x128xbf16>
    %211 = arith.extf %204 : vector<8x128xbf16> to vector<8x128xf32>
    %cst_57 = arith.constant 1.000000e+00 : f32
    %212 = vector.broadcast %cst_57 : f32 to vector<8x128xf32>
    %213 = arith.subf %212, %211 : vector<8x128xf32>
    %214 = arith.extf %210 : vector<8x128xbf16> to vector<8x128xf32>
    %215 = arith.mulf %213, %214 : vector<8x128xf32>
    %216 = arith.mulf %211, %187 : vector<8x128xf32>
    %217 = arith.addf %215, %216 : vector<8x128xf32>
    %218 = vector.extract_strided_slice %144 {offsets = [0, 0], sizes = [8, 128], strides = [1, 1]} : vector<8x256xf32> to vector<8x128xf32>
    %219 = vector.extract_strided_slice %144 {offsets = [0, 128], sizes = [8, 128], strides = [1, 1]} : vector<8x256xf32> to vector<8x128xf32>
    %220 = arith.index_cast %c1_i32_45 : i32 to index
    %c0_58 = arith.constant 0 : index
    %c0_59 = arith.constant 0 : index
    %221 = vector.load %arg2[%220, %c0_58, %c0_59] : memref<8x8x1xf32, #tpu.memory_space<vmem>>, vector<1x8x1xf32>
    %222 = vector.shape_cast %221 : vector<1x8x1xf32> to vector<8x1xf32>
    %cst_60 = arith.constant 0.000000e+00 : f32
    %223 = vector.broadcast %cst_60 : f32 to vector<8x1xf32>
    %224 = arith.cmpf ogt, %222, %223 : vector<8x1xf32>
    %225 = arith.index_cast %145 : i32 to index
    %c0_61 = arith.constant 0 : index
    %c0_62 = arith.constant 0 : index
    %226 = vector.load %arg2[%225, %c0_61, %c0_62] : memref<8x8x1xf32, #tpu.memory_space<vmem>>, vector<1x8x1xf32>
    %227 = vector.shape_cast %226 : vector<1x8x1xf32> to vector<8x1xf32>
    %cst_63 = arith.constant 0.000000e+00 : f32
    %228 = vector.broadcast %cst_63 : f32 to vector<8x1xf32>
    %229 = arith.cmpf ogt, %227, %228 : vector<8x1xf32>
    %230 = vector.shape_cast %224 : vector<8x1xi1> to vector<8x1xi1>
    %231 = vector.broadcast %230 : vector<8x1xi1> to vector<8x128xi1>
    %232 = arith.select %231, %182, %218 : vector<8x128xi1>, vector<8x128xf32>
    %233 = vector.shape_cast %229 : vector<8x1xi1> to vector<8x1xi1>
    %234 = vector.broadcast %233 : vector<8x1xi1> to vector<8x128xi1>
    %235 = arith.select %234, %217, %219 : vector<8x128xi1>, vector<8x128xf32>
    %cst_64 = arith.constant 0.000000e+00 : f32
    %236 = vector.shape_cast %224 : vector<8x1xi1> to vector<8x1xi1>
    %237 = vector.broadcast %236 : vector<8x1xi1> to vector<8x128xi1>
    %238 = vector.broadcast %cst_64 : f32 to vector<8x128xf32>
    %239 = arith.select %237, %232, %238 : vector<8x128xi1>, vector<8x128xf32>
    %240 = arith.truncf %239 : vector<8x128xf32> to vector<8x128xbf16>
    %241 = arith.index_cast %c1_i32_45 : i32 to index
    %c0_65 = arith.constant 0 : index
    %c0_66 = arith.constant 0 : index
    %242 = vector.load %arg8[%241, %c0_65, %c0_66] : memref<8x8x128xbf16, #tpu.memory_space<vmem>>, vector<1x8x128xbf16>
    %243 = vector.shape_cast %242 : vector<1x8x128xbf16> to vector<8x128xbf16>
    %244 = vector.shape_cast %240 : vector<8x128xbf16> to vector<1x8x128xbf16>
    tpu.vector_store %arg8[%241, %c0_65, %c0_66], %244 {strides = array<i32>} : memref<8x8x128xbf16, #tpu.memory_space<vmem>>, vector<1x8x128xbf16>,
    %cst_67 = arith.constant 0.000000e+00 : f32
    %245 = vector.shape_cast %229 : vector<8x1xi1> to vector<8x1xi1>
    %246 = vector.broadcast %245 : vector<8x1xi1> to vector<8x128xi1>
    %247 = vector.broadcast %cst_67 : f32 to vector<8x128xf32>
    %248 = arith.select %246, %235, %247 : vector<8x128xi1>, vector<8x128xf32>
    %249 = arith.truncf %248 : vector<8x128xf32> to vector<8x128xbf16>
    %250 = arith.index_cast %145 : i32 to index
    %c0_68 = arith.constant 0 : index
    %c0_69 = arith.constant 0 : index
    %251 = vector.load %arg11[%250, %c0_68, %c0_69] : memref<8x8x128xbf16, #tpu.memory_space<vmem>>, vector<1x8x128xbf16>
    %252 = vector.shape_cast %251 : vector<1x8x128xbf16> to vector<8x128xbf16>
    %253 = vector.shape_cast %249 : vector<8x128xbf16> to vector<1x8x128xbf16>
    tpu.vector_store %arg11[%250, %c0_68, %c0_69], %253 {strides = array<i32>} : memref<8x8x128xbf16, #tpu.memory_space<vmem>>, vector<1x8x128xbf16>,
    %254 = tpu.concatenate %232, %235 in 1 : vector<8x128xf32>, vector<8x128xf32> -> vector<8x256xf32>
    %c2_i32 = arith.constant 2 : i32
    %c7_i32_70 = arith.constant 7 : i32
    %255 = arith.subi %c7_i32_70, %c2_i32 : i32
    %256 = arith.truncf %254 : vector<8x256xf32> to vector<8x256xbf16>
    %cst_71 = arith.constant dense<0.000000e+00> : vector<8x768xf32>
    %257 = tpu.matmul %256, %33, %cst_71 {dimension_numbers = #tpu.dot_dimension_numbers<[1], [0], [0], [1], [0, 0, 1, 1], [], []>} : vector<8x256xbf16>, vector<256x768xbf16>, vector<8x768xf32> -> vector<8x768xf32>
    %258 = arith.index_cast %c2_i32 : i32 to index
    %c0_72 = arith.constant 0 : index
    %c0_73 = arith.constant 0 : index
    %259 = vector.load %arg9[%258, %c0_72, %c0_73] : memref<8x8x384xbf16, #tpu.memory_space<vmem>>, vector<1x8x384xbf16>
    %260 = vector.shape_cast %259 : vector<1x8x384xbf16> to vector<8x384xbf16>
    %261 = vector.extract_strided_slice %257 {offsets = [0, 0], sizes = [8, 384], strides = [1, 1]} : vector<8x768xf32> to vector<8x384xf32>
    %262 = vector.extract_strided_slice %254 {offsets = [0, 0], sizes = [8, 128], strides = [1, 1]} : vector<8x256xf32> to vector<8x128xf32>
    %263 = arith.truncf %261 : vector<8x384xf32> to vector<8x384xbf16>
    %264 = vector.extract_strided_slice %260 {offsets = [0, 0], sizes = [8, 128], strides = [1, 1]} : vector<8x384xbf16> to vector<8x128xbf16>
    %265 = vector.extract_strided_slice %263 {offsets = [0, 0], sizes = [8, 128], strides = [1, 1]} : vector<8x384xbf16> to vector<8x128xbf16>
    %266 = arith.addf %264, %265 : vector<8x128xbf16>
    %267 = arith.negf %266 : vector<8x128xbf16>
    %268 = math.exp %267 : vector<8x128xbf16>
    %cst_74 = arith.constant 1.000000e+00 : bf16
    %269 = vector.broadcast %cst_74 : bf16 to vector<8x128xbf16>
    %270 = arith.addf %269, %268 : vector<8x128xbf16>
    %271 = arith.divf %269, %270 : vector<8x128xbf16>
    %272 = vector.extract_strided_slice %260 {offsets = [0, 128], sizes = [8, 128], strides = [1, 1]} : vector<8x384xbf16> to vector<8x128xbf16>
    %273 = vector.extract_strided_slice %263 {offsets = [0, 128], sizes = [8, 128], strides = [1, 1]} : vector<8x384xbf16> to vector<8x128xbf16>
    %274 = arith.addf %272, %273 : vector<8x128xbf16>
    %275 = arith.negf %274 : vector<8x128xbf16>
    %276 = math.exp %275 : vector<8x128xbf16>
    %cst_75 = arith.constant 1.000000e+00 : bf16
    %277 = vector.broadcast %cst_75 : bf16 to vector<8x128xbf16>
    %278 = arith.addf %277, %276 : vector<8x128xbf16>
    %279 = arith.divf %277, %278 : vector<8x128xbf16>
    %280 = vector.extract_strided_slice %260 {offsets = [0, 256], sizes = [8, 128], strides = [1, 1]} : vector<8x384xbf16> to vector<8x128xbf16>
    %281 = vector.extract_strided_slice %263 {offsets = [0, 256], sizes = [8, 128], strides = [1, 1]} : vector<8x384xbf16> to vector<8x128xbf16>
    %282 = arith.addf %281, %7 : vector<8x128xbf16>
    %283 = arith.mulf %271, %282 : vector<8x128xbf16>
    %284 = arith.addf %280, %283 : vector<8x128xbf16>
    %285 = math.tanh %284 : vector<8x128xbf16>
    %286 = arith.extf %279 : vector<8x128xbf16> to vector<8x128xf32>
    %cst_76 = arith.constant 1.000000e+00 : f32
    %287 = vector.broadcast %cst_76 : f32 to vector<8x128xf32>
    %288 = arith.subf %287, %286 : vector<8x128xf32>
    %289 = arith.extf %285 : vector<8x128xbf16> to vector<8x128xf32>
    %290 = arith.mulf %288, %289 : vector<8x128xf32>
    %291 = arith.mulf %286, %262 : vector<8x128xf32>
    %292 = arith.addf %290, %291 : vector<8x128xf32>
    %293 = arith.index_cast %255 : i32 to index
    %c0_77 = arith.constant 0 : index
    %c0_78 = arith.constant 0 : index
    %294 = vector.load %arg10[%293, %c0_77, %c0_78] : memref<8x8x384xbf16, #tpu.memory_space<vmem>>, vector<1x8x384xbf16>
    %295 = vector.shape_cast %294 : vector<1x8x384xbf16> to vector<8x384xbf16>
    %296 = vector.extract_strided_slice %257 {offsets = [0, 384], sizes = [8, 384], strides = [1, 1]} : vector<8x768xf32> to vector<8x384xf32>
    %297 = vector.extract_strided_slice %254 {offsets = [0, 128], sizes = [8, 128], strides = [1, 1]} : vector<8x256xf32> to vector<8x128xf32>
    %298 = arith.truncf %296 : vector<8x384xf32> to vector<8x384xbf16>
    %299 = vector.extract_strided_slice %295 {offsets = [0, 0], sizes = [8, 128], strides = [1, 1]} : vector<8x384xbf16> to vector<8x128xbf16>
    %300 = vector.extract_strided_slice %298 {offsets = [0, 0], sizes = [8, 128], strides = [1, 1]} : vector<8x384xbf16> to vector<8x128xbf16>
    %301 = arith.addf %299, %300 : vector<8x128xbf16>
    %302 = arith.negf %301 : vector<8x128xbf16>
    %303 = math.exp %302 : vector<8x128xbf16>
    %cst_79 = arith.constant 1.000000e+00 : bf16
    %304 = vector.broadcast %cst_79 : bf16 to vector<8x128xbf16>
    %305 = arith.addf %304, %303 : vector<8x128xbf16>
    %306 = arith.divf %304, %305 : vector<8x128xbf16>
    %307 = vector.extract_strided_slice %295 {offsets = [0, 128], sizes = [8, 128], strides = [1, 1]} : vector<8x384xbf16> to vector<8x128xbf16>
    %308 = vector.extract_strided_slice %298 {offsets = [0, 128], sizes = [8, 128], strides = [1, 1]} : vector<8x384xbf16> to vector<8x128xbf16>
    %309 = arith.addf %307, %308 : vector<8x128xbf16>
    %310 = arith.negf %309 : vector<8x128xbf16>
    %311 = math.exp %310 : vector<8x128xbf16>
    %cst_80 = arith.constant 1.000000e+00 : bf16
    %312 = vector.broadcast %cst_80 : bf16 to vector<8x128xbf16>
    %313 = arith.addf %312, %311 : vector<8x128xbf16>
    %314 = arith.divf %312, %313 : vector<8x128xbf16>
    %315 = vector.extract_strided_slice %295 {offsets = [0, 256], sizes = [8, 128], strides = [1, 1]} : vector<8x384xbf16> to vector<8x128xbf16>
    %316 = vector.extract_strided_slice %298 {offsets = [0, 256], sizes = [8, 128], strides = [1, 1]} : vector<8x384xbf16> to vector<8x128xbf16>
    %317 = arith.addf %316, %11 : vector<8x128xbf16>
    %318 = arith.mulf %306, %317 : vector<8x128xbf16>
    %319 = arith.addf %315, %318 : vector<8x128xbf16>
    %320 = math.tanh %319 : vector<8x128xbf16>
    %321 = arith.extf %314 : vector<8x128xbf16> to vector<8x128xf32>
    %cst_81 = arith.constant 1.000000e+00 : f32
    %322 = vector.broadcast %cst_81 : f32 to vector<8x128xf32>
    %323 = arith.subf %322, %321 : vector<8x128xf32>
    %324 = arith.extf %320 : vector<8x128xbf16> to vector<8x128xf32>
    %325 = arith.mulf %323, %324 : vector<8x128xf32>
    %326 = arith.mulf %321, %297 : vector<8x128xf32>
    %327 = arith.addf %325, %326 : vector<8x128xf32>
    %328 = vector.extract_strided_slice %254 {offsets = [0, 0], sizes = [8, 128], strides = [1, 1]} : vector<8x256xf32> to vector<8x128xf32>
    %329 = vector.extract_strided_slice %254 {offsets = [0, 128], sizes = [8, 128], strides = [1, 1]} : vector<8x256xf32> to vector<8x128xf32>
    %330 = arith.index_cast %c2_i32 : i32 to index
    %c0_82 = arith.constant 0 : index
    %c0_83 = arith.constant 0 : index
    %331 = vector.load %arg2[%330, %c0_82, %c0_83] : memref<8x8x1xf32, #tpu.memory_space<vmem>>, vector<1x8x1xf32>
    %332 = vector.shape_cast %331 : vector<1x8x1xf32> to vector<8x1xf32>
    %cst_84 = arith.constant 0.000000e+00 : f32
    %333 = vector.broadcast %cst_84 : f32 to vector<8x1xf32>
    %334 = arith.cmpf ogt, %332, %333 : vector<8x1xf32>
    %335 = arith.index_cast %255 : i32 to index
    %c0_85 = arith.constant 0 : index
    %c0_86 = arith.constant 0 : index
    %336 = vector.load %arg2[%335, %c0_85, %c0_86] : memref<8x8x1xf32, #tpu.memory_space<vmem>>, vector<1x8x1xf32>
    %337 = vector.shape_cast %336 : vector<1x8x1xf32> to vector<8x1xf32>
    %cst_87 = arith.constant 0.000000e+00 : f32
    %338 = vector.broadcast %cst_87 : f32 to vector<8x1xf32>
    %339 = arith.cmpf ogt, %337, %338 : vector<8x1xf32>
    %340 = vector.shape_cast %334 : vector<8x1xi1> to vector<8x1xi1>
    %341 = vector.broadcast %340 : vector<8x1xi1> to vector<8x128xi1>
    %342 = arith.select %341, %292, %328 : vector<8x128xi1>, vector<8x128xf32>
    %343 = vector.shape_cast %339 : vector<8x1xi1> to vector<8x1xi1>
    %344 = vector.broadcast %343 : vector<8x1xi1> to vector<8x128xi1>
    %345 = arith.select %344, %327, %329 : vector<8x128xi1>, vector<8x128xf32>
    %cst_88 = arith.constant 0.000000e+00 : f32
    %346 = vector.shape_cast %334 : vector<8x1xi1> to vector<8x1xi1>
    %347 = vector.broadcast %346 : vector<8x1xi1> to vector<8x128xi1>
    %348 = vector.broadcast %cst_88 : f32 to vector<8x128xf32>
    %349 = arith.select %347, %342, %348 : vector<8x128xi1>, vector<8x128xf32>
    %350 = arith.truncf %349 : vector<8x128xf32> to vector<8x128xbf16>
    %351 = arith.index_cast %c2_i32 : i32 to index
    %c0_89 = arith.constant 0 : index
    %c0_90 = arith.constant 0 : index
    %352 = vector.load %arg8[%351, %c0_89, %c0_90] : memref<8x8x128xbf16, #tpu.memory_space<vmem>>, vector<1x8x128xbf16>
    %353 = vector.shape_cast %352 : vector<1x8x128xbf16> to vector<8x128xbf16>
    %354 = vector.shape_cast %350 : vector<8x128xbf16> to vector<1x8x128xbf16>
    tpu.vector_store %arg8[%351, %c0_89, %c0_90], %354 {strides = array<i32>} : memref<8x8x128xbf16, #tpu.memory_space<vmem>>, vector<1x8x128xbf16>,
    %cst_91 = arith.constant 0.000000e+00 : f32
    %355 = vector.shape_cast %339 : vector<8x1xi1> to vector<8x1xi1>
    %356 = vector.broadcast %355 : vector<8x1xi1> to vector<8x128xi1>
    %357 = vector.broadcast %cst_91 : f32 to vector<8x128xf32>
    %358 = arith.select %356, %345, %357 : vector<8x128xi1>, vector<8x128xf32>
    %359 = arith.truncf %358 : vector<8x128xf32> to vector<8x128xbf16>
    %360 = arith.index_cast %255 : i32 to index
    %c0_92 = arith.constant 0 : index
    %c0_93 = arith.constant 0 : index
    %361 = vector.load %arg11[%360, %c0_92, %c0_93] : memref<8x8x128xbf16, #tpu.memory_space<vmem>>, vector<1x8x128xbf16>
    %362 = vector.shape_cast %361 : vector<1x8x128xbf16> to vector<8x128xbf16>
    %363 = vector.shape_cast %359 : vector<8x128xbf16> to vector<1x8x128xbf16>
    tpu.vector_store %arg11[%360, %c0_92, %c0_93], %363 {strides = array<i32>} : memref<8x8x128xbf16, #tpu.memory_space<vmem>>, vector<1x8x128xbf16>,
    %364 = tpu.concatenate %342, %345 in 1 : vector<8x128xf32>, vector<8x128xf32> -> vector<8x256xf32>
    %c3_i32 = arith.constant 3 : i32
    %c7_i32_94 = arith.constant 7 : i32
    %365 = arith.subi %c7_i32_94, %c3_i32 : i32
    %366 = arith.truncf %364 : vector<8x256xf32> to vector<8x256xbf16>
    %cst_95 = arith.constant dense<0.000000e+00> : vector<8x768xf32>
    %367 = tpu.matmul %366, %33, %cst_95 {dimension_numbers = #tpu.dot_dimension_numbers<[1], [0], [0], [1], [0, 0, 1, 1], [], []>} : vector<8x256xbf16>, vector<256x768xbf16>, vector<8x768xf32> -> vector<8x768xf32>
    %368 = arith.index_cast %c3_i32 : i32 to index
    %c0_96 = arith.constant 0 : index
    %c0_97 = arith.constant 0 : index
    %369 = vector.load %arg9[%368, %c0_96, %c0_97] : memref<8x8x384xbf16, #tpu.memory_space<vmem>>, vector<1x8x384xbf16>
    %370 = vector.shape_cast %369 : vector<1x8x384xbf16> to vector<8x384xbf16>
    %371 = vector.extract_strided_slice %367 {offsets = [0, 0], sizes = [8, 384], strides = [1, 1]} : vector<8x768xf32> to vector<8x384xf32>
    %372 = vector.extract_strided_slice %364 {offsets = [0, 0], sizes = [8, 128], strides = [1, 1]} : vector<8x256xf32> to vector<8x128xf32>
    %373 = arith.truncf %371 : vector<8x384xf32> to vector<8x384xbf16>
    %374 = vector.extract_strided_slice %370 {offsets = [0, 0], sizes = [8, 128], strides = [1, 1]} : vector<8x384xbf16> to vector<8x128xbf16>
    %375 = vector.extract_strided_slice %373 {offsets = [0, 0], sizes = [8, 128], strides = [1, 1]} : vector<8x384xbf16> to vector<8x128xbf16>
    %376 = arith.addf %374, %375 : vector<8x128xbf16>
    %377 = arith.negf %376 : vector<8x128xbf16>
    %378 = math.exp %377 : vector<8x128xbf16>
    %cst_98 = arith.constant 1.000000e+00 : bf16
    %379 = vector.broadcast %cst_98 : bf16 to vector<8x128xbf16>
    %380 = arith.addf %379, %378 : vector<8x128xbf16>
    %381 = arith.divf %379, %380 : vector<8x128xbf16>
    %382 = vector.extract_strided_slice %370 {offsets = [0, 128], sizes = [8, 128], strides = [1, 1]} : vector<8x384xbf16> to vector<8x128xbf16>
    %383 = vector.extract_strided_slice %373 {offsets = [0, 128], sizes = [8, 128], strides = [1, 1]} : vector<8x384xbf16> to vector<8x128xbf16>
    %384 = arith.addf %382, %383 : vector<8x128xbf16>
    %385 = arith.negf %384 : vector<8x128xbf16>
    %386 = math.exp %385 : vector<8x128xbf16>
    %cst_99 = arith.constant 1.000000e+00 : bf16
    %387 = vector.broadcast %cst_99 : bf16 to vector<8x128xbf16>
    %388 = arith.addf %387, %386 : vector<8x128xbf16>
    %389 = arith.divf %387, %388 : vector<8x128xbf16>
    %390 = vector.extract_strided_slice %370 {offsets = [0, 256], sizes = [8, 128], strides = [1, 1]} : vector<8x384xbf16> to vector<8x128xbf16>
    %391 = vector.extract_strided_slice %373 {offsets = [0, 256], sizes = [8, 128], strides = [1, 1]} : vector<8x384xbf16> to vector<8x128xbf16>
    %392 = arith.addf %391, %7 : vector<8x128xbf16>
    %393 = arith.mulf %381, %392 : vector<8x128xbf16>
    %394 = arith.addf %390, %393 : vector<8x128xbf16>
    %395 = math.tanh %394 : vector<8x128xbf16>
    %396 = arith.extf %389 : vector<8x128xbf16> to vector<8x128xf32>
    %cst_100 = arith.constant 1.000000e+00 : f32
    %397 = vector.broadcast %cst_100 : f32 to vector<8x128xf32>
    %398 = arith.subf %397, %396 : vector<8x128xf32>
    %399 = arith.extf %395 : vector<8x128xbf16> to vector<8x128xf32>
    %400 = arith.mulf %398, %399 : vector<8x128xf32>
    %401 = arith.mulf %396, %372 : vector<8x128xf32>
    %402 = arith.addf %400, %401 : vector<8x128xf32>
    %403 = arith.index_cast %365 : i32 to index
    %c0_101 = arith.constant 0 : index
    %c0_102 = arith.constant 0 : index
    %404 = vector.load %arg10[%403, %c0_101, %c0_102] : memref<8x8x384xbf16, #tpu.memory_space<vmem>>, vector<1x8x384xbf16>
    %405 = vector.shape_cast %404 : vector<1x8x384xbf16> to vector<8x384xbf16>
    %406 = vector.extract_strided_slice %367 {offsets = [0, 384], sizes = [8, 384], strides = [1, 1]} : vector<8x768xf32> to vector<8x384xf32>
    %407 = vector.extract_strided_slice %364 {offsets = [0, 128], sizes = [8, 128], strides = [1, 1]} : vector<8x256xf32> to vector<8x128xf32>
    %408 = arith.truncf %406 : vector<8x384xf32> to vector<8x384xbf16>
    %409 = vector.extract_strided_slice %405 {offsets = [0, 0], sizes = [8, 128], strides = [1, 1]} : vector<8x384xbf16> to vector<8x128xbf16>
    %410 = vector.extract_strided_slice %408 {offsets = [0, 0], sizes = [8, 128], strides = [1, 1]} : vector<8x384xbf16> to vector<8x128xbf16>
    %411 = arith.addf %409, %410 : vector<8x128xbf16>
    %412 = arith.negf %411 : vector<8x128xbf16>
    %413 = math.exp %412 : vector<8x128xbf16>
    %cst_103 = arith.constant 1.000000e+00 : bf16
    %414 = vector.broadcast %cst_103 : bf16 to vector<8x128xbf16>
    %415 = arith.addf %414, %413 : vector<8x128xbf16>
    %416 = arith.divf %414, %415 : vector<8x128xbf16>
    %417 = vector.extract_strided_slice %405 {offsets = [0, 128], sizes = [8, 128], strides = [1, 1]} : vector<8x384xbf16> to vector<8x128xbf16>
    %418 = vector.extract_strided_slice %408 {offsets = [0, 128], sizes = [8, 128], strides = [1, 1]} : vector<8x384xbf16> to vector<8x128xbf16>
    %419 = arith.addf %417, %418 : vector<8x128xbf16>
    %420 = arith.negf %419 : vector<8x128xbf16>
    %421 = math.exp %420 : vector<8x128xbf16>
    %cst_104 = arith.constant 1.000000e+00 : bf16
    %422 = vector.broadcast %cst_104 : bf16 to vector<8x128xbf16>
    %423 = arith.addf %422, %421 : vector<8x128xbf16>
    %424 = arith.divf %422, %423 : vector<8x128xbf16>
    %425 = vector.extract_strided_slice %405 {offsets = [0, 256], sizes = [8, 128], strides = [1, 1]} : vector<8x384xbf16> to vector<8x128xbf16>
    %426 = vector.extract_strided_slice %408 {offsets = [0, 256], sizes = [8, 128], strides = [1, 1]} : vector<8x384xbf16> to vector<8x128xbf16>
    %427 = arith.addf %426, %11 : vector<8x128xbf16>
    %428 = arith.mulf %416, %427 : vector<8x128xbf16>
    %429 = arith.addf %425, %428 : vector<8x128xbf16>
    %430 = math.tanh %429 : vector<8x128xbf16>
    %431 = arith.extf %424 : vector<8x128xbf16> to vector<8x128xf32>
    %cst_105 = arith.constant 1.000000e+00 : f32
    %432 = vector.broadcast %cst_105 : f32 to vector<8x128xf32>
    %433 = arith.subf %432, %431 : vector<8x128xf32>
    %434 = arith.extf %430 : vector<8x128xbf16> to vector<8x128xf32>
    %435 = arith.mulf %433, %434 : vector<8x128xf32>
    %436 = arith.mulf %431, %407 : vector<8x128xf32>
    %437 = arith.addf %435, %436 : vector<8x128xf32>
    %438 = vector.extract_strided_slice %364 {offsets = [0, 0], sizes = [8, 128], strides = [1, 1]} : vector<8x256xf32> to vector<8x128xf32>
    %439 = vector.extract_strided_slice %364 {offsets = [0, 128], sizes = [8, 128], strides = [1, 1]} : vector<8x256xf32> to vector<8x128xf32>
    %440 = arith.index_cast %c3_i32 : i32 to index
    %c0_106 = arith.constant 0 : index
    %c0_107 = arith.constant 0 : index
    %441 = vector.load %arg2[%440, %c0_106, %c0_107] : memref<8x8x1xf32, #tpu.memory_space<vmem>>, vector<1x8x1xf32>
    %442 = vector.shape_cast %441 : vector<1x8x1xf32> to vector<8x1xf32>
    %cst_108 = arith.constant 0.000000e+00 : f32
    %443 = vector.broadcast %cst_108 : f32 to vector<8x1xf32>
    %444 = arith.cmpf ogt, %442, %443 : vector<8x1xf32>
    %445 = arith.index_cast %365 : i32 to index
    %c0_109 = arith.constant 0 : index
    %c0_110 = arith.constant 0 : index
    %446 = vector.load %arg2[%445, %c0_109, %c0_110] : memref<8x8x1xf32, #tpu.memory_space<vmem>>, vector<1x8x1xf32>
    %447 = vector.shape_cast %446 : vector<1x8x1xf32> to vector<8x1xf32>
    %cst_111 = arith.constant 0.000000e+00 : f32
    %448 = vector.broadcast %cst_111 : f32 to vector<8x1xf32>
    %449 = arith.cmpf ogt, %447, %448 : vector<8x1xf32>
    %450 = vector.shape_cast %444 : vector<8x1xi1> to vector<8x1xi1>
    %451 = vector.broadcast %450 : vector<8x1xi1> to vector<8x128xi1>
    %452 = arith.select %451, %402, %438 : vector<8x128xi1>, vector<8x128xf32>
    %453 = vector.shape_cast %449 : vector<8x1xi1> to vector<8x1xi1>
    %454 = vector.broadcast %453 : vector<8x1xi1> to vector<8x128xi1>
    %455 = arith.select %454, %437, %439 : vector<8x128xi1>, vector<8x128xf32>
    %cst_112 = arith.constant 0.000000e+00 : f32
    %456 = vector.shape_cast %444 : vector<8x1xi1> to vector<8x1xi1>
    %457 = vector.broadcast %456 : vector<8x1xi1> to vector<8x128xi1>
    %458 = vector.broadcast %cst_112 : f32 to vector<8x128xf32>
    %459 = arith.select %457, %452, %458 : vector<8x128xi1>, vector<8x128xf32>
    %460 = arith.truncf %459 : vector<8x128xf32> to vector<8x128xbf16>
    %461 = arith.index_cast %c3_i32 : i32 to index
    %c0_113 = arith.constant 0 : index
    %c0_114 = arith.constant 0 : index
    %462 = vector.load %arg8[%461, %c0_113, %c0_114] : memref<8x8x128xbf16, #tpu.memory_space<vmem>>, vector<1x8x128xbf16>
    %463 = vector.shape_cast %462 : vector<1x8x128xbf16> to vector<8x128xbf16>
    %464 = vector.shape_cast %460 : vector<8x128xbf16> to vector<1x8x128xbf16>
    tpu.vector_store %arg8[%461, %c0_113, %c0_114], %464 {strides = array<i32>} : memref<8x8x128xbf16, #tpu.memory_space<vmem>>, vector<1x8x128xbf16>,
    %cst_115 = arith.constant 0.000000e+00 : f32
    %465 = vector.shape_cast %449 : vector<8x1xi1> to vector<8x1xi1>
    %466 = vector.broadcast %465 : vector<8x1xi1> to vector<8x128xi1>
    %467 = vector.broadcast %cst_115 : f32 to vector<8x128xf32>
    %468 = arith.select %466, %455, %467 : vector<8x128xi1>, vector<8x128xf32>
    %469 = arith.truncf %468 : vector<8x128xf32> to vector<8x128xbf16>
    %470 = arith.index_cast %365 : i32 to index
    %c0_116 = arith.constant 0 : index
    %c0_117 = arith.constant 0 : index
    %471 = vector.load %arg11[%470, %c0_116, %c0_117] : memref<8x8x128xbf16, #tpu.memory_space<vmem>>, vector<1x8x128xbf16>
    %472 = vector.shape_cast %471 : vector<1x8x128xbf16> to vector<8x128xbf16>
    %473 = vector.shape_cast %469 : vector<8x128xbf16> to vector<1x8x128xbf16>
    tpu.vector_store %arg11[%470, %c0_116, %c0_117], %473 {strides = array<i32>} : memref<8x8x128xbf16, #tpu.memory_space<vmem>>, vector<1x8x128xbf16>,
    %474 = tpu.concatenate %452, %455 in 1 : vector<8x128xf32>, vector<8x128xf32> -> vector<8x256xf32>
    %c4_i32 = arith.constant 4 : i32
    %c7_i32_118 = arith.constant 7 : i32
    %475 = arith.subi %c7_i32_118, %c4_i32 : i32
    %476 = arith.truncf %474 : vector<8x256xf32> to vector<8x256xbf16>
    %cst_119 = arith.constant dense<0.000000e+00> : vector<8x768xf32>
    %477 = tpu.matmul %476, %33, %cst_119 {dimension_numbers = #tpu.dot_dimension_numbers<[1], [0], [0], [1], [0, 0, 1, 1], [], []>} : vector<8x256xbf16>, vector<256x768xbf16>, vector<8x768xf32> -> vector<8x768xf32>
    %478 = arith.index_cast %c4_i32 : i32 to index
    %c0_120 = arith.constant 0 : index
    %c0_121 = arith.constant 0 : index
    %479 = vector.load %arg9[%478, %c0_120, %c0_121] : memref<8x8x384xbf16, #tpu.memory_space<vmem>>, vector<1x8x384xbf16>
    %480 = vector.shape_cast %479 : vector<1x8x384xbf16> to vector<8x384xbf16>
    %481 = vector.extract_strided_slice %477 {offsets = [0, 0], sizes = [8, 384], strides = [1, 1]} : vector<8x768xf32> to vector<8x384xf32>
    %482 = vector.extract_strided_slice %474 {offsets = [0, 0], sizes = [8, 128], strides = [1, 1]} : vector<8x256xf32> to vector<8x128xf32>
    %483 = arith.truncf %481 : vector<8x384xf32> to vector<8x384xbf16>
    %484 = vector.extract_strided_slice %480 {offsets = [0, 0], sizes = [8, 128], strides = [1, 1]} : vector<8x384xbf16> to vector<8x128xbf16>
    %485 = vector.extract_strided_slice %483 {offsets = [0, 0], sizes = [8, 128], strides = [1, 1]} : vector<8x384xbf16> to vector<8x128xbf16>
    %486 = arith.addf %484, %485 : vector<8x128xbf16>
    %487 = arith.negf %486 : vector<8x128xbf16>
    %488 = math.exp %487 : vector<8x128xbf16>
    %cst_122 = arith.constant 1.000000e+00 : bf16
    %489 = vector.broadcast %cst_122 : bf16 to vector<8x128xbf16>
    %490 = arith.addf %489, %488 : vector<8x128xbf16>
    %491 = arith.divf %489, %490 : vector<8x128xbf16>
    %492 = vector.extract_strided_slice %480 {offsets = [0, 128], sizes = [8, 128], strides = [1, 1]} : vector<8x384xbf16> to vector<8x128xbf16>
    %493 = vector.extract_strided_slice %483 {offsets = [0, 128], sizes = [8, 128], strides = [1, 1]} : vector<8x384xbf16> to vector<8x128xbf16>
    %494 = arith.addf %492, %493 : vector<8x128xbf16>
    %495 = arith.negf %494 : vector<8x128xbf16>
    %496 = math.exp %495 : vector<8x128xbf16>
    %cst_123 = arith.constant 1.000000e+00 : bf16
    %497 = vector.broadcast %cst_123 : bf16 to vector<8x128xbf16>
    %498 = arith.addf %497, %496 : vector<8x128xbf16>
    %499 = arith.divf %497, %498 : vector<8x128xbf16>
    %500 = vector.extract_strided_slice %480 {offsets = [0, 256], sizes = [8, 128], strides = [1, 1]} : vector<8x384xbf16> to vector<8x128xbf16>
    %501 = vector.extract_strided_slice %483 {offsets = [0, 256], sizes = [8, 128], strides = [1, 1]} : vector<8x384xbf16> to vector<8x128xbf16>
    %502 = arith.addf %501, %7 : vector<8x128xbf16>
    %503 = arith.mulf %491, %502 : vector<8x128xbf16>
    %504 = arith.addf %500, %503 : vector<8x128xbf16>
    %505 = math.tanh %504 : vector<8x128xbf16>
    %506 = arith.extf %499 : vector<8x128xbf16> to vector<8x128xf32>
    %cst_124 = arith.constant 1.000000e+00 : f32
    %507 = vector.broadcast %cst_124 : f32 to vector<8x128xf32>
    %508 = arith.subf %507, %506 : vector<8x128xf32>
    %509 = arith.extf %505 : vector<8x128xbf16> to vector<8x128xf32>
    %510 = arith.mulf %508, %509 : vector<8x128xf32>
    %511 = arith.mulf %506, %482 : vector<8x128xf32>
    %512 = arith.addf %510, %511 : vector<8x128xf32>
    %513 = arith.index_cast %475 : i32 to index
    %c0_125 = arith.constant 0 : index
    %c0_126 = arith.constant 0 : index
    %514 = vector.load %arg10[%513, %c0_125, %c0_126] : memref<8x8x384xbf16, #tpu.memory_space<vmem>>, vector<1x8x384xbf16>
    %515 = vector.shape_cast %514 : vector<1x8x384xbf16> to vector<8x384xbf16>
    %516 = vector.extract_strided_slice %477 {offsets = [0, 384], sizes = [8, 384], strides = [1, 1]} : vector<8x768xf32> to vector<8x384xf32>
    %517 = vector.extract_strided_slice %474 {offsets = [0, 128], sizes = [8, 128], strides = [1, 1]} : vector<8x256xf32> to vector<8x128xf32>
    %518 = arith.truncf %516 : vector<8x384xf32> to vector<8x384xbf16>
    %519 = vector.extract_strided_slice %515 {offsets = [0, 0], sizes = [8, 128], strides = [1, 1]} : vector<8x384xbf16> to vector<8x128xbf16>
    %520 = vector.extract_strided_slice %518 {offsets = [0, 0], sizes = [8, 128], strides = [1, 1]} : vector<8x384xbf16> to vector<8x128xbf16>
    %521 = arith.addf %519, %520 : vector<8x128xbf16>
    %522 = arith.negf %521 : vector<8x128xbf16>
    %523 = math.exp %522 : vector<8x128xbf16>
    %cst_127 = arith.constant 1.000000e+00 : bf16
    %524 = vector.broadcast %cst_127 : bf16 to vector<8x128xbf16>
    %525 = arith.addf %524, %523 : vector<8x128xbf16>
    %526 = arith.divf %524, %525 : vector<8x128xbf16>
    %527 = vector.extract_strided_slice %515 {offsets = [0, 128], sizes = [8, 128], strides = [1, 1]} : vector<8x384xbf16> to vector<8x128xbf16>
    %528 = vector.extract_strided_slice %518 {offsets = [0, 128], sizes = [8, 128], strides = [1, 1]} : vector<8x384xbf16> to vector<8x128xbf16>
    %529 = arith.addf %527, %528 : vector<8x128xbf16>
    %530 = arith.negf %529 : vector<8x128xbf16>
    %531 = math.exp %530 : vector<8x128xbf16>
    %cst_128 = arith.constant 1.000000e+00 : bf16
    %532 = vector.broadcast %cst_128 : bf16 to vector<8x128xbf16>
    %533 = arith.addf %532, %531 : vector<8x128xbf16>
    %534 = arith.divf %532, %533 : vector<8x128xbf16>
    %535 = vector.extract_strided_slice %515 {offsets = [0, 256], sizes = [8, 128], strides = [1, 1]} : vector<8x384xbf16> to vector<8x128xbf16>
    %536 = vector.extract_strided_slice %518 {offsets = [0, 256], sizes = [8, 128], strides = [1, 1]} : vector<8x384xbf16> to vector<8x128xbf16>
    %537 = arith.addf %536, %11 : vector<8x128xbf16>
    %538 = arith.mulf %526, %537 : vector<8x128xbf16>
    %539 = arith.addf %535, %538 : vector<8x128xbf16>
    %540 = math.tanh %539 : vector<8x128xbf16>
    %541 = arith.extf %534 : vector<8x128xbf16> to vector<8x128xf32>
    %cst_129 = arith.constant 1.000000e+00 : f32
    %542 = vector.broadcast %cst_129 : f32 to vector<8x128xf32>
    %543 = arith.subf %542, %541 : vector<8x128xf32>
    %544 = arith.extf %540 : vector<8x128xbf16> to vector<8x128xf32>
    %545 = arith.mulf %543, %544 : vector<8x128xf32>
    %546 = arith.mulf %541, %517 : vector<8x128xf32>
    %547 = arith.addf %545, %546 : vector<8x128xf32>
    %548 = vector.extract_strided_slice %474 {offsets = [0, 0], sizes = [8, 128], strides = [1, 1]} : vector<8x256xf32> to vector<8x128xf32>
    %549 = vector.extract_strided_slice %474 {offsets = [0, 128], sizes = [8, 128], strides = [1, 1]} : vector<8x256xf32> to vector<8x128xf32>
    %550 = arith.index_cast %c4_i32 : i32 to index
    %c0_130 = arith.constant 0 : index
    %c0_131 = arith.constant 0 : index
    %551 = vector.load %arg2[%550, %c0_130, %c0_131] : memref<8x8x1xf32, #tpu.memory_space<vmem>>, vector<1x8x1xf32>
    %552 = vector.shape_cast %551 : vector<1x8x1xf32> to vector<8x1xf32>
    %cst_132 = arith.constant 0.000000e+00 : f32
    %553 = vector.broadcast %cst_132 : f32 to vector<8x1xf32>
    %554 = arith.cmpf ogt, %552, %553 : vector<8x1xf32>
    %555 = arith.index_cast %475 : i32 to index
    %c0_133 = arith.constant 0 : index
    %c0_134 = arith.constant 0 : index
    %556 = vector.load %arg2[%555, %c0_133, %c0_134] : memref<8x8x1xf32, #tpu.memory_space<vmem>>, vector<1x8x1xf32>
    %557 = vector.shape_cast %556 : vector<1x8x1xf32> to vector<8x1xf32>
    %cst_135 = arith.constant 0.000000e+00 : f32
    %558 = vector.broadcast %cst_135 : f32 to vector<8x1xf32>
    %559 = arith.cmpf ogt, %557, %558 : vector<8x1xf32>
    %560 = vector.shape_cast %554 : vector<8x1xi1> to vector<8x1xi1>
    %561 = vector.broadcast %560 : vector<8x1xi1> to vector<8x128xi1>
    %562 = arith.select %561, %512, %548 : vector<8x128xi1>, vector<8x128xf32>
    %563 = vector.shape_cast %559 : vector<8x1xi1> to vector<8x1xi1>
    %564 = vector.broadcast %563 : vector<8x1xi1> to vector<8x128xi1>
    %565 = arith.select %564, %547, %549 : vector<8x128xi1>, vector<8x128xf32>
    %cst_136 = arith.constant 0.000000e+00 : f32
    %566 = vector.shape_cast %554 : vector<8x1xi1> to vector<8x1xi1>
    %567 = vector.broadcast %566 : vector<8x1xi1> to vector<8x128xi1>
    %568 = vector.broadcast %cst_136 : f32 to vector<8x128xf32>
    %569 = arith.select %567, %562, %568 : vector<8x128xi1>, vector<8x128xf32>
    %570 = arith.truncf %569 : vector<8x128xf32> to vector<8x128xbf16>
    %571 = arith.index_cast %c4_i32 : i32 to index
    %c0_137 = arith.constant 0 : index
    %c0_138 = arith.constant 0 : index
    %572 = vector.load %arg8[%571, %c0_137, %c0_138] : memref<8x8x128xbf16, #tpu.memory_space<vmem>>, vector<1x8x128xbf16>
    %573 = vector.shape_cast %572 : vector<1x8x128xbf16> to vector<8x128xbf16>
    %574 = vector.shape_cast %570 : vector<8x128xbf16> to vector<1x8x128xbf16>
    tpu.vector_store %arg8[%571, %c0_137, %c0_138], %574 {strides = array<i32>} : memref<8x8x128xbf16, #tpu.memory_space<vmem>>, vector<1x8x128xbf16>,
    %cst_139 = arith.constant 0.000000e+00 : f32
    %575 = vector.shape_cast %559 : vector<8x1xi1> to vector<8x1xi1>
    %576 = vector.broadcast %575 : vector<8x1xi1> to vector<8x128xi1>
    %577 = vector.broadcast %cst_139 : f32 to vector<8x128xf32>
    %578 = arith.select %576, %565, %577 : vector<8x128xi1>, vector<8x128xf32>
    %579 = arith.truncf %578 : vector<8x128xf32> to vector<8x128xbf16>
    %580 = arith.index_cast %475 : i32 to index
    %c0_140 = arith.constant 0 : index
    %c0_141 = arith.constant 0 : index
    %581 = vector.load %arg11[%580, %c0_140, %c0_141] : memref<8x8x128xbf16, #tpu.memory_space<vmem>>, vector<1x8x128xbf16>
    %582 = vector.shape_cast %581 : vector<1x8x128xbf16> to vector<8x128xbf16>
    %583 = vector.shape_cast %579 : vector<8x128xbf16> to vector<1x8x128xbf16>
    tpu.vector_store %arg11[%580, %c0_140, %c0_141], %583 {strides = array<i32>} : memref<8x8x128xbf16, #tpu.memory_space<vmem>>, vector<1x8x128xbf16>,
    %584 = tpu.concatenate %562, %565 in 1 : vector<8x128xf32>, vector<8x128xf32> -> vector<8x256xf32>
    %c5_i32 = arith.constant 5 : i32
    %c7_i32_142 = arith.constant 7 : i32
    %585 = arith.subi %c7_i32_142, %c5_i32 : i32
    %586 = arith.truncf %584 : vector<8x256xf32> to vector<8x256xbf16>
    %cst_143 = arith.constant dense<0.000000e+00> : vector<8x768xf32>
    %587 = tpu.matmul %586, %33, %cst_143 {dimension_numbers = #tpu.dot_dimension_numbers<[1], [0], [0], [1], [0, 0, 1, 1], [], []>} : vector<8x256xbf16>, vector<256x768xbf16>, vector<8x768xf32> -> vector<8x768xf32>
    %588 = arith.index_cast %c5_i32 : i32 to index
    %c0_144 = arith.constant 0 : index
    %c0_145 = arith.constant 0 : index
    %589 = vector.load %arg9[%588, %c0_144, %c0_145] : memref<8x8x384xbf16, #tpu.memory_space<vmem>>, vector<1x8x384xbf16>
    %590 = vector.shape_cast %589 : vector<1x8x384xbf16> to vector<8x384xbf16>
    %591 = vector.extract_strided_slice %587 {offsets = [0, 0], sizes = [8, 384], strides = [1, 1]} : vector<8x768xf32> to vector<8x384xf32>
    %592 = vector.extract_strided_slice %584 {offsets = [0, 0], sizes = [8, 128], strides = [1, 1]} : vector<8x256xf32> to vector<8x128xf32>
    %593 = arith.truncf %591 : vector<8x384xf32> to vector<8x384xbf16>
    %594 = vector.extract_strided_slice %590 {offsets = [0, 0], sizes = [8, 128], strides = [1, 1]} : vector<8x384xbf16> to vector<8x128xbf16>
    %595 = vector.extract_strided_slice %593 {offsets = [0, 0], sizes = [8, 128], strides = [1, 1]} : vector<8x384xbf16> to vector<8x128xbf16>
    %596 = arith.addf %594, %595 : vector<8x128xbf16>
    %597 = arith.negf %596 : vector<8x128xbf16>
    %598 = math.exp %597 : vector<8x128xbf16>
    %cst_146 = arith.constant 1.000000e+00 : bf16
    %599 = vector.broadcast %cst_146 : bf16 to vector<8x128xbf16>
    %600 = arith.addf %599, %598 : vector<8x128xbf16>
    %601 = arith.divf %599, %600 : vector<8x128xbf16>
    %602 = vector.extract_strided_slice %590 {offsets = [0, 128], sizes = [8, 128], strides = [1, 1]} : vector<8x384xbf16> to vector<8x128xbf16>
    %603 = vector.extract_strided_slice %593 {offsets = [0, 128], sizes = [8, 128], strides = [1, 1]} : vector<8x384xbf16> to vector<8x128xbf16>
    %604 = arith.addf %602, %603 : vector<8x128xbf16>
    %605 = arith.negf %604 : vector<8x128xbf16>
    %606 = math.exp %605 : vector<8x128xbf16>
    %cst_147 = arith.constant 1.000000e+00 : bf16
    %607 = vector.broadcast %cst_147 : bf16 to vector<8x128xbf16>
    %608 = arith.addf %607, %606 : vector<8x128xbf16>
    %609 = arith.divf %607, %608 : vector<8x128xbf16>
    %610 = vector.extract_strided_slice %590 {offsets = [0, 256], sizes = [8, 128], strides = [1, 1]} : vector<8x384xbf16> to vector<8x128xbf16>
    %611 = vector.extract_strided_slice %593 {offsets = [0, 256], sizes = [8, 128], strides = [1, 1]} : vector<8x384xbf16> to vector<8x128xbf16>
    %612 = arith.addf %611, %7 : vector<8x128xbf16>
    %613 = arith.mulf %601, %612 : vector<8x128xbf16>
    %614 = arith.addf %610, %613 : vector<8x128xbf16>
    %615 = math.tanh %614 : vector<8x128xbf16>
    %616 = arith.extf %609 : vector<8x128xbf16> to vector<8x128xf32>
    %cst_148 = arith.constant 1.000000e+00 : f32
    %617 = vector.broadcast %cst_148 : f32 to vector<8x128xf32>
    %618 = arith.subf %617, %616 : vector<8x128xf32>
    %619 = arith.extf %615 : vector<8x128xbf16> to vector<8x128xf32>
    %620 = arith.mulf %618, %619 : vector<8x128xf32>
    %621 = arith.mulf %616, %592 : vector<8x128xf32>
    %622 = arith.addf %620, %621 : vector<8x128xf32>
    %623 = arith.index_cast %585 : i32 to index
    %c0_149 = arith.constant 0 : index
    %c0_150 = arith.constant 0 : index
    %624 = vector.load %arg10[%623, %c0_149, %c0_150] : memref<8x8x384xbf16, #tpu.memory_space<vmem>>, vector<1x8x384xbf16>
    %625 = vector.shape_cast %624 : vector<1x8x384xbf16> to vector<8x384xbf16>
    %626 = vector.extract_strided_slice %587 {offsets = [0, 384], sizes = [8, 384], strides = [1, 1]} : vector<8x768xf32> to vector<8x384xf32>
    %627 = vector.extract_strided_slice %584 {offsets = [0, 128], sizes = [8, 128], strides = [1, 1]} : vector<8x256xf32> to vector<8x128xf32>
    %628 = arith.truncf %626 : vector<8x384xf32> to vector<8x384xbf16>
    %629 = vector.extract_strided_slice %625 {offsets = [0, 0], sizes = [8, 128], strides = [1, 1]} : vector<8x384xbf16> to vector<8x128xbf16>
    %630 = vector.extract_strided_slice %628 {offsets = [0, 0], sizes = [8, 128], strides = [1, 1]} : vector<8x384xbf16> to vector<8x128xbf16>
    %631 = arith.addf %629, %630 : vector<8x128xbf16>
    %632 = arith.negf %631 : vector<8x128xbf16>
    %633 = math.exp %632 : vector<8x128xbf16>
    %cst_151 = arith.constant 1.000000e+00 : bf16
    %634 = vector.broadcast %cst_151 : bf16 to vector<8x128xbf16>
    %635 = arith.addf %634, %633 : vector<8x128xbf16>
    %636 = arith.divf %634, %635 : vector<8x128xbf16>
    %637 = vector.extract_strided_slice %625 {offsets = [0, 128], sizes = [8, 128], strides = [1, 1]} : vector<8x384xbf16> to vector<8x128xbf16>
    %638 = vector.extract_strided_slice %628 {offsets = [0, 128], sizes = [8, 128], strides = [1, 1]} : vector<8x384xbf16> to vector<8x128xbf16>
    %639 = arith.addf %637, %638 : vector<8x128xbf16>
    %640 = arith.negf %639 : vector<8x128xbf16>
    %641 = math.exp %640 : vector<8x128xbf16>
    %cst_152 = arith.constant 1.000000e+00 : bf16
    %642 = vector.broadcast %cst_152 : bf16 to vector<8x128xbf16>
    %643 = arith.addf %642, %641 : vector<8x128xbf16>
    %644 = arith.divf %642, %643 : vector<8x128xbf16>
    %645 = vector.extract_strided_slice %625 {offsets = [0, 256], sizes = [8, 128], strides = [1, 1]} : vector<8x384xbf16> to vector<8x128xbf16>
    %646 = vector.extract_strided_slice %628 {offsets = [0, 256], sizes = [8, 128], strides = [1, 1]} : vector<8x384xbf16> to vector<8x128xbf16>
    %647 = arith.addf %646, %11 : vector<8x128xbf16>
    %648 = arith.mulf %636, %647 : vector<8x128xbf16>
    %649 = arith.addf %645, %648 : vector<8x128xbf16>
    %650 = math.tanh %649 : vector<8x128xbf16>
    %651 = arith.extf %644 : vector<8x128xbf16> to vector<8x128xf32>
    %cst_153 = arith.constant 1.000000e+00 : f32
    %652 = vector.broadcast %cst_153 : f32 to vector<8x128xf32>
    %653 = arith.subf %652, %651 : vector<8x128xf32>
    %654 = arith.extf %650 : vector<8x128xbf16> to vector<8x128xf32>
    %655 = arith.mulf %653, %654 : vector<8x128xf32>
    %656 = arith.mulf %651, %627 : vector<8x128xf32>
    %657 = arith.addf %655, %656 : vector<8x128xf32>
    %658 = vector.extract_strided_slice %584 {offsets = [0, 0], sizes = [8, 128], strides = [1, 1]} : vector<8x256xf32> to vector<8x128xf32>
    %659 = vector.extract_strided_slice %584 {offsets = [0, 128], sizes = [8, 128], strides = [1, 1]} : vector<8x256xf32> to vector<8x128xf32>
    %660 = arith.index_cast %c5_i32 : i32 to index
    %c0_154 = arith.constant 0 : index
    %c0_155 = arith.constant 0 : index
    %661 = vector.load %arg2[%660, %c0_154, %c0_155] : memref<8x8x1xf32, #tpu.memory_space<vmem>>, vector<1x8x1xf32>
    %662 = vector.shape_cast %661 : vector<1x8x1xf32> to vector<8x1xf32>
    %cst_156 = arith.constant 0.000000e+00 : f32
    %663 = vector.broadcast %cst_156 : f32 to vector<8x1xf32>
    %664 = arith.cmpf ogt, %662, %663 : vector<8x1xf32>
    %665 = arith.index_cast %585 : i32 to index
    %c0_157 = arith.constant 0 : index
    %c0_158 = arith.constant 0 : index
    %666 = vector.load %arg2[%665, %c0_157, %c0_158] : memref<8x8x1xf32, #tpu.memory_space<vmem>>, vector<1x8x1xf32>
    %667 = vector.shape_cast %666 : vector<1x8x1xf32> to vector<8x1xf32>
    %cst_159 = arith.constant 0.000000e+00 : f32
    %668 = vector.broadcast %cst_159 : f32 to vector<8x1xf32>
    %669 = arith.cmpf ogt, %667, %668 : vector<8x1xf32>
    %670 = vector.shape_cast %664 : vector<8x1xi1> to vector<8x1xi1>
    %671 = vector.broadcast %670 : vector<8x1xi1> to vector<8x128xi1>
    %672 = arith.select %671, %622, %658 : vector<8x128xi1>, vector<8x128xf32>
    %673 = vector.shape_cast %669 : vector<8x1xi1> to vector<8x1xi1>
    %674 = vector.broadcast %673 : vector<8x1xi1> to vector<8x128xi1>
    %675 = arith.select %674, %657, %659 : vector<8x128xi1>, vector<8x128xf32>
    %cst_160 = arith.constant 0.000000e+00 : f32
    %676 = vector.shape_cast %664 : vector<8x1xi1> to vector<8x1xi1>
    %677 = vector.broadcast %676 : vector<8x1xi1> to vector<8x128xi1>
    %678 = vector.broadcast %cst_160 : f32 to vector<8x128xf32>
    %679 = arith.select %677, %672, %678 : vector<8x128xi1>, vector<8x128xf32>
    %680 = arith.truncf %679 : vector<8x128xf32> to vector<8x128xbf16>
    %681 = arith.index_cast %c5_i32 : i32 to index
    %c0_161 = arith.constant 0 : index
    %c0_162 = arith.constant 0 : index
    %682 = vector.load %arg8[%681, %c0_161, %c0_162] : memref<8x8x128xbf16, #tpu.memory_space<vmem>>, vector<1x8x128xbf16>
    %683 = vector.shape_cast %682 : vector<1x8x128xbf16> to vector<8x128xbf16>
    %684 = vector.shape_cast %680 : vector<8x128xbf16> to vector<1x8x128xbf16>
    tpu.vector_store %arg8[%681, %c0_161, %c0_162], %684 {strides = array<i32>} : memref<8x8x128xbf16, #tpu.memory_space<vmem>>, vector<1x8x128xbf16>,
    %cst_163 = arith.constant 0.000000e+00 : f32
    %685 = vector.shape_cast %669 : vector<8x1xi1> to vector<8x1xi1>
    %686 = vector.broadcast %685 : vector<8x1xi1> to vector<8x128xi1>
    %687 = vector.broadcast %cst_163 : f32 to vector<8x128xf32>
    %688 = arith.select %686, %675, %687 : vector<8x128xi1>, vector<8x128xf32>
    %689 = arith.truncf %688 : vector<8x128xf32> to vector<8x128xbf16>
    %690 = arith.index_cast %585 : i32 to index
    %c0_164 = arith.constant 0 : index
    %c0_165 = arith.constant 0 : index
    %691 = vector.load %arg11[%690, %c0_164, %c0_165] : memref<8x8x128xbf16, #tpu.memory_space<vmem>>, vector<1x8x128xbf16>
    %692 = vector.shape_cast %691 : vector<1x8x128xbf16> to vector<8x128xbf16>
    %693 = vector.shape_cast %689 : vector<8x128xbf16> to vector<1x8x128xbf16>
    tpu.vector_store %arg11[%690, %c0_164, %c0_165], %693 {strides = array<i32>} : memref<8x8x128xbf16, #tpu.memory_space<vmem>>, vector<1x8x128xbf16>,
    %694 = tpu.concatenate %672, %675 in 1 : vector<8x128xf32>, vector<8x128xf32> -> vector<8x256xf32>
    %c6_i32 = arith.constant 6 : i32
    %c7_i32_166 = arith.constant 7 : i32
    %695 = arith.subi %c7_i32_166, %c6_i32 : i32
    %696 = arith.truncf %694 : vector<8x256xf32> to vector<8x256xbf16>
    %cst_167 = arith.constant dense<0.000000e+00> : vector<8x768xf32>
    %697 = tpu.matmul %696, %33, %cst_167 {dimension_numbers = #tpu.dot_dimension_numbers<[1], [0], [0], [1], [0, 0, 1, 1], [], []>} : vector<8x256xbf16>, vector<256x768xbf16>, vector<8x768xf32> -> vector<8x768xf32>
    %698 = arith.index_cast %c6_i32 : i32 to index
    %c0_168 = arith.constant 0 : index
    %c0_169 = arith.constant 0 : index
    %699 = vector.load %arg9[%698, %c0_168, %c0_169] : memref<8x8x384xbf16, #tpu.memory_space<vmem>>, vector<1x8x384xbf16>
    %700 = vector.shape_cast %699 : vector<1x8x384xbf16> to vector<8x384xbf16>
    %701 = vector.extract_strided_slice %697 {offsets = [0, 0], sizes = [8, 384], strides = [1, 1]} : vector<8x768xf32> to vector<8x384xf32>
    %702 = vector.extract_strided_slice %694 {offsets = [0, 0], sizes = [8, 128], strides = [1, 1]} : vector<8x256xf32> to vector<8x128xf32>
    %703 = arith.truncf %701 : vector<8x384xf32> to vector<8x384xbf16>
    %704 = vector.extract_strided_slice %700 {offsets = [0, 0], sizes = [8, 128], strides = [1, 1]} : vector<8x384xbf16> to vector<8x128xbf16>
    %705 = vector.extract_strided_slice %703 {offsets = [0, 0], sizes = [8, 128], strides = [1, 1]} : vector<8x384xbf16> to vector<8x128xbf16>
    %706 = arith.addf %704, %705 : vector<8x128xbf16>
    %707 = arith.negf %706 : vector<8x128xbf16>
    %708 = math.exp %707 : vector<8x128xbf16>
    %cst_170 = arith.constant 1.000000e+00 : bf16
    %709 = vector.broadcast %cst_170 : bf16 to vector<8x128xbf16>
    %710 = arith.addf %709, %708 : vector<8x128xbf16>
    %711 = arith.divf %709, %710 : vector<8x128xbf16>
    %712 = vector.extract_strided_slice %700 {offsets = [0, 128], sizes = [8, 128], strides = [1, 1]} : vector<8x384xbf16> to vector<8x128xbf16>
    %713 = vector.extract_strided_slice %703 {offsets = [0, 128], sizes = [8, 128], strides = [1, 1]} : vector<8x384xbf16> to vector<8x128xbf16>
    %714 = arith.addf %712, %713 : vector<8x128xbf16>
    %715 = arith.negf %714 : vector<8x128xbf16>
    %716 = math.exp %715 : vector<8x128xbf16>
    %cst_171 = arith.constant 1.000000e+00 : bf16
    %717 = vector.broadcast %cst_171 : bf16 to vector<8x128xbf16>
    %718 = arith.addf %717, %716 : vector<8x128xbf16>
    %719 = arith.divf %717, %718 : vector<8x128xbf16>
    %720 = vector.extract_strided_slice %700 {offsets = [0, 256], sizes = [8, 128], strides = [1, 1]} : vector<8x384xbf16> to vector<8x128xbf16>
    %721 = vector.extract_strided_slice %703 {offsets = [0, 256], sizes = [8, 128], strides = [1, 1]} : vector<8x384xbf16> to vector<8x128xbf16>
    %722 = arith.addf %721, %7 : vector<8x128xbf16>
    %723 = arith.mulf %711, %722 : vector<8x128xbf16>
    %724 = arith.addf %720, %723 : vector<8x128xbf16>
    %725 = math.tanh %724 : vector<8x128xbf16>
    %726 = arith.extf %719 : vector<8x128xbf16> to vector<8x128xf32>
    %cst_172 = arith.constant 1.000000e+00 : f32
    %727 = vector.broadcast %cst_172 : f32 to vector<8x128xf32>
    %728 = arith.subf %727, %726 : vector<8x128xf32>
    %729 = arith.extf %725 : vector<8x128xbf16> to vector<8x128xf32>
    %730 = arith.mulf %728, %729 : vector<8x128xf32>
    %731 = arith.mulf %726, %702 : vector<8x128xf32>
    %732 = arith.addf %730, %731 : vector<8x128xf32>
    %733 = arith.index_cast %695 : i32 to index
    %c0_173 = arith.constant 0 : index
    %c0_174 = arith.constant 0 : index
    %734 = vector.load %arg10[%733, %c0_173, %c0_174] : memref<8x8x384xbf16, #tpu.memory_space<vmem>>, vector<1x8x384xbf16>
    %735 = vector.shape_cast %734 : vector<1x8x384xbf16> to vector<8x384xbf16>
    %736 = vector.extract_strided_slice %697 {offsets = [0, 384], sizes = [8, 384], strides = [1, 1]} : vector<8x768xf32> to vector<8x384xf32>
    %737 = vector.extract_strided_slice %694 {offsets = [0, 128], sizes = [8, 128], strides = [1, 1]} : vector<8x256xf32> to vector<8x128xf32>
    %738 = arith.truncf %736 : vector<8x384xf32> to vector<8x384xbf16>
    %739 = vector.extract_strided_slice %735 {offsets = [0, 0], sizes = [8, 128], strides = [1, 1]} : vector<8x384xbf16> to vector<8x128xbf16>
    %740 = vector.extract_strided_slice %738 {offsets = [0, 0], sizes = [8, 128], strides = [1, 1]} : vector<8x384xbf16> to vector<8x128xbf16>
    %741 = arith.addf %739, %740 : vector<8x128xbf16>
    %742 = arith.negf %741 : vector<8x128xbf16>
    %743 = math.exp %742 : vector<8x128xbf16>
    %cst_175 = arith.constant 1.000000e+00 : bf16
    %744 = vector.broadcast %cst_175 : bf16 to vector<8x128xbf16>
    %745 = arith.addf %744, %743 : vector<8x128xbf16>
    %746 = arith.divf %744, %745 : vector<8x128xbf16>
    %747 = vector.extract_strided_slice %735 {offsets = [0, 128], sizes = [8, 128], strides = [1, 1]} : vector<8x384xbf16> to vector<8x128xbf16>
    %748 = vector.extract_strided_slice %738 {offsets = [0, 128], sizes = [8, 128], strides = [1, 1]} : vector<8x384xbf16> to vector<8x128xbf16>
    %749 = arith.addf %747, %748 : vector<8x128xbf16>
    %750 = arith.negf %749 : vector<8x128xbf16>
    %751 = math.exp %750 : vector<8x128xbf16>
    %cst_176 = arith.constant 1.000000e+00 : bf16
    %752 = vector.broadcast %cst_176 : bf16 to vector<8x128xbf16>
    %753 = arith.addf %752, %751 : vector<8x128xbf16>
    %754 = arith.divf %752, %753 : vector<8x128xbf16>
    %755 = vector.extract_strided_slice %735 {offsets = [0, 256], sizes = [8, 128], strides = [1, 1]} : vector<8x384xbf16> to vector<8x128xbf16>
    %756 = vector.extract_strided_slice %738 {offsets = [0, 256], sizes = [8, 128], strides = [1, 1]} : vector<8x384xbf16> to vector<8x128xbf16>
    %757 = arith.addf %756, %11 : vector<8x128xbf16>
    %758 = arith.mulf %746, %757 : vector<8x128xbf16>
    %759 = arith.addf %755, %758 : vector<8x128xbf16>
    %760 = math.tanh %759 : vector<8x128xbf16>
    %761 = arith.extf %754 : vector<8x128xbf16> to vector<8x128xf32>
    %cst_177 = arith.constant 1.000000e+00 : f32
    %762 = vector.broadcast %cst_177 : f32 to vector<8x128xf32>
    %763 = arith.subf %762, %761 : vector<8x128xf32>
    %764 = arith.extf %760 : vector<8x128xbf16> to vector<8x128xf32>
    %765 = arith.mulf %763, %764 : vector<8x128xf32>
    %766 = arith.mulf %761, %737 : vector<8x128xf32>
    %767 = arith.addf %765, %766 : vector<8x128xf32>
    %768 = vector.extract_strided_slice %694 {offsets = [0, 0], sizes = [8, 128], strides = [1, 1]} : vector<8x256xf32> to vector<8x128xf32>
    %769 = vector.extract_strided_slice %694 {offsets = [0, 128], sizes = [8, 128], strides = [1, 1]} : vector<8x256xf32> to vector<8x128xf32>
    %770 = arith.index_cast %c6_i32 : i32 to index
    %c0_178 = arith.constant 0 : index
    %c0_179 = arith.constant 0 : index
    %771 = vector.load %arg2[%770, %c0_178, %c0_179] : memref<8x8x1xf32, #tpu.memory_space<vmem>>, vector<1x8x1xf32>
    %772 = vector.shape_cast %771 : vector<1x8x1xf32> to vector<8x1xf32>
    %cst_180 = arith.constant 0.000000e+00 : f32
    %773 = vector.broadcast %cst_180 : f32 to vector<8x1xf32>
    %774 = arith.cmpf ogt, %772, %773 : vector<8x1xf32>
    %775 = arith.index_cast %695 : i32 to index
    %c0_181 = arith.constant 0 : index
    %c0_182 = arith.constant 0 : index
    %776 = vector.load %arg2[%775, %c0_181, %c0_182] : memref<8x8x1xf32, #tpu.memory_space<vmem>>, vector<1x8x1xf32>
    %777 = vector.shape_cast %776 : vector<1x8x1xf32> to vector<8x1xf32>
    %cst_183 = arith.constant 0.000000e+00 : f32
    %778 = vector.broadcast %cst_183 : f32 to vector<8x1xf32>
    %779 = arith.cmpf ogt, %777, %778 : vector<8x1xf32>
    %780 = vector.shape_cast %774 : vector<8x1xi1> to vector<8x1xi1>
    %781 = vector.broadcast %780 : vector<8x1xi1> to vector<8x128xi1>
    %782 = arith.select %781, %732, %768 : vector<8x128xi1>, vector<8x128xf32>
    %783 = vector.shape_cast %779 : vector<8x1xi1> to vector<8x1xi1>
    %784 = vector.broadcast %783 : vector<8x1xi1> to vector<8x128xi1>
    %785 = arith.select %784, %767, %769 : vector<8x128xi1>, vector<8x128xf32>
    %cst_184 = arith.constant 0.000000e+00 : f32
    %786 = vector.shape_cast %774 : vector<8x1xi1> to vector<8x1xi1>
    %787 = vector.broadcast %786 : vector<8x1xi1> to vector<8x128xi1>
    %788 = vector.broadcast %cst_184 : f32 to vector<8x128xf32>
    %789 = arith.select %787, %782, %788 : vector<8x128xi1>, vector<8x128xf32>
    %790 = arith.truncf %789 : vector<8x128xf32> to vector<8x128xbf16>
    %791 = arith.index_cast %c6_i32 : i32 to index
    %c0_185 = arith.constant 0 : index
    %c0_186 = arith.constant 0 : index
    %792 = vector.load %arg8[%791, %c0_185, %c0_186] : memref<8x8x128xbf16, #tpu.memory_space<vmem>>, vector<1x8x128xbf16>
    %793 = vector.shape_cast %792 : vector<1x8x128xbf16> to vector<8x128xbf16>
    %794 = vector.shape_cast %790 : vector<8x128xbf16> to vector<1x8x128xbf16>
    tpu.vector_store %arg8[%791, %c0_185, %c0_186], %794 {strides = array<i32>} : memref<8x8x128xbf16, #tpu.memory_space<vmem>>, vector<1x8x128xbf16>,
    %cst_187 = arith.constant 0.000000e+00 : f32
    %795 = vector.shape_cast %779 : vector<8x1xi1> to vector<8x1xi1>
    %796 = vector.broadcast %795 : vector<8x1xi1> to vector<8x128xi1>
    %797 = vector.broadcast %cst_187 : f32 to vector<8x128xf32>
    %798 = arith.select %796, %785, %797 : vector<8x128xi1>, vector<8x128xf32>
    %799 = arith.truncf %798 : vector<8x128xf32> to vector<8x128xbf16>
    %800 = arith.index_cast %695 : i32 to index
    %c0_188 = arith.constant 0 : index
    %c0_189 = arith.constant 0 : index
    %801 = vector.load %arg11[%800, %c0_188, %c0_189] : memref<8x8x128xbf16, #tpu.memory_space<vmem>>, vector<1x8x128xbf16>
    %802 = vector.shape_cast %801 : vector<1x8x128xbf16> to vector<8x128xbf16>
    %803 = vector.shape_cast %799 : vector<8x128xbf16> to vector<1x8x128xbf16>
    tpu.vector_store %arg11[%800, %c0_188, %c0_189], %803 {strides = array<i32>} : memref<8x8x128xbf16, #tpu.memory_space<vmem>>, vector<1x8x128xbf16>,
    %804 = tpu.concatenate %782, %785 in 1 : vector<8x128xf32>, vector<8x128xf32> -> vector<8x256xf32>
    %c7_i32_190 = arith.constant 7 : i32
    %c7_i32_191 = arith.constant 7 : i32
    %805 = arith.subi %c7_i32_191, %c7_i32_190 : i32
    %806 = arith.truncf %804 : vector<8x256xf32> to vector<8x256xbf16>
    %cst_192 = arith.constant dense<0.000000e+00> : vector<8x768xf32>
    %807 = tpu.matmul %806, %33, %cst_192 {dimension_numbers = #tpu.dot_dimension_numbers<[1], [0], [0], [1], [0, 0, 1, 1], [], []>} : vector<8x256xbf16>, vector<256x768xbf16>, vector<8x768xf32> -> vector<8x768xf32>
    %808 = arith.index_cast %c7_i32_190 : i32 to index
    %c0_193 = arith.constant 0 : index
    %c0_194 = arith.constant 0 : index
    %809 = vector.load %arg9[%808, %c0_193, %c0_194] : memref<8x8x384xbf16, #tpu.memory_space<vmem>>, vector<1x8x384xbf16>
    %810 = vector.shape_cast %809 : vector<1x8x384xbf16> to vector<8x384xbf16>
    %811 = vector.extract_strided_slice %807 {offsets = [0, 0], sizes = [8, 384], strides = [1, 1]} : vector<8x768xf32> to vector<8x384xf32>
    %812 = vector.extract_strided_slice %804 {offsets = [0, 0], sizes = [8, 128], strides = [1, 1]} : vector<8x256xf32> to vector<8x128xf32>
    %813 = arith.truncf %811 : vector<8x384xf32> to vector<8x384xbf16>
    %814 = vector.extract_strided_slice %810 {offsets = [0, 0], sizes = [8, 128], strides = [1, 1]} : vector<8x384xbf16> to vector<8x128xbf16>
    %815 = vector.extract_strided_slice %813 {offsets = [0, 0], sizes = [8, 128], strides = [1, 1]} : vector<8x384xbf16> to vector<8x128xbf16>
    %816 = arith.addf %814, %815 : vector<8x128xbf16>
    %817 = arith.negf %816 : vector<8x128xbf16>
    %818 = math.exp %817 : vector<8x128xbf16>
    %cst_195 = arith.constant 1.000000e+00 : bf16
    %819 = vector.broadcast %cst_195 : bf16 to vector<8x128xbf16>
    %820 = arith.addf %819, %818 : vector<8x128xbf16>
    %821 = arith.divf %819, %820 : vector<8x128xbf16>
    %822 = vector.extract_strided_slice %810 {offsets = [0, 128], sizes = [8, 128], strides = [1, 1]} : vector<8x384xbf16> to vector<8x128xbf16>
    %823 = vector.extract_strided_slice %813 {offsets = [0, 128], sizes = [8, 128], strides = [1, 1]} : vector<8x384xbf16> to vector<8x128xbf16>
    %824 = arith.addf %822, %823 : vector<8x128xbf16>
    %825 = arith.negf %824 : vector<8x128xbf16>
    %826 = math.exp %825 : vector<8x128xbf16>
    %cst_196 = arith.constant 1.000000e+00 : bf16
    %827 = vector.broadcast %cst_196 : bf16 to vector<8x128xbf16>
    %828 = arith.addf %827, %826 : vector<8x128xbf16>
    %829 = arith.divf %827, %828 : vector<8x128xbf16>
    %830 = vector.extract_strided_slice %810 {offsets = [0, 256], sizes = [8, 128], strides = [1, 1]} : vector<8x384xbf16> to vector<8x128xbf16>
    %831 = vector.extract_strided_slice %813 {offsets = [0, 256], sizes = [8, 128], strides = [1, 1]} : vector<8x384xbf16> to vector<8x128xbf16>
    %832 = arith.addf %831, %7 : vector<8x128xbf16>
    %833 = arith.mulf %821, %832 : vector<8x128xbf16>
    %834 = arith.addf %830, %833 : vector<8x128xbf16>
    %835 = math.tanh %834 : vector<8x128xbf16>
    %836 = arith.extf %829 : vector<8x128xbf16> to vector<8x128xf32>
    %cst_197 = arith.constant 1.000000e+00 : f32
    %837 = vector.broadcast %cst_197 : f32 to vector<8x128xf32>
    %838 = arith.subf %837, %836 : vector<8x128xf32>
    %839 = arith.extf %835 : vector<8x128xbf16> to vector<8x128xf32>
    %840 = arith.mulf %838, %839 : vector<8x128xf32>
    %841 = arith.mulf %836, %812 : vector<8x128xf32>
    %842 = arith.addf %840, %841 : vector<8x128xf32>
    %843 = arith.index_cast %805 : i32 to index
    %c0_198 = arith.constant 0 : index
    %c0_199 = arith.constant 0 : index
    %844 = vector.load %arg10[%843, %c0_198, %c0_199] : memref<8x8x384xbf16, #tpu.memory_space<vmem>>, vector<1x8x384xbf16>
    %845 = vector.shape_cast %844 : vector<1x8x384xbf16> to vector<8x384xbf16>
    %846 = vector.extract_strided_slice %807 {offsets = [0, 384], sizes = [8, 384], strides = [1, 1]} : vector<8x768xf32> to vector<8x384xf32>
    %847 = vector.extract_strided_slice %804 {offsets = [0, 128], sizes = [8, 128], strides = [1, 1]} : vector<8x256xf32> to vector<8x128xf32>
    %848 = arith.truncf %846 : vector<8x384xf32> to vector<8x384xbf16>
    %849 = vector.extract_strided_slice %845 {offsets = [0, 0], sizes = [8, 128], strides = [1, 1]} : vector<8x384xbf16> to vector<8x128xbf16>
    %850 = vector.extract_strided_slice %848 {offsets = [0, 0], sizes = [8, 128], strides = [1, 1]} : vector<8x384xbf16> to vector<8x128xbf16>
    %851 = arith.addf %849, %850 : vector<8x128xbf16>
    %852 = arith.negf %851 : vector<8x128xbf16>
    %853 = math.exp %852 : vector<8x128xbf16>
    %cst_200 = arith.constant 1.000000e+00 : bf16
    %854 = vector.broadcast %cst_200 : bf16 to vector<8x128xbf16>
    %855 = arith.addf %854, %853 : vector<8x128xbf16>
    %856 = arith.divf %854, %855 : vector<8x128xbf16>
    %857 = vector.extract_strided_slice %845 {offsets = [0, 128], sizes = [8, 128], strides = [1, 1]} : vector<8x384xbf16> to vector<8x128xbf16>
    %858 = vector.extract_strided_slice %848 {offsets = [0, 128], sizes = [8, 128], strides = [1, 1]} : vector<8x384xbf16> to vector<8x128xbf16>
    %859 = arith.addf %857, %858 : vector<8x128xbf16>
    %860 = arith.negf %859 : vector<8x128xbf16>
    %861 = math.exp %860 : vector<8x128xbf16>
    %cst_201 = arith.constant 1.000000e+00 : bf16
    %862 = vector.broadcast %cst_201 : bf16 to vector<8x128xbf16>
    %863 = arith.addf %862, %861 : vector<8x128xbf16>
    %864 = arith.divf %862, %863 : vector<8x128xbf16>
    %865 = vector.extract_strided_slice %845 {offsets = [0, 256], sizes = [8, 128], strides = [1, 1]} : vector<8x384xbf16> to vector<8x128xbf16>
    %866 = vector.extract_strided_slice %848 {offsets = [0, 256], sizes = [8, 128], strides = [1, 1]} : vector<8x384xbf16> to vector<8x128xbf16>
    %867 = arith.addf %866, %11 : vector<8x128xbf16>
    %868 = arith.mulf %856, %867 : vector<8x128xbf16>
    %869 = arith.addf %865, %868 : vector<8x128xbf16>
    %870 = math.tanh %869 : vector<8x128xbf16>
    %871 = arith.extf %864 : vector<8x128xbf16> to vector<8x128xf32>
    %cst_202 = arith.constant 1.000000e+00 : f32
    %872 = vector.broadcast %cst_202 : f32 to vector<8x128xf32>
    %873 = arith.subf %872, %871 : vector<8x128xf32>
    %874 = arith.extf %870 : vector<8x128xbf16> to vector<8x128xf32>
    %875 = arith.mulf %873, %874 : vector<8x128xf32>
    %876 = arith.mulf %871, %847 : vector<8x128xf32>
    %877 = arith.addf %875, %876 : vector<8x128xf32>
    %878 = vector.extract_strided_slice %804 {offsets = [0, 0], sizes = [8, 128], strides = [1, 1]} : vector<8x256xf32> to vector<8x128xf32>
    %879 = vector.extract_strided_slice %804 {offsets = [0, 128], sizes = [8, 128], strides = [1, 1]} : vector<8x256xf32> to vector<8x128xf32>
    %880 = arith.index_cast %c7_i32_190 : i32 to index
    %c0_203 = arith.constant 0 : index
    %c0_204 = arith.constant 0 : index
    %881 = vector.load %arg2[%880, %c0_203, %c0_204] : memref<8x8x1xf32, #tpu.memory_space<vmem>>, vector<1x8x1xf32>
    %882 = vector.shape_cast %881 : vector<1x8x1xf32> to vector<8x1xf32>
    %cst_205 = arith.constant 0.000000e+00 : f32
    %883 = vector.broadcast %cst_205 : f32 to vector<8x1xf32>
    %884 = arith.cmpf ogt, %882, %883 : vector<8x1xf32>
    %885 = arith.index_cast %805 : i32 to index
    %c0_206 = arith.constant 0 : index
    %c0_207 = arith.constant 0 : index
    %886 = vector.load %arg2[%885, %c0_206, %c0_207] : memref<8x8x1xf32, #tpu.memory_space<vmem>>, vector<1x8x1xf32>
    %887 = vector.shape_cast %886 : vector<1x8x1xf32> to vector<8x1xf32>
    %cst_208 = arith.constant 0.000000e+00 : f32
    %888 = vector.broadcast %cst_208 : f32 to vector<8x1xf32>
    %889 = arith.cmpf ogt, %887, %888 : vector<8x1xf32>
    %890 = vector.shape_cast %884 : vector<8x1xi1> to vector<8x1xi1>
    %891 = vector.broadcast %890 : vector<8x1xi1> to vector<8x128xi1>
    %892 = arith.select %891, %842, %878 : vector<8x128xi1>, vector<8x128xf32>
    %893 = vector.shape_cast %889 : vector<8x1xi1> to vector<8x1xi1>
    %894 = vector.broadcast %893 : vector<8x1xi1> to vector<8x128xi1>
    %895 = arith.select %894, %877, %879 : vector<8x128xi1>, vector<8x128xf32>
    %cst_209 = arith.constant 0.000000e+00 : f32
    %896 = vector.shape_cast %884 : vector<8x1xi1> to vector<8x1xi1>
    %897 = vector.broadcast %896 : vector<8x1xi1> to vector<8x128xi1>
    %898 = vector.broadcast %cst_209 : f32 to vector<8x128xf32>
    %899 = arith.select %897, %892, %898 : vector<8x128xi1>, vector<8x128xf32>
    %900 = arith.truncf %899 : vector<8x128xf32> to vector<8x128xbf16>
    %901 = arith.index_cast %c7_i32_190 : i32 to index
    %c0_210 = arith.constant 0 : index
    %c0_211 = arith.constant 0 : index
    %902 = vector.load %arg8[%901, %c0_210, %c0_211] : memref<8x8x128xbf16, #tpu.memory_space<vmem>>, vector<1x8x128xbf16>
    %903 = vector.shape_cast %902 : vector<1x8x128xbf16> to vector<8x128xbf16>
    %904 = vector.shape_cast %900 : vector<8x128xbf16> to vector<1x8x128xbf16>
    tpu.vector_store %arg8[%901, %c0_210, %c0_211], %904 {strides = array<i32>} : memref<8x8x128xbf16, #tpu.memory_space<vmem>>, vector<1x8x128xbf16>,
    %cst_212 = arith.constant 0.000000e+00 : f32
    %905 = vector.shape_cast %889 : vector<8x1xi1> to vector<8x1xi1>
    %906 = vector.broadcast %905 : vector<8x1xi1> to vector<8x128xi1>
    %907 = vector.broadcast %cst_212 : f32 to vector<8x128xf32>
    %908 = arith.select %906, %895, %907 : vector<8x128xi1>, vector<8x128xf32>
    %909 = arith.truncf %908 : vector<8x128xf32> to vector<8x128xbf16>
    %910 = arith.index_cast %805 : i32 to index
    %c0_213 = arith.constant 0 : index
    %c0_214 = arith.constant 0 : index
    %911 = vector.load %arg11[%910, %c0_213, %c0_214] : memref<8x8x128xbf16, #tpu.memory_space<vmem>>, vector<1x8x128xbf16>
    %912 = vector.shape_cast %911 : vector<1x8x128xbf16> to vector<8x128xbf16>
    %913 = vector.shape_cast %909 : vector<8x128xbf16> to vector<1x8x128xbf16>
    tpu.vector_store %arg11[%910, %c0_213, %c0_214], %913 {strides = array<i32>} : memref<8x8x128xbf16, #tpu.memory_space<vmem>>, vector<1x8x128xbf16>,
    %914 = tpu.concatenate %892, %895 in 1 : vector<8x128xf32>, vector<8x128xf32> -> vector<8x256xf32>
    %c8_i32_215 = arith.constant 8 : i32
    %c0_216 = arith.constant 0 : index
    %c0_217 = arith.constant 0 : index
    %c0_218 = arith.constant 0 : index
    %915 = vector.load %arg8[%c0_216, %c0_217, %c0_218] : memref<8x8x128xbf16, #tpu.memory_space<vmem>>, vector<8x8x128xbf16>
    %c0_219 = arith.constant 0 : index
    %c0_220 = arith.constant 0 : index
    %c0_221 = arith.constant 0 : index
    %916 = vector.load %arg11[%c0_219, %c0_220, %c0_221] : memref<8x8x128xbf16, #tpu.memory_space<vmem>>, vector<8x8x128xbf16>
    %917 = arith.addf %915, %916 : vector<8x8x128xbf16>
    %cst_222 = arith.constant 5.000000e-01 : bf16
    %918 = vector.broadcast %cst_222 : bf16 to vector<8x8x128xbf16>
    %919 = arith.mulf %918, %917 : vector<8x8x128xbf16>
    %c0_223 = arith.constant 0 : index
    %c0_224 = arith.constant 0 : index
    %c0_225 = arith.constant 0 : index
    %920 = vector.load %arg8[%c0_223, %c0_224, %c0_225] : memref<8x8x128xbf16, #tpu.memory_space<vmem>>, vector<8x8x128xbf16>
    tpu.vector_store %arg8[%c0_223, %c0_224, %c0_225], %919 {strides = array<i32>} : memref<8x8x128xbf16, #tpu.memory_space<vmem>>, vector<8x8x128xbf16>,
    return
  }
  func.func @transform_0(%arg0: i32) -> (i32, i32, i32) {
    %c0_i32 = arith.constant 0 : i32
    %c0_i32_0 = arith.constant 0 : i32
    %c0_i32_1 = arith.constant 0 : i32
    return %c0_i32, %arg0, %c0_i32_0 : i32, i32, i32
  }
  func.func @transform_1(%arg0: i32) -> (i32, i32, i32) {
    %c0_i32 = arith.constant 0 : i32
    %c0_i32_0 = arith.constant 0 : i32
    %c0_i32_1 = arith.constant 0 : i32
    return %c0_i32, %arg0, %c0_i32_0 : i32, i32, i32
  }
  func.func @transform_2(%arg0: i32) -> (i32, i32) {
    %c0_i32 = arith.constant 0 : i32
    %c0_i32_0 = arith.constant 0 : i32
    %c0_i32_1 = arith.constant 0 : i32
    return %c0_i32, %c0_i32_0 : i32, i32
  }
  func.func @transform_3(%arg0: i32) -> (i32, i32) {
    %c0_i32 = arith.constant 0 : i32
    %c0_i32_0 = arith.constant 0 : i32
    %c0_i32_1 = arith.constant 0 : i32
    return %c0_i32, %c0_i32_0 : i32, i32
  }
  func.func @transform_4(%arg0: i32) -> (i32, i32) {
    %c0_i32 = arith.constant 0 : i32
    %c0_i32_0 = arith.constant 0 : i32
    %c0_i32_1 = arith.constant 0 : i32
    return %c0_i32, %c0_i32_0 : i32, i32
  }
  func.func @transform_5(%arg0: i32) -> (i32, i32) {
    %c0_i32 = arith.constant 0 : i32
    %c0_i32_0 = arith.constant 0 : i32
    %c0_i32_1 = arith.constant 0 : i32
    return %c0_i32, %c0_i32_0 : i32, i32
  }
  func.func @transform_6(%arg0: i32) -> (i32, i32) {
    %c0_i32 = arith.constant 0 : i32
    %c0_i32_0 = arith.constant 0 : i32
    %c0_i32_1 = arith.constant 0 : i32
    return %c0_i32, %c0_i32_0 : i32, i32
  }
  func.func @transform_7(%arg0: i32) -> (i32, i32, i32) {
    %c0_i32 = arith.constant 0 : i32
    %c0_i32_0 = arith.constant 0 : i32
    %c0_i32_1 = arith.constant 0 : i32
    return %c0_i32, %arg0, %c0_i32_0 : i32, i32, i32
  }
}

</mosaic_0001>

<llo_original>
// kernel: tpu_custom_call.1
$region0: #{tpu_custom_call.1}
  #allocation0 [shape = 'u32[]', space=smem, size = 0x4, offset = 0x4, fixed_abs, tag = 'smem constant byte address 0x4 - core index']
  #allocation1 [shape = 'u32[144,128]{1,0:T(1,128)}', space=vmem, size = 0x12000, scoped, tag = 'internal scratch']
  #allocation2 [shape = 'bf16[8,8,384]{2,1,0:T(8,128)(2,1)}', space=vmem, size = 0xc000, scoped, tag = 'scratch operand']
  #allocation3 [shape = 'bf16[8,8,384]{2,1,0:T(8,128)(2,1)}', space=vmem, size = 0xc000, scoped, tag = 'scratch operand']
  #allocation4 [shape = 'bf16[8,8,128]{2,1,0:T(8,128)(2,1)}', space=vmem, size = 0x4000, scoped, tag = 'scratch operand']
  %s0 = inlined_call_operand.vmem [shape: bf16[8,8,16], index: 0, kind: input, shape index: {}]
  %s1 = inlined_call_operand.vmem [shape: f32[8,8,1], index: 1, kind: input, shape index: {}]
  %s2 = inlined_call_operand.vmem [shape: bf16[16,384], index: 2, kind: input, shape index: {}]
  %s3 = inlined_call_operand.hbm [shape: bf16[16,384], index: 3, kind: input, shape index: {}]
  %s4 = inlined_call_operand.vmem [shape: f32[1,768], index: 4, kind: input, shape index: {}]
  %s5 = inlined_call_operand.hbm [shape: bf16[256,768], index: 5, kind: input, shape index: {}]
  %s6 = inlined_call_operand.vmem [shape: f32[1,256], index: 6, kind: input, shape index: {}]
  %s7 = inlined_call_operand.hbm [shape: bf16[8,8,128], index: 7, kind: output, shape index: {}]
  %s8 = sld [smem:[#allocation0]]
  $region46: #{tpu_custom_call.1} parent=0
    _
  %s10 = ssub.s32 1, %s8
  %s11 = scalar_select 0, %s10, %s8
  $region1: #{tpu_custom_call.1} parent=0
    #allocation5 [shape = 'u8[12288]{0}', space=vmem, size = 0x3000, scoped, tag = 'input window, operand 3, single buffered']
    #allocation6 [shape = 's32[1]{0}', space=sflag, size = 0x4, scoped, tag = 'scoped memory for tpu_custom_call.1']
    #allocation7 [shape = 's32[1]{0}', space=sflag, size = 0x4, scoped, tag = 'scoped memory for tpu_custom_call.1']
    #allocation8 [shape = 'u8[393216]{0}', space=vmem, size = 0x60000, scoped, tag = 'input window, operand 5, single buffered']
    #allocation9 [shape = 's32[1]{0}', space=sflag, size = 0x4, scoped, tag = 'scoped memory for tpu_custom_call.1']
    #allocation10 [shape = 'u8[16384]{0}', space=vmem, size = 0x4000, scoped, tag = 'output window, operand 0, single buffered']
    %12 = vsyncpa [#allocation6], 0
    %13 = vsyncpa [#allocation9], 0
    %14 = vsyncpa [#allocation7], 0
    // Predicated region
    $region2: #{tpu_custom_call.1} parent=1 // pred_check
      _
    $region3: #{tpu_custom_call.1} parent=1 // pred_check_branch
      %16 = sbr.rel (0) target = $region5
    $region4: #{tpu_custom_call.1} parent=1 // pred_region
      _
    $region5: #{tpu_custom_call.1} parent=1 // pred_fallthru
      _
    // Predicated region
    $region6: #{tpu_custom_call.1} parent=1 // pred_check
      _
    $region7: #{tpu_custom_call.1} parent=1 // pred_check_branch
      %18 = sbr.rel (0) target = $region9
    $region8: #{tpu_custom_call.1} parent=1 // pred_region
      _
    $region9: #{tpu_custom_call.1} parent=1 // pred_fallthru
      _
    // Predicated region
    $region10: #{tpu_custom_call.1} parent=1 // pred_check
      _
    $region11: #{tpu_custom_call.1} parent=1 // pred_check_branch
      %20 = sbr.rel (0) target = $region13
    $region12: #{tpu_custom_call.1} parent=1 // pred_region
      _
    $region13: #{tpu_custom_call.1} parent=1 // pred_fallthru
      _
    // Predicated region
    $region14: #{tpu_custom_call.1} parent=1 // pred_check
      _
    $region15: #{tpu_custom_call.1} parent=1 // pred_check_branch
      %22 = sbr.rel (0) target = $region17
    $region16: #{tpu_custom_call.1} parent=1 // pred_region
      %s24 = ssub.s32 384, 384
      %25 = vsyncadd [#allocation6], %s24
      %s26 = sshll.u32 [#allocation5], 4
      %s27 = int_to_ptr.vmem [resolvable:$true] %s26
      %32 = dma.hbm_to_vmem [thread:$0]  %s3, 384, %s27, [#allocation6], 192, 192, 12
    $region17: #{tpu_custom_call.1} parent=1 // pred_fallthru
      _
    // Predicated region
    $region18: #{tpu_custom_call.1} parent=1 // pred_check
      _
    $region19: #{tpu_custom_call.1} parent=1 // pred_check_branch
      %34 = sbr.rel (0) target = $region21
    $region20: #{tpu_custom_call.1} parent=1 // pred_region
      _
    $region21: #{tpu_custom_call.1} parent=1 // pred_fallthru
      _
    // Predicated region
    $region22: #{tpu_custom_call.1} parent=1 // pred_check
      _
    $region23: #{tpu_custom_call.1} parent=1 // pred_check_branch
      %36 = sbr.rel (0) target = $region25
    $region24: #{tpu_custom_call.1} parent=1 // pred_region
      %s38 = ssub.s32 12288, 12288
      %39 = vsyncadd [#allocation9], %s38
      %s40 = sshll.u32 [#allocation8], 4
      %s41 = int_to_ptr.vmem [resolvable:$true] %s40
      %46 = dma.hbm_to_vmem [thread:$0]  %s5, 12288, %s41, [#allocation9], 384, 384, 24
    $region25: #{tpu_custom_call.1} parent=1 // pred_fallthru
      _
    // Predicated region
    $region26: #{tpu_custom_call.1} parent=1 // pred_check
      _
    $region27: #{tpu_custom_call.1} parent=1 // pred_check_branch
      %48 = sbr.rel (0) target = $region29
    $region28: #{tpu_custom_call.1} parent=1 // pred_region
      _
    $region29: #{tpu_custom_call.1} parent=1 // pred_fallthru
      _
    // Predicated region
    $region30: #{tpu_custom_call.1} parent=1 // pred_check
      _
    $region31: #{tpu_custom_call.1} parent=1 // pred_check_branch
      %50 = sbr.rel (0) target = $region33
    $region32: #{tpu_custom_call.1} parent=1 // pred_region
      %51 = dma.done [#allocation6], 384
    $region33: #{tpu_custom_call.1} parent=1 // pred_fallthru
      _
    // Predicated region
    $region34: #{tpu_custom_call.1} parent=1 // pred_check
      _
    $region35: #{tpu_custom_call.1} parent=1 // pred_check_branch
      %53 = sbr.rel (0) target = $region37
    $region36: #{tpu_custom_call.1} parent=1 // pred_region
      %54 = dma.done [#allocation9], 12288
    $region37: #{tpu_custom_call.1} parent=1 // pred_fallthru
      _
    %v58 = vld [vmem:[%s2] sm:$0xff]
    %v59 = vld [vmem:[%s2 + $0x8] sm:$0xf]
    %v60 = vld [vmem:[%s2 + $0xc] sm:$0xff]
    %v61 = vld [vmem:[%s2 + $0x14] sm:$0xf]
    %v62 = vld [vmem:[#allocation5] sm:$0xff]
    %v63 = vld [vmem:[#allocation5 + $0x8] sm:$0xf]
    %v64 = vld [vmem:[#allocation5 + $0xc] sm:$0xff]
    %v65 = vld [vmem:[#allocation5 + $0x14] sm:$0xf]
    %v66 = vld [vmem:[%s4] sm:$0x7]
    %v67 = vld [vmem:[%s4 + $0x3] sm:$0x7]
    %v68 = vld [vmem:[%s6] sm:$0x1]
    %v69 = vpack.c.bf16 %v68, %v68
    %v71 = vpack.i.b16 %v69, %v69
    %v73 = vlaneseq
    %v74 = vshrl.u32 %v73, 7
    %v75 = vsub.s32 0, %v74
    %v76 = vrot.slane %v71, %v75
    %v77 = vld [vmem:[%s6 + $0x1] sm:$0x1]
    %v78 = vpack.c.bf16 %v77, %v77
    %v80 = vpack.i.b16 %v78, %v78
    %v82 = vlaneseq
    %v83 = vshrl.u32 %v82, 7
    %v84 = vsub.s32 0, %v83
    %v85 = vrot.slane %v80, %v84
    %v86 = vld [vmem:[%s0] sm:$0xf]
    %v87 = vld [vmem:[%s0 + $0x4] sm:$0xf]
    %v88 = vld [vmem:[%s0 + $0x8] sm:$0xf]
    %v89 = vld [vmem:[%s0 + $0xc] sm:$0xf]
    %v90 = vld [vmem:[%s0 + $0x10] sm:$0xf]
    %v91 = vld [vmem:[%s0 + $0x14] sm:$0xf]
    %v92 = vld [vmem:[%s0 + $0x18] sm:$0xf]
    %v93 = vld [vmem:[%s0 + $0x1c] sm:$0xf]
    %v95 = vlaneseq
    %v96 = vshrl.u32 %v95, 7
    %v97 = vsub.s32 0, %v96
    %v98 = vrot.slane %v66, %v97
    %v99 = vlaneseq
    %v100 = vshrl.u32 %v99, 7
    %v101 = vsub.s32 1, %v100
    %v102 = vrot.slane %v66, %v101
    %v103 = vlaneseq
    %v104 = vshrl.u32 %v103, 7
    %v105 = vsub.s32 2, %v104
    %v106 = vrot.slane %v66, %v105
    %v118 = vunpack.c.l.b16 %v86
    %v119 = vunpack.c.l.b16 %v87
    %v120 = vunpack.c.l.b16 %v88
    %v121 = vunpack.c.l.b16 %v89
    %v122 = vunpack.c.l.b16 %v90
    %v123 = vunpack.c.l.b16 %v91
    %v124 = vunpack.c.l.b16 %v92
    %v125 = vunpack.c.l.b16 %v93
    %v126 = vpack.c.b16 %v119, %v118
    %v127 = vpack.c.b16 %v121, %v120
    %v128 = vpack.c.b16 %v123, %v122
    %v129 = vpack.c.b16 %v125, %v124
    %v134 = vunpack.c.l.b16 %v58
    %v135 = vunpack.c.h.b16 %v58
    %v136 = vunpack.c.l.b16 %v59
    %v137 = vunpack.c.l.b16 %v60
    %v138 = vunpack.c.h.b16 %v60
    %v139 = vunpack.c.l.b16 %v61
    %v140 = vpack.c.b16 %v137, %v134
    %v141 = vpack.c.b16 %v138, %v135
    %v142 = vpack.c.b16 %v139, %v136
    %vm146 = vcmask 130048
    %v148 = vsel %vm146, %v126, 0
    %v151 = vsel %vm146, %v127, 0
    %v154 = vsel %vm146, %v128, 0
    %v157 = vsel %vm146, %v129, 0
    %159 = vmatprep.subr.bf16.mxu0 0
    %160 = vmatpush1.bf16.msra.mxu0 0
    %161 = vmatprep.subr.bf16.mxu0 0
    %162 = vmatpush1.bf16.msra.mxu0 0
    %163 = vmatprep.subr.bf16.mxu0 0
    %164 = vmatpush1.bf16.msra.mxu0 0
    %165 = vmatprep.subr.bf16.mxu0 0
    %166 = vmatpush1.bf16.msra.mxu0 0
    %167 = vmatprep.subr.bf16.mxu0 0
    %168 = vmatpush1.bf16.msra.mxu0 0
    %169 = vmatprep.subr.bf16.mxu0 0
    %170 = vmatpush1.bf16.msra.mxu0 0
    %171 = vmatprep.subr.bf16.mxu0 0
    %172 = vmatpush1.bf16.msra.mxu0 0
    %173 = vmatprep.subr.bf16.mxu0 %v141
    %174 = vmatpush1.bf16.msra.mxu0 %v140
    %175 = vmatprep.subr.bf16.mxu0 0
    %176 = vmatpush2.bf16.msra.mxu0 0
    %177 = vmatprep.subr.bf16.mxu0 0
    %178 = vmatpush2.bf16.msra.mxu0 0
    %179 = vmatprep.subr.bf16.mxu0 0
    %180 = vmatpush2.bf16.msra.mxu0 0
    %181 = vmatprep.subr.bf16.mxu0 0
    %182 = vmatpush2.bf16.msra.mxu0 0
    %183 = vmatprep.subr.bf16.mxu0 0
    %184 = vmatpush2.bf16.msra.mxu0 0
    %185 = vmatprep.subr.bf16.mxu0 0
    %186 = vmatpush2.bf16.msra.mxu0 0
    %187 = vmatprep.subr.bf16.mxu0 0
    %188 = vmatpush2.bf16.msra.mxu0 0
    %189 = vmatprep.subr.bf16.mxu0 0
    %190 = vmatpush2.bf16.msra.mxu0 0
    %191 = vmatprep.mubr.bf16.mxu0 0
    %192 = vmatmul.mubr.bf16.gmra.mxu0 %v148
    %v193 = vpop.f32.mrf.mxu0
    %v194 = vadd.f32 %v98, %v193
    %v195 = vpop.f32.mrf.mxu0
    %v196 = vadd.f32 %v102, %v195
    %v197 = vpop.f32.mrf.mxu0
    %v198 = vadd.f32 %v98, %v197
    %v199 = vpop.f32.mrf.mxu0
    %v200 = vadd.f32 %v102, %v199
    %201 = vmatprep.mubr.bf16.mxu0 0
    %202 = vmatmul.mubr.bf16.gmra.mxu0 %v151
    %v203 = vpop.f32.mrf.mxu0
    %v204 = vadd.f32 %v98, %v203
    %v205 = vpop.f32.mrf.mxu0
    %v206 = vadd.f32 %v102, %v205
    %v207 = vpop.f32.mrf.mxu0
    %v208 = vadd.f32 %v98, %v207
    %v209 = vpop.f32.mrf.mxu0
    %v210 = vadd.f32 %v102, %v209
    %211 = vmatprep.mubr.bf16.mxu0 0
    %212 = vmatmul.mubr.bf16.gmra.mxu0 %v154
    %v213 = vpop.f32.mrf.mxu0
    %v214 = vadd.f32 %v98, %v213
    %v215 = vpop.f32.mrf.mxu0
    %v216 = vadd.f32 %v102, %v215
    %v217 = vpop.f32.mrf.mxu0
    %v218 = vadd.f32 %v98, %v217
    %v219 = vpop.f32.mrf.mxu0
    %v220 = vadd.f32 %v102, %v219
    %221 = vmatprep.mubr.bf16.mxu0 0
    %222 = vmatmul.mubr.bf16.gmra.mxu0 %v157
    %v223 = vpop.f32.mrf.mxu0
    %v224 = vadd.f32 %v98, %v223
    %v225 = vpop.f32.mrf.mxu0
    %v226 = vadd.f32 %v102, %v225
    %v227 = vpop.f32.mrf.mxu0
    %v228 = vadd.f32 %v98, %v227
    %v229 = vpop.f32.mrf.mxu0
    %v230 = vadd.f32 %v102, %v229
    %231 = vdwg.mxu0
    %232 = vmatprep.subr.bf16.mxu0 0
    %233 = vmatpush1.bf16.msra.mxu0 0
    %234 = vmatprep.subr.bf16.mxu0 0
    %235 = vmatpush1.bf16.msra.mxu0 0
    %236 = vmatprep.subr.bf16.mxu0 0
    %237 = vmatpush1.bf16.msra.mxu0 0
    %238 = vmatprep.subr.bf16.mxu0 0
    %239 = vmatpush1.bf16.msra.mxu0 0
    %240 = vmatprep.subr.bf16.mxu0 0
    %241 = vmatpush1.bf16.msra.mxu0 0
    %242 = vmatprep.subr.bf16.mxu0 0
    %243 = vmatpush1.bf16.msra.mxu0 0
    %244 = vmatprep.subr.bf16.mxu0 0
    %245 = vmatpush1.bf16.msra.mxu0 0
    %246 = vmatprep.subr.bf16.mxu0 0
    %247 = vmatpush1.bf16.msra.mxu0 %v142
    %248 = vmatprep.subr.bf16.mxu0 0
    %249 = vmatpush2.bf16.msra.mxu0 0
    %250 = vmatprep.subr.bf16.mxu0 0
    %251 = vmatpush2.bf16.msra.mxu0 0
    %252 = vmatprep.subr.bf16.mxu0 0
    %253 = vmatpush2.bf16.msra.mxu0 0
    %254 = vmatprep.subr.bf16.mxu0 0
    %255 = vmatpush2.bf16.msra.mxu0 0
    %256 = vmatprep.subr.bf16.mxu0 0
    %257 = vmatpush2.bf16.msra.mxu0 0
    %258 = vmatprep.subr.bf16.mxu0 0
    %259 = vmatpush2.bf16.msra.mxu0 0
    %260 = vmatprep.subr.bf16.mxu0 0
    %261 = vmatpush2.bf16.msra.mxu0 0
    %262 = vmatprep.subr.bf16.mxu0 0
    %263 = vmatpush2.bf16.msra.mxu0 0
    %264 = vmatprep.mubr.bf16.mxu0 0
    %265 = vmatmul.mubr.bf16.gmra.mxu0 %v148
    %v266 = vpop.f32.mrf.mxu0
    %v267 = vadd.f32 %v106, %v266
    %v268 = vpop.f32.mrf.mxu0
    %v269 = vpop.f32.mrf.mxu0
    %v270 = vadd.f32 %v106, %v269
    %v271 = vpop.f32.mrf.mxu0
    %272 = vmatprep.mubr.bf16.mxu0 0
    %273 = vmatmul.mubr.bf16.gmra.mxu0 %v151
    %v274 = vpop.f32.mrf.mxu0
    %v275 = vadd.f32 %v106, %v274
    %v276 = vpop.f32.mrf.mxu0
    %v277 = vpop.f32.mrf.mxu0
    %v278 = vadd.f32 %v106, %v277
    %v279 = vpop.f32.mrf.mxu0
    %280 = vmatprep.mubr.bf16.mxu0 0
    %281 = vmatmul.mubr.bf16.gmra.mxu0 %v154
    %v282 = vpop.f32.mrf.mxu0
    %v283 = vadd.f32 %v106, %v282
    %v284 = vpop.f32.mrf.mxu0
    %v285 = vpop.f32.mrf.mxu0
    %v286 = vadd.f32 %v106, %v285
    %v287 = vpop.f32.mrf.mxu0
    %288 = vmatprep.mubr.bf16.mxu0 0
    %289 = vmatmul.mubr.bf16.gmra.mxu0 %v157
    %v290 = vpop.f32.mrf.mxu0
    %v291 = vadd.f32 %v106, %v290
    %v292 = vpop.f32.mrf.mxu0
    %v293 = vpop.f32.mrf.mxu0
    %v294 = vadd.f32 %v106, %v293
    %v295 = vpop.f32.mrf.mxu0
    %296 = vdwg.mxu0
    %v298 = vlaneseq
    %v299 = vshrl.u32 %v298, 7
    %v300 = vsub.s32 0, %v299
    %v301 = vrot.slane %v67, %v300
    %v302 = vlaneseq
    %v303 = vshrl.u32 %v302, 7
    %v304 = vsub.s32 1, %v303
    %v305 = vrot.slane %v67, %v304
    %v306 = vlaneseq
    %v307 = vshrl.u32 %v306, 7
    %v308 = vsub.s32 2, %v307
    %v309 = vrot.slane %v67, %v308
    %v317 = vunpack.c.l.b16 %v62
    %v318 = vunpack.c.h.b16 %v62
    %v319 = vunpack.c.l.b16 %v63
    %v320 = vunpack.c.l.b16 %v64
    %v321 = vunpack.c.h.b16 %v64
    %v322 = vunpack.c.l.b16 %v65
    %v323 = vpack.c.b16 %v320, %v317
    %v324 = vpack.c.b16 %v321, %v318
    %v325 = vpack.c.b16 %v322, %v319
    %329 = vmatprep.subr.bf16.mxu0 0
    %330 = vmatpush1.bf16.msra.mxu0 0
    %331 = vmatprep.subr.bf16.mxu0 0
    %332 = vmatpush1.bf16.msra.mxu0 0
    %333 = vmatprep.subr.bf16.mxu0 0
    %334 = vmatpush1.bf16.msra.mxu0 0
    %335 = vmatprep.subr.bf16.mxu0 0
    %336 = vmatpush1.bf16.msra.mxu0 0
    %337 = vmatprep.subr.bf16.mxu0 0
    %338 = vmatpush1.bf16.msra.mxu0 0
    %339 = vmatprep.subr.bf16.mxu0 0
    %340 = vmatpush1.bf16.msra.mxu0 0
    %341 = vmatprep.subr.bf16.mxu0 0
    %342 = vmatpush1.bf16.msra.mxu0 0
    %343 = vmatprep.subr.bf16.mxu0 %v324
    %344 = vmatpush1.bf16.msra.mxu0 %v323
    %345 = vmatprep.subr.bf16.mxu0 0
    %346 = vmatpush2.bf16.msra.mxu0 0
    %347 = vmatprep.subr.bf16.mxu0 0
    %348 = vmatpush2.bf16.msra.mxu0 0
    %349 = vmatprep.subr.bf16.mxu0 0
    %350 = vmatpush2.bf16.msra.mxu0 0
    %351 = vmatprep.subr.bf16.mxu0 0
    %352 = vmatpush2.bf16.msra.mxu0 0
    %353 = vmatprep.subr.bf16.mxu0 0
    %354 = vmatpush2.bf16.msra.mxu0 0
    %355 = vmatprep.subr.bf16.mxu0 0
    %356 = vmatpush2.bf16.msra.mxu0 0
    %357 = vmatprep.subr.bf16.mxu0 0
    %358 = vmatpush2.bf16.msra.mxu0 0
    %359 = vmatprep.subr.bf16.mxu0 0
    %360 = vmatpush2.bf16.msra.mxu0 0
    %361 = vmatprep.mubr.bf16.mxu0 0
    %362 = vmatmul.mubr.bf16.gmra.mxu0 %v148
    %v363 = vpop.f32.mrf.mxu0
    %v364 = vadd.f32 %v301, %v363
    %v365 = vpop.f32.mrf.mxu0
    %v366 = vadd.f32 %v305, %v365
    %v367 = vpop.f32.mrf.mxu0
    %v368 = vadd.f32 %v301, %v367
    %v369 = vpop.f32.mrf.mxu0
    %v370 = vadd.f32 %v305, %v369
    %371 = vmatprep.mubr.bf16.mxu0 0
    %372 = vmatmul.mubr.bf16.gmra.mxu0 %v151
    %v373 = vpop.f32.mrf.mxu0
    %v374 = vadd.f32 %v301, %v373
    %v375 = vpop.f32.mrf.mxu0
    %v376 = vadd.f32 %v305, %v375
    %v377 = vpop.f32.mrf.mxu0
    %v378 = vadd.f32 %v301, %v377
    %v379 = vpop.f32.mrf.mxu0
    %v380 = vadd.f32 %v305, %v379
    %381 = vmatprep.mubr.bf16.mxu0 0
    %382 = vmatmul.mubr.bf16.gmra.mxu0 %v154
    %v383 = vpop.f32.mrf.mxu0
    %v384 = vadd.f32 %v301, %v383
    %v385 = vpop.f32.mrf.mxu0
    %v386 = vadd.f32 %v305, %v385
    %v387 = vpop.f32.mrf.mxu0
    %v388 = vadd.f32 %v301, %v387
    %v389 = vpop.f32.mrf.mxu0
    %v390 = vadd.f32 %v305, %v389
    %391 = vmatprep.mubr.bf16.mxu0 0
    %392 = vmatmul.mubr.bf16.gmra.mxu0 %v157
    %v393 = vpop.f32.mrf.mxu0
    %v394 = vadd.f32 %v301, %v393
    %v395 = vpop.f32.mrf.mxu0
    %v396 = vadd.f32 %v305, %v395
    %v397 = vpop.f32.mrf.mxu0
    %v398 = vadd.f32 %v301, %v397
    %v399 = vpop.f32.mrf.mxu0
    %v400 = vadd.f32 %v305, %v399
    %401 = vdwg.mxu0
    %402 = vmatprep.subr.bf16.mxu0 0
    %403 = vmatpush1.bf16.msra.mxu0 0
    %404 = vmatprep.subr.bf16.mxu0 0
    %405 = vmatpush1.bf16.msra.mxu0 0
    %406 = vmatprep.subr.bf16.mxu0 0
    %407 = vmatpush1.bf16.msra.mxu0 0
    %408 = vmatprep.subr.bf16.mxu0 0
    %409 = vmatpush1.bf16.msra.mxu0 0
    %410 = vmatprep.subr.bf16.mxu0 0
    %411 = vmatpush1.bf16.msra.mxu0 0
    %412 = vmatprep.subr.bf16.mxu0 0
    %413 = vmatpush1.bf16.msra.mxu0 0
    %414 = vmatprep.subr.bf16.mxu0 0
    %415 = vmatpush1.bf16.msra.mxu0 0
    %416 = vmatprep.subr.bf16.mxu0 0
    %417 = vmatpush1.bf16.msra.mxu0 %v325
    %418 = vmatprep.subr.bf16.mxu0 0
    %419 = vmatpush2.bf16.msra.mxu0 0
    %420 = vmatprep.subr.bf16.mxu0 0
    %421 = vmatpush2.bf16.msra.mxu0 0
    %422 = vmatprep.subr.bf16.mxu0 0
    %423 = vmatpush2.bf16.msra.mxu0 0
    %424 = vmatprep.subr.bf16.mxu0 0
    %425 = vmatpush2.bf16.msra.mxu0 0
    %426 = vmatprep.subr.bf16.mxu0 0
    %427 = vmatpush2.bf16.msra.mxu0 0
    %428 = vmatprep.subr.bf16.mxu0 0
    %429 = vmatpush2.bf16.msra.mxu0 0
    %430 = vmatprep.subr.bf16.mxu0 0
    %431 = vmatpush2.bf16.msra.mxu0 0
    %432 = vmatprep.subr.bf16.mxu0 0
    %433 = vmatpush2.bf16.msra.mxu0 0
    %434 = vmatprep.mubr.bf16.mxu0 0
    %435 = vmatmul.mubr.bf16.gmra.mxu0 %v148
    %v436 = vpop.f32.mrf.mxu0
    %v437 = vadd.f32 %v309, %v436
    %v438 = vpop.f32.mrf.mxu0
    %v439 = vpop.f32.mrf.mxu0
    %v440 = vadd.f32 %v309, %v439
    %v441 = vpop.f32.mrf.mxu0
    %442 = vmatprep.mubr.bf16.mxu0 0
    %443 = vmatmul.mubr.bf16.gmra.mxu0 %v151
    %v444 = vpop.f32.mrf.mxu0
    %v445 = vadd.f32 %v309, %v444
    %v446 = vpop.f32.mrf.mxu0
    %v447 = vpop.f32.mrf.mxu0
    %v448 = vadd.f32 %v309, %v447
    %v449 = vpop.f32.mrf.mxu0
    %450 = vmatprep.mubr.bf16.mxu0 0
    %451 = vmatmul.mubr.bf16.gmra.mxu0 %v154
    %v452 = vpop.f32.mrf.mxu0
    %v453 = vadd.f32 %v309, %v452
    %v454 = vpop.f32.mrf.mxu0
    %v455 = vpop.f32.mrf.mxu0
    %v456 = vadd.f32 %v309, %v455
    %v457 = vpop.f32.mrf.mxu0
    %458 = vmatprep.mubr.bf16.mxu0 0
    %459 = vmatmul.mubr.bf16.gmra.mxu0 %v157
    %v460 = vpop.f32.mrf.mxu0
    %v461 = vadd.f32 %v309, %v460
    %v462 = vpop.f32.mrf.mxu0
    %v463 = vpop.f32.mrf.mxu0
    %v464 = vadd.f32 %v309, %v463
    %v465 = vpop.f32.mrf.mxu0
    %466 = vdwg.mxu0
    %v467 = vpack.c.bf16 %v198, %v194
    %v468 = vpack.c.bf16 %v200, %v196
    %v469 = vpack.c.bf16 %v270, %v267
    %v470 = vpack.c.bf16 %v208, %v204
    %v471 = vpack.c.bf16 %v210, %v206
    %v472 = vpack.c.bf16 %v278, %v275
    %v473 = vpack.c.bf16 %v218, %v214
    %v474 = vpack.c.bf16 %v220, %v216
    %v475 = vpack.c.bf16 %v286, %v283
    %v476 = vpack.c.bf16 %v228, %v224
    %v477 = vpack.c.bf16 %v230, %v226
    %v478 = vpack.c.bf16 %v294, %v291
    %v491 = vunpack.c.l.b16 %v467
    %v492 = vunpack.c.l.b16 %v468
    %v493 = vunpack.c.l.b16 %v469
    %v494 = vunpack.c.h.b16 %v467
    %v495 = vunpack.c.h.b16 %v468
    %v496 = vunpack.c.h.b16 %v469
    %v497 = vunpack.c.l.b16 %v470
    %v498 = vunpack.c.l.b16 %v471
    %v499 = vunpack.c.l.b16 %v472
    %v500 = vunpack.c.h.b16 %v470
    %v501 = vunpack.c.h.b16 %v471
    %v502 = vunpack.c.h.b16 %v472
    %v503 = vunpack.c.l.b16 %v473
    %v504 = vunpack.c.l.b16 %v474
    %v505 = vunpack.c.l.b16 %v475
    %v506 = vunpack.c.h.b16 %v473
    %v507 = vunpack.c.h.b16 %v474
    %v508 = vunpack.c.h.b16 %v475
    %v509 = vunpack.c.l.b16 %v476
    %v510 = vunpack.c.l.b16 %v477
    %v511 = vunpack.c.l.b16 %v478
    %v512 = vunpack.c.h.b16 %v476
    %v513 = vunpack.c.h.b16 %v477
    %v514 = vunpack.c.h.b16 %v478
    %v515 = vpack.c.b16 %v492, %v491
    %v516 = vpack.c.b16 %v493, %v493
    %v517 = vpack.c.b16 %v495, %v494
    %v518 = vpack.c.b16 %v496, %v496
    %v519 = vpack.c.b16 %v498, %v497
    %v520 = vpack.c.b16 %v499, %v499
    %v521 = vpack.c.b16 %v501, %v500
    %v522 = vpack.c.b16 %v502, %v502
    %v523 = vpack.c.b16 %v504, %v503
    %v524 = vpack.c.b16 %v505, %v505
    %v525 = vpack.c.b16 %v507, %v506
    %v526 = vpack.c.b16 %v508, %v508
    %v527 = vpack.c.b16 %v510, %v509
    %v528 = vpack.c.b16 %v511, %v511
    %v529 = vpack.c.b16 %v513, %v512
    %v530 = vpack.c.b16 %v514, %v514
    %s547 = smul.u32 0, 3
    %s548 = smul.addr %s547, 4
    %s549 = scalar_lea.vmem [#allocation2], %s548
    %550 = vst [vmem:[%s549] sm:$0xff] %v515
    %551 = vst [vmem:[%s549 + $0x8] sm:$0xf] %v516
    %552 = vst [vmem:[%s549 + $0xc] sm:$0xff] %v517
    %553 = vst [vmem:[%s549 + $0x14] sm:$0xf] %v518
    %554 = vst [vmem:[%s549 + $0x18] sm:$0xff] %v519
    %555 = vst [vmem:[%s549 + $0x20] sm:$0xf] %v520
    %556 = vst [vmem:[%s549 + $0x24] sm:$0xff] %v521
    %557 = vst [vmem:[%s549 + $0x2c] sm:$0xf] %v522
    %558 = vst [vmem:[%s549 + $0x30] sm:$0xff] %v523
    %559 = vst [vmem:[%s549 + $0x38] sm:$0xf] %v524
    %560 = vst [vmem:[%s549 + $0x3c] sm:$0xff] %v525
    %561 = vst [vmem:[%s549 + $0x44] sm:$0xf] %v526
    %562 = vst [vmem:[%s549 + $0x48] sm:$0xff] %v527
    %563 = vst [vmem:[%s549 + $0x50] sm:$0xf] %v528
    %564 = vst [vmem:[%s549 + $0x54] sm:$0xff] %v529
    %565 = vst [vmem:[%s549 + $0x5c] sm:$0xf] %v530
    %v566 = vpack.c.bf16 %v368, %v364
    %v567 = vpack.c.bf16 %v370, %v366
    %v568 = vpack.c.bf16 %v440, %v437
    %v569 = vpack.c.bf16 %v378, %v374
    %v570 = vpack.c.bf16 %v380, %v376
    %v571 = vpack.c.bf16 %v448, %v445
    %v572 = vpack.c.bf16 %v388, %v384
    %v573 = vpack.c.bf16 %v390, %v386
    %v574 = vpack.c.bf16 %v456, %v453
    %v575 = vpack.c.bf16 %v398, %v394
    %v576 = vpack.c.bf16 %v400, %v396
    %v577 = vpack.c.bf16 %v464, %v461
    %v590 = vunpack.c.l.b16 %v566
    %v591 = vunpack.c.l.b16 %v567
    %v592 = vunpack.c.l.b16 %v568
    %v593 = vunpack.c.h.b16 %v566
    %v594 = vunpack.c.h.b16 %v567
    %v595 = vunpack.c.h.b16 %v568
    %v596 = vunpack.c.l.b16 %v569
    %v597 = vunpack.c.l.b16 %v570
    %v598 = vunpack.c.l.b16 %v571
    %v599 = vunpack.c.h.b16 %v569
    %v600 = vunpack.c.h.b16 %v570
    %v601 = vunpack.c.h.b16 %v571
    %v602 = vunpack.c.l.b16 %v572
    %v603 = vunpack.c.l.b16 %v573
    %v604 = vunpack.c.l.b16 %v574
    %v605 = vunpack.c.h.b16 %v572
    %v606 = vunpack.c.h.b16 %v573
    %v607 = vunpack.c.h.b16 %v574
    %v608 = vunpack.c.l.b16 %v575
    %v609 = vunpack.c.l.b16 %v576
    %v610 = vunpack.c.l.b16 %v577
    %v611 = vunpack.c.h.b16 %v575
    %v612 = vunpack.c.h.b16 %v576
    %v613 = vunpack.c.h.b16 %v577
    %v614 = vpack.c.b16 %v591, %v590
    %v615 = vpack.c.b16 %v592, %v592
    %v616 = vpack.c.b16 %v594, %v593
    %v617 = vpack.c.b16 %v595, %v595
    %v618 = vpack.c.b16 %v597, %v596
    %v619 = vpack.c.b16 %v598, %v598
    %v620 = vpack.c.b16 %v600, %v599
    %v621 = vpack.c.b16 %v601, %v601
    %v622 = vpack.c.b16 %v603, %v602
    %v623 = vpack.c.b16 %v604, %v604
    %v624 = vpack.c.b16 %v606, %v605
    %v625 = vpack.c.b16 %v607, %v607
    %v626 = vpack.c.b16 %v609, %v608
    %v627 = vpack.c.b16 %v610, %v610
    %v628 = vpack.c.b16 %v612, %v611
    %v629 = vpack.c.b16 %v613, %v613
    %s646 = smul.addr %s547, 4
    %s647 = scalar_lea.vmem [#allocation3], %s646
    %648 = vst [vmem:[%s647] sm:$0xff] %v614
    %649 = vst [vmem:[%s647 + $0x8] sm:$0xf] %v615
    %650 = vst [vmem:[%s647 + $0xc] sm:$0xff] %v616
    %651 = vst [vmem:[%s647 + $0x14] sm:$0xf] %v617
    %652 = vst [vmem:[%s647 + $0x18] sm:$0xff] %v618
    %653 = vst [vmem:[%s647 + $0x20] sm:$0xf] %v619
    %654 = vst [vmem:[%s647 + $0x24] sm:$0xff] %v620
    %655 = vst [vmem:[%s647 + $0x2c] sm:$0xf] %v621
    %656 = vst [vmem:[%s647 + $0x30] sm:$0xff] %v622
    %657 = vst [vmem:[%s647 + $0x38] sm:$0xf] %v623
    %658 = vst [vmem:[%s647 + $0x3c] sm:$0xff] %v624
    %659 = vst [vmem:[%s647 + $0x44] sm:$0xf] %v625
    %660 = vst [vmem:[%s647 + $0x48] sm:$0xff] %v626
    %661 = vst [vmem:[%s647 + $0x50] sm:$0xf] %v627
    %662 = vst [vmem:[%s647 + $0x54] sm:$0xff] %v628
    %663 = vst [vmem:[%s647 + $0x5c] sm:$0xf] %v629
    %v664 = vld [vmem:[#allocation8] sm:$0xff]
    %v665 = vld [vmem:[#allocation8 + $0x8] sm:$0xff]
    %v666 = vld [vmem:[#allocation8 + $0x10] sm:$0xff]
    %v667 = vld [vmem:[#allocation8 + $0x18] sm:$0xff]
    %v668 = vld [vmem:[#allocation8 + $0x20] sm:$0xff]
    %v669 = vld [vmem:[#allocation8 + $0x28] sm:$0xff]
    %v670 = vld [vmem:[#allocation8 + $0x30] sm:$0xff]
    %v671 = vld [vmem:[#allocation8 + $0x38] sm:$0xff]
    %v672 = vld [vmem:[#allocation8 + $0x40] sm:$0xff]
    %v673 = vld [vmem:[#allocation8 + $0x48] sm:$0xff]
    %v674 = vld [vmem:[#allocation8 + $0x50] sm:$0xff]
    %v675 = vld [vmem:[#allocation8 + $0x58] sm:$0xff]
    %v676 = vld [vmem:[#allocation8 + $0x60] sm:$0xff]
    %v677 = vld [vmem:[#allocation8 + $0x68] sm:$0xff]
    %v678 = vld [vmem:[#allocation8 + $0x70] sm:$0xff]
    %v679 = vld [vmem:[#allocation8 + $0x78] sm:$0xff]
    %v680 = vld [vmem:[#allocation8 + $0x80] sm:$0xff]
    %v681 = vld [vmem:[#allocation8 + $0x88] sm:$0xff]
    %v682 = vld [vmem:[#allocation8 + $0x90] sm:$0xff]
    %v683 = vld [vmem:[#allocation8 + $0x98] sm:$0xff]
    %v684 = vld [vmem:[#allocation8 + $0xa0] sm:$0xff]
    %v685 = vld [vmem:[#allocation8 + $0xa8] sm:$0xff]
    %v686 = vld [vmem:[#allocation8 + $0xb0] sm:$0xff]
    %v687 = vld [vmem:[#allocation8 + $0xb8] sm:$0xff]
    %v688 = vld [vmem:[#allocation8 + $0xc0] sm:$0xff]
    %v689 = vld [vmem:[#allocation8 + $0xc8] sm:$0xff]
    %v690 = vld [vmem:[#allocation8 + $0xd0] sm:$0xff]
    %v691 = vld [vmem:[#allocation8 + $0xd8] sm:$0xff]
    %v692 = vld [vmem:[#allocation8 + $0xe0] sm:$0xff]
    %v693 = vld [vmem:[#allocation8 + $0xe8] sm:$0xff]
    %v694 = vld [vmem:[#allocation8 + $0xf0] sm:$0xff]
    %v695 = vld [vmem:[#allocation8 + $0xf8] sm:$0xff]
    %v696 = vld [vmem:[#allocation8 + $0x100] sm:$0xff]
    %v697 = vld [vmem:[#allocation8 + $0x108] sm:$0xff]
    %v698 = vld [vmem:[#allocation8 + $0x110] sm:$0xff]
    %v699 = vld [vmem:[#allocation8 + $0x118] sm:$0xff]
    %v700 = vld [vmem:[#allocation8 + $0x120] sm:$0xff]
    %v701 = vld [vmem:[#allocation8 + $0x128] sm:$0xff]
    %v702 = vld [vmem:[#allocation8 + $0x130] sm:$0xff]
    %v703 = vld [vmem:[#allocation8 + $0x138] sm:$0xff]
    %v704 = vld [vmem:[#allocation8 + $0x140] sm:$0xff]
    %v705 = vld [vmem:[#allocation8 + $0x148] sm:$0xff]
    %v706 = vld [vmem:[#allocation8 + $0x150] sm:$0xff]
    %v707 = vld [vmem:[#allocation8 + $0x158] sm:$0xff]
    %v708 = vld [vmem:[#allocation8 + $0x160] sm:$0xff]
    %v709 = vld [vmem:[#allocation8 + $0x168] sm:$0xff]
    %v710 = vld [vmem:[#allocation8 + $0x170] sm:$0xff]
    %v711 = vld [vmem:[#allocation8 + $0x178] sm:$0xff]
    %v712 = vld [vmem:[#allocation8 + $0x180] sm:$0xff]
    %v713 = vld [vmem:[#allocation8 + $0x188] sm:$0xff]
    %v714 = vld [vmem:[#allocation8 + $0x190] sm:$0xff]
    %v715 = vld [vmem:[#allocation8 + $0x198] sm:$0xff]
    %v716 = vld [vmem:[#allocation8 + $0x1a0] sm:$0xff]
    %v717 = vld [vmem:[#allocation8 + $0x1a8] sm:$0xff]
    %v718 = vld [vmem:[#allocation8 + $0x1b0] sm:$0xff]
    %v719 = vld [vmem:[#allocation8 + $0x1b8] sm:$0xff]
    %v720 = vld [vmem:[#allocation8 + $0x1c0] sm:$0xff]
    %v721 = vld [vmem:[#allocation8 + $0x1c8] sm:$0xff]
    %v722 = vld [vmem:[#allocation8 + $0x1d0] sm:$0xff]
    %v723 = vld [vmem:[#allocation8 + $0x1d8] sm:$0xff]
    %v724 = vld [vmem:[#allocation8 + $0x1e0] sm:$0xff]
    %v725 = vld [vmem:[#allocation8 + $0x1e8] sm:$0xff]
    %v726 = vld [vmem:[#allocation8 + $0x1f0] sm:$0xff]
    %v727 = vld [vmem:[#allocation8 + $0x1f8] sm:$0xff]
    %v728 = vld [vmem:[#allocation8 + $0x200] sm:$0xff]
    %v729 = vld [vmem:[#allocation8 + $0x208] sm:$0xff]
    %v730 = vld [vmem:[#allocation8 + $0x210] sm:$0xff]
    %v731 = vld [vmem:[#allocation8 + $0x218] sm:$0xff]
    %v732 = vld [vmem:[#allocation8 + $0x220] sm:$0xff]
    %v733 = vld [vmem:[#allocation8 + $0x228] sm:$0xff]
    %v734 = vld [vmem:[#allocation8 + $0x230] sm:$0xff]
    %v735 = vld [vmem:[#allocation8 + $0x238] sm:$0xff]
    %v736 = vld [vmem:[#allocation8 + $0x240] sm:$0xff]
    %v737 = vld [vmem:[#allocation8 + $0x248] sm:$0xff]
    %v738 = vld [vmem:[#allocation8 + $0x250] sm:$0xff]
    %v739 = vld [vmem:[#allocation8 + $0x258] sm:$0xff]
    %v740 = vld [vmem:[#allocation8 + $0x260] sm:$0xff]
    %v741 = vld [vmem:[#allocation8 + $0x268] sm:$0xff]
    %v742 = vld [vmem:[#allocation8 + $0x270] sm:$0xff]
    %v743 = vld [vmem:[#allocation8 + $0x278] sm:$0xff]
    %v744 = vld [vmem:[#allocation8 + $0x280] sm:$0xff]
    %v745 = vld [vmem:[#allocation8 + $0x288] sm:$0xff]
    %v746 = vld [vmem:[#allocation8 + $0x290] sm:$0xff]
    %v747 = vld [vmem:[#allocation8 + $0x298] sm:$0xff]
    %v748 = vld [vmem:[#allocation8 + $0x2a0] sm:$0xff]
    %v749 = vld [vmem:[#allocation8 + $0x2a8] sm:$0xff]
    %v750 = vld [vmem:[#allocation8 + $0x2b0] sm:$0xff]
    %v751 = vld [vmem:[#allocation8 + $0x2b8] sm:$0xff]
    %v752 = vld [vmem:[#allocation8 + $0x2c0] sm:$0xff]
    %v753 = vld [vmem:[#allocation8 + $0x2c8] sm:$0xff]
    %v754 = vld [vmem:[#allocation8 + $0x2d0] sm:$0xff]
    %v755 = vld [vmem:[#allocation8 + $0x2d8] sm:$0xff]
    %v756 = vld [vmem:[#allocation8 + $0x2e0] sm:$0xff]
    %v757 = vld [vmem:[#allocation8 + $0x2e8] sm:$0xff]
    %v758 = vld [vmem:[#allocation8 + $0x2f0] sm:$0xff]
    %v759 = vld [vmem:[#allocation8 + $0x2f8] sm:$0xff]
    %v856 = vunpack.c.l.b16 %v664
    %v857 = vunpack.c.h.b16 %v664
    %v858 = vunpack.c.l.b16 %v665
    %v859 = vunpack.c.h.b16 %v665
    %v860 = vunpack.c.l.b16 %v666
    %v861 = vunpack.c.h.b16 %v666
    %v862 = vunpack.c.l.b16 %v667
    %v863 = vunpack.c.h.b16 %v667
    %v864 = vunpack.c.l.b16 %v668
    %v865 = vunpack.c.h.b16 %v668
    %v866 = vunpack.c.l.b16 %v669
    %v867 = vunpack.c.h.b16 %v669
    %v868 = vunpack.c.l.b16 %v670
    %v869 = vunpack.c.h.b16 %v670
    %v870 = vunpack.c.l.b16 %v671
    %v871 = vunpack.c.h.b16 %v671
    %v872 = vunpack.c.l.b16 %v672
    %v873 = vunpack.c.h.b16 %v672
    %v874 = vunpack.c.l.b16 %v673
    %v875 = vunpack.c.h.b16 %v673
    %v876 = vunpack.c.l.b16 %v674
    %v877 = vunpack.c.h.b16 %v674
    %v878 = vunpack.c.l.b16 %v675
    %v879 = vunpack.c.h.b16 %v675
    %v880 = vunpack.c.l.b16 %v676
    %v881 = vunpack.c.h.b16 %v676
    %v882 = vunpack.c.l.b16 %v677
    %v883 = vunpack.c.h.b16 %v677
    %v884 = vunpack.c.l.b16 %v678
    %v885 = vunpack.c.h.b16 %v678
    %v886 = vunpack.c.l.b16 %v679
    %v887 = vunpack.c.h.b16 %v679
    %v888 = vunpack.c.l.b16 %v680
    %v889 = vunpack.c.h.b16 %v680
    %v890 = vunpack.c.l.b16 %v681
    %v891 = vunpack.c.h.b16 %v681
    %v892 = vunpack.c.l.b16 %v682
    %v893 = vunpack.c.h.b16 %v682
    %v894 = vunpack.c.l.b16 %v683
    %v895 = vunpack.c.h.b16 %v683
    %v896 = vunpack.c.l.b16 %v684
    %v897 = vunpack.c.h.b16 %v684
    %v898 = vunpack.c.l.b16 %v685
    %v899 = vunpack.c.h.b16 %v685
    %v900 = vunpack.c.l.b16 %v686
    %v901 = vunpack.c.h.b16 %v686
    %v902 = vunpack.c.l.b16 %v687
    %v903 = vunpack.c.h.b16 %v687
    %v904 = vunpack.c.l.b16 %v688
    %v905 = vunpack.c.h.b16 %v688
    %v906 = vunpack.c.l.b16 %v689
    %v907 = vunpack.c.h.b16 %v689
    %v908 = vunpack.c.l.b16 %v690
    %v909 = vunpack.c.h.b16 %v690
    %v910 = vunpack.c.l.b16 %v691
    %v911 = vunpack.c.h.b16 %v691
    %v912 = vunpack.c.l.b16 %v692
    %v913 = vunpack.c.h.b16 %v692
    %v914 = vunpack.c.l.b16 %v693
    %v915 = vunpack.c.h.b16 %v693
    %v916 = vunpack.c.l.b16 %v694
    %v917 = vunpack.c.h.b16 %v694
    %v918 = vunpack.c.l.b16 %v695
    %v919 = vunpack.c.h.b16 %v695
    %v920 = vunpack.c.l.b16 %v696
    %v921 = vunpack.c.h.b16 %v696
    %v922 = vunpack.c.l.b16 %v697
    %v923 = vunpack.c.h.b16 %v697
    %v924 = vunpack.c.l.b16 %v698
    %v925 = vunpack.c.h.b16 %v698
    %v926 = vunpack.c.l.b16 %v699
    %v927 = vunpack.c.h.b16 %v699
    %v928 = vunpack.c.l.b16 %v700
    %v929 = vunpack.c.h.b16 %v700
    %v930 = vunpack.c.l.b16 %v701
    %v931 = vunpack.c.h.b16 %v701
    %v932 = vunpack.c.l.b16 %v702
    %v933 = vunpack.c.h.b16 %v702
    %v934 = vunpack.c.l.b16 %v703
    %v935 = vunpack.c.h.b16 %v703
    %v936 = vunpack.c.l.b16 %v704
    %v937 = vunpack.c.h.b16 %v704
    %v938 = vunpack.c.l.b16 %v705
    %v939 = vunpack.c.h.b16 %v705
    %v940 = vunpack.c.l.b16 %v706
    %v941 = vunpack.c.h.b16 %v706
    %v942 = vunpack.c.l.b16 %v707
    %v943 = vunpack.c.h.b16 %v707
    %v944 = vunpack.c.l.b16 %v708
    %v945 = vunpack.c.h.b16 %v708
    %v946 = vunpack.c.l.b16 %v709
    %v947 = vunpack.c.h.b16 %v709
    %v948 = vunpack.c.l.b16 %v710
    %v949 = vunpack.c.h.b16 %v710
    %v950 = vunpack.c.l.b16 %v711
    %v951 = vunpack.c.h.b16 %v711
    %v952 = vunpack.c.l.b16 %v712
    %v953 = vunpack.c.h.b16 %v712
    %v954 = vunpack.c.l.b16 %v713
    %v955 = vunpack.c.h.b16 %v713
    %v956 = vunpack.c.l.b16 %v714
    %v957 = vunpack.c.h.b16 %v714
    %v958 = vunpack.c.l.b16 %v715
    %v959 = vunpack.c.h.b16 %v715
    %v960 = vunpack.c.l.b16 %v716
    %v961 = vunpack.c.h.b16 %v716
    %v962 = vunpack.c.l.b16 %v717
    %v963 = vunpack.c.h.b16 %v717
    %v964 = vunpack.c.l.b16 %v718
    %v965 = vunpack.c.h.b16 %v718
    %v966 = vunpack.c.l.b16 %v719
    %v967 = vunpack.c.h.b16 %v719
    %v968 = vunpack.c.l.b16 %v720
    %v969 = vunpack.c.h.b16 %v720
    %v970 = vunpack.c.l.b16 %v721
    %v971 = vunpack.c.h.b16 %v721
    %v972 = vunpack.c.l.b16 %v722
    %v973 = vunpack.c.h.b16 %v722
    %v974 = vunpack.c.l.b16 %v723
    %v975 = vunpack.c.h.b16 %v723
    %v976 = vunpack.c.l.b16 %v724
    %v977 = vunpack.c.h.b16 %v724
    %v978 = vunpack.c.l.b16 %v725
    %v979 = vunpack.c.h.b16 %v725
    %v980 = vunpack.c.l.b16 %v726
    %v981 = vunpack.c.h.b16 %v726
    %v982 = vunpack.c.l.b16 %v727
    %v983 = vunpack.c.h.b16 %v727
    %v984 = vunpack.c.l.b16 %v728
    %v985 = vunpack.c.h.b16 %v728
    %v986 = vunpack.c.l.b16 %v729
    %v987 = vunpack.c.h.b16 %v729
    %v988 = vunpack.c.l.b16 %v730
    %v989 = vunpack.c.h.b16 %v730
    %v990 = vunpack.c.l.b16 %v731
    %v991 = vunpack.c.h.b16 %v731
    %v992 = vunpack.c.l.b16 %v732
    %v993 = vunpack.c.h.b16 %v732
    %v994 = vunpack.c.l.b16 %v733
    %v995 = vunpack.c.h.b16 %v733
    %v996 = vunpack.c.l.b16 %v734
    %v997 = vunpack.c.h.b16 %v734
    %v998 = vunpack.c.l.b16 %v735
    %v999 = vunpack.c.h.b16 %v735
    %v1000 = vunpack.c.l.b16 %v736
    %v1001 = vunpack.c.h.b16 %v736
    %v1002 = vunpack.c.l.b16 %v737
    %v1003 = vunpack.c.h.b16 %v737
    %v1004 = vunpack.c.l.b16 %v738
    %v1005 = vunpack.c.h.b16 %v738
    %v1006 = vunpack.c.l.b16 %v739
    %v1007 = vunpack.c.h.b16 %v739
    %v1008 = vunpack.c.l.b16 %v740
    %v1009 = vunpack.c.h.b16 %v740
    %v1010 = vunpack.c.l.b16 %v741
    %v1011 = vunpack.c.h.b16 %v741
    %v1012 = vunpack.c.l.b16 %v742
    %v1013 = vunpack.c.h.b16 %v742
    %v1014 = vunpack.c.l.b16 %v743
    %v1015 = vunpack.c.h.b16 %v743
    %v1016 = vunpack.c.l.b16 %v744
    %v1017 = vunpack.c.h.b16 %v744
    %v1018 = vunpack.c.l.b16 %v745
    %v1019 = vunpack.c.h.b16 %v745
    %v1020 = vunpack.c.l.b16 %v746
    %v1021 = vunpack.c.h.b16 %v746
    %v1022 = vunpack.c.l.b16 %v747
    %v1023 = vunpack.c.h.b16 %v747
    %v1024 = vunpack.c.l.b16 %v748
    %v1025 = vunpack.c.h.b16 %v748
    %v1026 = vunpack.c.l.b16 %v749
    %v1027 = vunpack.c.h.b16 %v749
    %v1028 = vunpack.c.l.b16 %v750
    %v1029 = vunpack.c.h.b16 %v750
    %v1030 = vunpack.c.l.b16 %v751
    %v1031 = vunpack.c.h.b16 %v751
    %v1032 = vunpack.c.l.b16 %v752
    %v1033 = vunpack.c.h.b16 %v752
    %v1034 = vunpack.c.l.b16 %v753
    %v1035 = vunpack.c.h.b16 %v753
    %v1036 = vunpack.c.l.b16 %v754
    %v1037 = vunpack.c.h.b16 %v754
    %v1038 = vunpack.c.l.b16 %v755
    %v1039 = vunpack.c.h.b16 %v755
    %v1040 = vunpack.c.l.b16 %v756
    %v1041 = vunpack.c.h.b16 %v756
    %v1042 = vunpack.c.l.b16 %v757
    %v1043 = vunpack.c.h.b16 %v757
    %v1044 = vunpack.c.l.b16 %v758
    %v1045 = vunpack.c.h.b16 %v758
    %v1046 = vunpack.c.l.b16 %v759
    %v1047 = vunpack.c.h.b16 %v759
    %v1048 = vpack.c.b16 %v862, %v856
    %v1049 = vpack.c.b16 %v863, %v857
    %v1050 = vpack.c.b16 %v864, %v858
    %v1051 = vpack.c.b16 %v865, %v859
    %v1052 = vpack.c.b16 %v866, %v860
    %v1053 = vpack.c.b16 %v867, %v861
    %v1054 = vpack.c.b16 %v874, %v868
    %v1055 = vpack.c.b16 %v875, %v869
    %v1056 = vpack.c.b16 %v876, %v870
    %v1057 = vpack.c.b16 %v877, %v871
    %v1058 = vpack.c.b16 %v878, %v872
    %v1059 = vpack.c.b16 %v879, %v873
    %v1060 = vpack.c.b16 %v886, %v880
    %v1061 = vpack.c.b16 %v887, %v881
    %v1062 = vpack.c.b16 %v888, %v882
    %v1063 = vpack.c.b16 %v889, %v883
    %v1064 = vpack.c.b16 %v890, %v884
    %v1065 = vpack.c.b16 %v891, %v885
    %v1066 = vpack.c.b16 %v898, %v892
    %v1067 = vpack.c.b16 %v899, %v893
    %v1068 = vpack.c.b16 %v900, %v894
    %v1069 = vpack.c.b16 %v901, %v895
    %v1070 = vpack.c.b16 %v902, %v896
    %v1071 = vpack.c.b16 %v903, %v897
    %v1072 = vpack.c.b16 %v910, %v904
    %v1073 = vpack.c.b16 %v911, %v905
    %v1074 = vpack.c.b16 %v912, %v906
    %v1075 = vpack.c.b16 %v913, %v907
    %v1076 = vpack.c.b16 %v914, %v908
    %v1077 = vpack.c.b16 %v915, %v909
    %v1078 = vpack.c.b16 %v922, %v916
    %v1079 = vpack.c.b16 %v923, %v917
    %v1080 = vpack.c.b16 %v924, %v918
    %v1081 = vpack.c.b16 %v925, %v919
    %v1082 = vpack.c.b16 %v926, %v920
    %v1083 = vpack.c.b16 %v927, %v921
    %v1084 = vpack.c.b16 %v934, %v928
    %v1085 = vpack.c.b16 %v935, %v929
    %v1086 = vpack.c.b16 %v936, %v930
    %v1087 = vpack.c.b16 %v937, %v931
    %v1088 = vpack.c.b16 %v938, %v932
    %v1089 = vpack.c.b16 %v939, %v933
    %v1090 = vpack.c.b16 %v946, %v940
    %v1091 = vpack.c.b16 %v947, %v941
    %v1092 = vpack.c.b16 %v948, %v942
    %v1093 = vpack.c.b16 %v949, %v943
    %v1094 = vpack.c.b16 %v950, %v944
    %v1095 = vpack.c.b16 %v951, %v945
    %v1096 = vpack.c.b16 %v958, %v952
    %v1097 = vpack.c.b16 %v959, %v953
    %v1098 = vpack.c.b16 %v960, %v954
    %v1099 = vpack.c.b16 %v961, %v955
    %v1100 = vpack.c.b16 %v962, %v956
    %v1101 = vpack.c.b16 %v963, %v957
    %v1102 = vpack.c.b16 %v970, %v964
    %v1103 = vpack.c.b16 %v971, %v965
    %v1104 = vpack.c.b16 %v972, %v966
    %v1105 = vpack.c.b16 %v973, %v967
    %v1106 = vpack.c.b16 %v974, %v968
    %v1107 = vpack.c.b16 %v975, %v969
    %v1108 = vpack.c.b16 %v982, %v976
    %v1109 = vpack.c.b16 %v983, %v977
    %v1110 = vpack.c.b16 %v984, %v978
    %v1111 = vpack.c.b16 %v985, %v979
    %v1112 = vpack.c.b16 %v986, %v980
    %v1113 = vpack.c.b16 %v987, %v981
    %v1114 = vpack.c.b16 %v994, %v988
    %v1115 = vpack.c.b16 %v995, %v989
    %v1116 = vpack.c.b16 %v996, %v990
    %v1117 = vpack.c.b16 %v997, %v991
    %v1118 = vpack.c.b16 %v998, %v992
    %v1119 = vpack.c.b16 %v999, %v993
    %v1120 = vpack.c.b16 %v1006, %v1000
    %v1121 = vpack.c.b16 %v1007, %v1001
    %v1122 = vpack.c.b16 %v1008, %v1002
    %v1123 = vpack.c.b16 %v1009, %v1003
    %v1124 = vpack.c.b16 %v1010, %v1004
    %v1125 = vpack.c.b16 %v1011, %v1005
    %v1126 = vpack.c.b16 %v1018, %v1012
    %v1127 = vpack.c.b16 %v1019, %v1013
    %v1128 = vpack.c.b16 %v1020, %v1014
    %v1129 = vpack.c.b16 %v1021, %v1015
    %v1130 = vpack.c.b16 %v1022, %v1016
    %v1131 = vpack.c.b16 %v1023, %v1017
    %v1132 = vpack.c.b16 %v1030, %v1024
    %v1133 = vpack.c.b16 %v1031, %v1025
    %v1134 = vpack.c.b16 %v1032, %v1026
    %v1135 = vpack.c.b16 %v1033, %v1027
    %v1136 = vpack.c.b16 %v1034, %v1028
    %v1137 = vpack.c.b16 %v1035, %v1029
    %v1138 = vpack.c.b16 %v1042, %v1036
    %v1139 = vpack.c.b16 %v1043, %v1037
    %v1140 = vpack.c.b16 %v1044, %v1038
    %v1141 = vpack.c.b16 %v1045, %v1039
    %v1142 = vpack.c.b16 %v1046, %v1040
    %v1143 = vpack.c.b16 %v1047, %v1041
    %1240 = vmatprep.subr.bf16.mxu0 %v1091
    %1241 = vmatpush1.bf16.msra.mxu0 %v1090
    %1242 = vmatprep.subr.bf16.mxu0 %v1085
    %1243 = vmatpush1.bf16.msra.mxu0 %v1084
    %1244 = vmatprep.subr.bf16.mxu0 %v1079
    %1245 = vmatpush1.bf16.msra.mxu0 %v1078
    %1246 = vmatprep.subr.bf16.mxu0 %v1073
    %1247 = vmatpush1.bf16.msra.mxu0 %v1072
    %1248 = vmatprep.subr.bf16.mxu0 %v1067
    %1249 = vmatpush1.bf16.msra.mxu0 %v1066
    %1250 = vmatprep.subr.bf16.mxu0 %v1061
    %1251 = vmatpush1.bf16.msra.mxu0 %v1060
    %1252 = vmatprep.subr.bf16.mxu0 %v1055
    %1253 = vmatpush1.bf16.msra.mxu0 %v1054
    %1254 = vmatprep.subr.bf16.mxu0 %v1049
    %1255 = vmatpush1.bf16.msra.mxu0 %v1048
    %1256 = vmatprep.subr.bf16.mxu0 %v1139
    %1257 = vmatpush2.bf16.msra.mxu0 %v1138
    %1258 = vmatprep.subr.bf16.mxu0 %v1133
    %1259 = vmatpush2.bf16.msra.mxu0 %v1132
    %1260 = vmatprep.subr.bf16.mxu0 %v1127
    %1261 = vmatpush2.bf16.msra.mxu0 %v1126
    %1262 = vmatprep.subr.bf16.mxu0 %v1121
    %1263 = vmatpush2.bf16.msra.mxu0 %v1120
    %1264 = vmatprep.subr.bf16.mxu0 %v1115
    %1265 = vmatpush2.bf16.msra.mxu0 %v1114
    %1266 = vmatprep.subr.bf16.mxu0 %v1109
    %1267 = vmatpush2.bf16.msra.mxu0 %v1108
    %1268 = vmatprep.subr.bf16.mxu0 %v1103
    %1269 = vmatpush2.bf16.msra.mxu0 %v1102
    %1270 = vmatprep.subr.bf16.mxu0 %v1097
    %1271 = vmatpush2.bf16.msra.mxu0 %v1096
    %1272 = vmatprep.mubr.bf16.mxu0 0
    %1273 = vmatmul.mubr.bf16.gmra.mxu0 0
    %v1274 = vpop.f32.mrf.mxu0
    %v1275 = vadd.f32 0.0, %v1274
    %v1276 = vpop.f32.mrf.mxu0
    %v1277 = vadd.f32 0.0, %v1276
    %v1278 = vpop.f32.mrf.mxu0
    %v1279 = vpop.f32.mrf.mxu0
    %1280 = vdwg.mxu0
    %1281 = vmatprep.subr.bf16.mxu0 %v1093
    %1282 = vmatpush1.bf16.msra.mxu0 %v1092
    %1283 = vmatprep.subr.bf16.mxu0 %v1087
    %1284 = vmatpush1.bf16.msra.mxu0 %v1086
    %1285 = vmatprep.subr.bf16.mxu0 %v1081
    %1286 = vmatpush1.bf16.msra.mxu0 %v1080
    %1287 = vmatprep.subr.bf16.mxu0 %v1075
    %1288 = vmatpush1.bf16.msra.mxu0 %v1074
    %1289 = vmatprep.subr.bf16.mxu0 %v1069
    %1290 = vmatpush1.bf16.msra.mxu0 %v1068
    %1291 = vmatprep.subr.bf16.mxu0 %v1063
    %1292 = vmatpush1.bf16.msra.mxu0 %v1062
    %1293 = vmatprep.subr.bf16.mxu0 %v1057
    %1294 = vmatpush1.bf16.msra.mxu0 %v1056
    %1295 = vmatprep.subr.bf16.mxu0 %v1051
    %1296 = vmatpush1.bf16.msra.mxu0 %v1050
    %1297 = vmatprep.subr.bf16.mxu0 %v1141
    %1298 = vmatpush2.bf16.msra.mxu0 %v1140
    %1299 = vmatprep.subr.bf16.mxu0 %v1135
    %1300 = vmatpush2.bf16.msra.mxu0 %v1134
    %1301 = vmatprep.subr.bf16.mxu0 %v1129
    %1302 = vmatpush2.bf16.msra.mxu0 %v1128
    %1303 = vmatprep.subr.bf16.mxu0 %v1123
    %1304 = vmatpush2.bf16.msra.mxu0 %v1122
    %1305 = vmatprep.subr.bf16.mxu0 %v1117
    %1306 = vmatpush2.bf16.msra.mxu0 %v1116
    %1307 = vmatprep.subr.bf16.mxu0 %v1111
    %1308 = vmatpush2.bf16.msra.mxu0 %v1110
    %1309 = vmatprep.subr.bf16.mxu0 %v1105
    %1310 = vmatpush2.bf16.msra.mxu0 %v1104
    %1311 = vmatprep.subr.bf16.mxu0 %v1099
    %1312 = vmatpush2.bf16.msra.mxu0 %v1098
    %1313 = vmatprep.mubr.bf16.mxu0 0
    %1314 = vmatmul.mubr.bf16.gmra.mxu0 0
    %v1315 = vpop.f32.mrf.mxu0
    %v1316 = vadd.f32 0.0, %v1315
    %v1317 = vpop.f32.mrf.mxu0
    %v1318 = vadd.f32 0.0, %v1317
    %v1319 = vpop.f32.mrf.mxu0
    %v1320 = vpop.f32.mrf.mxu0
    %1321 = vdwg.mxu0
    %1322 = vmatprep.subr.bf16.mxu0 %v1095
    %1323 = vmatpush1.bf16.msra.mxu0 %v1094
    %1324 = vmatprep.subr.bf16.mxu0 %v1089
    %1325 = vmatpush1.bf16.msra.mxu0 %v1088
    %1326 = vmatprep.subr.bf16.mxu0 %v1083
    %1327 = vmatpush1.bf16.msra.mxu0 %v1082
    %1328 = vmatprep.subr.bf16.mxu0 %v1077
    %1329 = vmatpush1.bf16.msra.mxu0 %v1076
    %1330 = vmatprep.subr.bf16.mxu0 %v1071
    %1331 = vmatpush1.bf16.msra.mxu0 %v1070
    %1332 = vmatprep.subr.bf16.mxu0 %v1065
    %1333 = vmatpush1.bf16.msra.mxu0 %v1064
    %1334 = vmatprep.subr.bf16.mxu0 %v1059
    %1335 = vmatpush1.bf16.msra.mxu0 %v1058
    %1336 = vmatprep.subr.bf16.mxu0 %v1053
    %1337 = vmatpush1.bf16.msra.mxu0 %v1052
    %1338 = vmatprep.subr.bf16.mxu0 %v1143
    %1339 = vmatpush2.bf16.msra.mxu0 %v1142
    %1340 = vmatprep.subr.bf16.mxu0 %v1137
    %1341 = vmatpush2.bf16.msra.mxu0 %v1136
    %1342 = vmatprep.subr.bf16.mxu0 %v1131
    %1343 = vmatpush2.bf16.msra.mxu0 %v1130
    %1344 = vmatprep.subr.bf16.mxu0 %v1125
    %1345 = vmatpush2.bf16.msra.mxu0 %v1124
    %1346 = vmatprep.subr.bf16.mxu0 %v1119
    %1347 = vmatpush2.bf16.msra.mxu0 %v1118
    %1348 = vmatprep.subr.bf16.mxu0 %v1113
    %1349 = vmatpush2.bf16.msra.mxu0 %v1112
    %1350 = vmatprep.subr.bf16.mxu0 %v1107
    %1351 = vmatpush2.bf16.msra.mxu0 %v1106
    %1352 = vmatprep.subr.bf16.mxu0 %v1101
    %1353 = vmatpush2.bf16.msra.mxu0 %v1100
    %1354 = vmatprep.mubr.bf16.mxu0 0
    %1355 = vmatmul.mubr.bf16.gmra.mxu0 0
    %v1356 = vpop.f32.mrf.mxu0
    %v1357 = vadd.f32 0.0, %v1356
    %v1358 = vpop.f32.mrf.mxu0
    %v1359 = vadd.f32 0.0, %v1358
    %v1360 = vpop.f32.mrf.mxu0
    %v1361 = vpop.f32.mrf.mxu0
    %1362 = vdwg.mxu0
    %v1363 = vld [vmem:[#allocation2] sm:$0xff]
    %v1364 = vld [vmem:[#allocation2 + $0x8] sm:$0xf]
    %v1365 = vpack.c.bf16 %v1275, %v1275
    %v1366 = vpack.c.bf16 %v1277, %v1277
    %v1367 = vpack.c.bf16 %v1316, %v1316
    %v1368 = vadd.bf16 %v1363, %v1365
    %v1369 = vxor.u32 %v1368, 2147516416
    %v1371 = vmul.bf16 %v1369, 1069105081
    %v1372 = vpow.bf16.pop %v1371
    %v1373 = vadd.bf16 %v1372, 1065369472
    %v1374 = vrcp.bf16.pop %v1373
    %v1375 = vmul.bf16 1065369472, %v1374
    %v1377 = vrot.slane %v1363, 4
    %v1379 = vadd.bf16 %v1377, %v1366
    %v1380 = vxor.u32 %v1379, 2147516416
    %v1382 = vmul.bf16 %v1380, 1069105081
    %v1383 = vpow.bf16.pop %v1382
    %v1384 = vadd.bf16 %v1383, 1065369472
    %v1385 = vrcp.bf16.pop %v1384
    %v1386 = vmul.bf16 1065369472, %v1385
    %v1387 = vadd.bf16 %v1367, %v76
    %v1388 = vmul.bf16 %v1375, %v1387
    %v1389 = vadd.bf16 %v1364, %v1388
    %v1390 = vtanh.bf16.pop %v1389
    %v1391 = vunpack.c.l.bf16 %v1386
    %v1392 = vsub.f32 1.0, %v1391
    %v1393 = vunpack.c.l.bf16 %v1390
    %v1394 = vmul.f32 %v1392, %v1393
    %v1395 = vmul.f32 %v1391, 0.0
    %v1396 = vadd.f32 %v1394, %v1395
    %s1397 = scalar_lea.vmem [#allocation3], 84
    %v1398 = vld [vmem:[%s1397] sm:$0xff]
    %v1399 = vld [vmem:[%s1397 + $0x8] sm:$0xf]
    %v1400 = vpack.c.bf16 %v1318, %v1318
    %v1401 = vpack.c.bf16 %v1357, %v1357
    %v1402 = vpack.c.bf16 %v1359, %v1359
    %v1403 = vadd.bf16 %v1398, %v1400
    %v1404 = vxor.u32 %v1403, 2147516416
    %v1406 = vmul.bf16 %v1404, 1069105081
    %v1407 = vpow.bf16.pop %v1406
    %v1408 = vadd.bf16 %v1407, 1065369472
    %v1409 = vrcp.bf16.pop %v1408
    %v1410 = vmul.bf16 1065369472, %v1409
    %v1412 = vrot.slane %v1398, 4
    %v1414 = vadd.bf16 %v1412, %v1401
    %v1415 = vxor.u32 %v1414, 2147516416
    %v1417 = vmul.bf16 %v1415, 1069105081
    %v1418 = vpow.bf16.pop %v1417
    %v1419 = vadd.bf16 %v1418, 1065369472
    %v1420 = vrcp.bf16.pop %v1419
    %v1421 = vmul.bf16 1065369472, %v1420
    %v1422 = vadd.bf16 %v1402, %v85
    %v1423 = vmul.bf16 %v1410, %v1422
    %v1424 = vadd.bf16 %v1399, %v1423
    %v1425 = vtanh.bf16.pop %v1424
    %v1426 = vunpack.c.l.bf16 %v1421
    %v1427 = vsub.f32 1.0, %v1426
    %v1428 = vunpack.c.l.bf16 %v1425
    %v1429 = vmul.f32 %v1427, %v1428
    %v1430 = vmul.f32 %v1426, 0.0
    %v1431 = vadd.f32 %v1429, %v1430
    %v1432 = vld [vmem:[%s1] sm:$0xff]
    %vm1433 = vcmp.gt.f32.partialorder %v1432, 0.0
    %s1434 = scalar_lea.vmem %s1, 56
    %v1435 = vld [vmem:[%s1434] sm:$0xff]
    %vm1436 = vcmp.gt.f32.partialorder %v1435, 0.0
    %v1437 = vsel %vm1433, 1, 0
    %1438 = vset.pattern.permute.xlu0 0
    %1439 = vperm.xlu0 %1438, %v1437
    %v1440 = vpop.permute.xlu0 %1439
    %vm1441 = vcmp.eq.s32.totalorder %v1440, 1
    %v1442 = vsel %vm1441, %v1396, 0.0
    %v1443 = vsel %vm1436, 1, 0
    %1444 = vset.pattern.permute.xlu0 0
    %1445 = vperm.xlu0 %1444, %v1443
    %v1446 = vpop.permute.xlu0 %1445
    %vm1447 = vcmp.eq.s32.totalorder %v1446, 1
    %v1448 = vsel %vm1447, %v1431, 0.0
    %v1449 = vpack.c.bf16 %v1442, %v1442
    %1450 = vst [vmem:[#allocation10] sm:$0xf] %v1449
    %v1451 = vpack.c.bf16 %v1448, %v1448
    %s1452 = scalar_lea.vmem [#allocation4], 28
    %1453 = vst [vmem:[%s1452] sm:$0xf] %v1451
    %1454 = vmatprep.subr.bf16.mxu0 %v1091
    %1455 = vmatpush1.bf16.msra.mxu0 %v1090
    %1456 = vmatprep.subr.bf16.mxu0 %v1085
    %1457 = vmatpush1.bf16.msra.mxu0 %v1084
    %1458 = vmatprep.subr.bf16.mxu0 %v1079
    %1459 = vmatpush1.bf16.msra.mxu0 %v1078
    %1460 = vmatprep.subr.bf16.mxu0 %v1073
    %1461 = vmatpush1.bf16.msra.mxu0 %v1072
    %1462 = vmatprep.subr.bf16.mxu0 %v1067
    %1463 = vmatpush1.bf16.msra.mxu0 %v1066
    %1464 = vmatprep.subr.bf16.mxu0 %v1061
    %1465 = vmatpush1.bf16.msra.mxu0 %v1060
    %1466 = vmatprep.subr.bf16.mxu0 %v1055
    %1467 = vmatpush1.bf16.msra.mxu0 %v1054
    %1468 = vmatprep.subr.bf16.mxu0 %v1049
    %1469 = vmatpush1.bf16.msra.mxu0 %v1048
    %1470 = vmatprep.subr.bf16.mxu0 %v1139
    %1471 = vmatpush2.bf16.msra.mxu0 %v1138
    %1472 = vmatprep.subr.bf16.mxu0 %v1133
    %1473 = vmatpush2.bf16.msra.mxu0 %v1132
    %1474 = vmatprep.subr.bf16.mxu0 %v1127
    %1475 = vmatpush2.bf16.msra.mxu0 %v1126
    %1476 = vmatprep.subr.bf16.mxu0 %v1121
    %1477 = vmatpush2.bf16.msra.mxu0 %v1120
    %1478 = vmatprep.subr.bf16.mxu0 %v1115
    %1479 = vmatpush2.bf16.msra.mxu0 %v1114
    %1480 = vmatprep.subr.bf16.mxu0 %v1109
    %1481 = vmatpush2.bf16.msra.mxu0 %v1108
    %1482 = vmatprep.subr.bf16.mxu0 %v1103
    %1483 = vmatpush2.bf16.msra.mxu0 %v1102
    %1484 = vmatprep.subr.bf16.mxu0 %v1097
    %1485 = vmatpush2.bf16.msra.mxu0 %v1096
    %1486 = vmatprep.mubr.bf16.mxu0 %v1451
    %1487 = vmatmul.mubr.bf16.gmra.mxu0 %v1449
    %v1488 = vpop.f32.mrf.mxu0
    %v1489 = vadd.f32 0.0, %v1488
    %v1490 = vpop.f32.mrf.mxu0
    %v1491 = vadd.f32 0.0, %v1490
    %v1492 = vpop.f32.mrf.mxu0
    %v1493 = vpop.f32.mrf.mxu0
    %1494 = vdwg.mxu0
    %1495 = vmatprep.subr.bf16.mxu0 %v1093
    %1496 = vmatpush1.bf16.msra.mxu0 %v1092
    %1497 = vmatprep.subr.bf16.mxu0 %v1087
    %1498 = vmatpush1.bf16.msra.mxu0 %v1086
    %1499 = vmatprep.subr.bf16.mxu0 %v1081
    %1500 = vmatpush1.bf16.msra.mxu0 %v1080
    %1501 = vmatprep.subr.bf16.mxu0 %v1075
    %1502 = vmatpush1.bf16.msra.mxu0 %v1074
    %1503 = vmatprep.subr.bf16.mxu0 %v1069
    %1504 = vmatpush1.bf16.msra.mxu0 %v1068
    %1505 = vmatprep.subr.bf16.mxu0 %v1063
    %1506 = vmatpush1.bf16.msra.mxu0 %v1062
    %1507 = vmatprep.subr.bf16.mxu0 %v1057
    %1508 = vmatpush1.bf16.msra.mxu0 %v1056
    %1509 = vmatprep.subr.bf16.mxu0 %v1051
    %1510 = vmatpush1.bf16.msra.mxu0 %v1050
    %1511 = vmatprep.subr.bf16.mxu0 %v1141
    %1512 = vmatpush2.bf16.msra.mxu0 %v1140
    %1513 = vmatprep.subr.bf16.mxu0 %v1135
    %1514 = vmatpush2.bf16.msra.mxu0 %v1134
    %1515 = vmatprep.subr.bf16.mxu0 %v1129
    %1516 = vmatpush2.bf16.msra.mxu0 %v1128
    %1517 = vmatprep.subr.bf16.mxu0 %v1123
    %1518 = vmatpush2.bf16.msra.mxu0 %v1122
    %1519 = vmatprep.subr.bf16.mxu0 %v1117
    %1520 = vmatpush2.bf16.msra.mxu0 %v1116
    %1521 = vmatprep.subr.bf16.mxu0 %v1111
    %1522 = vmatpush2.bf16.msra.mxu0 %v1110
    %1523 = vmatprep.subr.bf16.mxu0 %v1105
    %1524 = vmatpush2.bf16.msra.mxu0 %v1104
    %1525 = vmatprep.subr.bf16.mxu0 %v1099
    %1526 = vmatpush2.bf16.msra.mxu0 %v1098
    %1527 = vmatprep.mubr.bf16.mxu0 %v1451
    %1528 = vmatmul.mubr.bf16.gmra.mxu0 %v1449
    %v1529 = vpop.f32.mrf.mxu0
    %v1530 = vadd.f32 0.0, %v1529
    %v1531 = vpop.f32.mrf.mxu0
    %v1532 = vadd.f32 0.0, %v1531
    %v1533 = vpop.f32.mrf.mxu0
    %v1534 = vpop.f32.mrf.mxu0
    %1535 = vdwg.mxu0
    %1536 = vmatprep.subr.bf16.mxu0 %v1095
    %1537 = vmatpush1.bf16.msra.mxu0 %v1094
    %1538 = vmatprep.subr.bf16.mxu0 %v1089
    %1539 = vmatpush1.bf16.msra.mxu0 %v1088
    %1540 = vmatprep.subr.bf16.mxu0 %v1083
    %1541 = vmatpush1.bf16.msra.mxu0 %v1082
    %1542 = vmatprep.subr.bf16.mxu0 %v1077
    %1543 = vmatpush1.bf16.msra.mxu0 %v1076
    %1544 = vmatprep.subr.bf16.mxu0 %v1071
    %1545 = vmatpush1.bf16.msra.mxu0 %v1070
    %1546 = vmatprep.subr.bf16.mxu0 %v1065
    %1547 = vmatpush1.bf16.msra.mxu0 %v1064
    %1548 = vmatprep.subr.bf16.mxu0 %v1059
    %1549 = vmatpush1.bf16.msra.mxu0 %v1058
    %1550 = vmatprep.subr.bf16.mxu0 %v1053
    %1551 = vmatpush1.bf16.msra.mxu0 %v1052
    %1552 = vmatprep.subr.bf16.mxu0 %v1143
    %1553 = vmatpush2.bf16.msra.mxu0 %v1142
    %1554 = vmatprep.subr.bf16.mxu0 %v1137
    %1555 = vmatpush2.bf16.msra.mxu0 %v1136
    %1556 = vmatprep.subr.bf16.mxu0 %v1131
    %1557 = vmatpush2.bf16.msra.mxu0 %v1130
    %1558 = vmatprep.subr.bf16.mxu0 %v1125
    %1559 = vmatpush2.bf16.msra.mxu0 %v1124
    %1560 = vmatprep.subr.bf16.mxu0 %v1119
    %1561 = vmatpush2.bf16.msra.mxu0 %v1118
    %1562 = vmatprep.subr.bf16.mxu0 %v1113
    %1563 = vmatpush2.bf16.msra.mxu0 %v1112
    %1564 = vmatprep.subr.bf16.mxu0 %v1107
    %1565 = vmatpush2.bf16.msra.mxu0 %v1106
    %1566 = vmatprep.subr.bf16.mxu0 %v1101
    %1567 = vmatpush2.bf16.msra.mxu0 %v1100
    %1568 = vmatprep.mubr.bf16.mxu0 %v1451
    %1569 = vmatmul.mubr.bf16.gmra.mxu0 %v1449
    %v1570 = vpop.f32.mrf.mxu0
    %v1571 = vadd.f32 0.0, %v1570
    %v1572 = vpop.f32.mrf.mxu0
    %v1573 = vadd.f32 0.0, %v1572
    %v1574 = vpop.f32.mrf.mxu0
    %v1575 = vpop.f32.mrf.mxu0
    %1576 = vdwg.mxu0
    %s1577 = scalar_lea.vmem [#allocation2], 12
    %v1578 = vld [vmem:[%s1577] sm:$0xff]
    %v1579 = vld [vmem:[%s1577 + $0x8] sm:$0xf]
    %v1580 = vpack.c.bf16 %v1489, %v1489
    %v1581 = vpack.c.bf16 %v1491, %v1491
    %v1582 = vpack.c.bf16 %v1530, %v1530
    %v1583 = vadd.bf16 %v1578, %v1580
    %v1584 = vxor.u32 %v1583, 2147516416
    %v1586 = vmul.bf16 %v1584, 1069105081
    %v1587 = vpow.bf16.pop %v1586
    %v1588 = vadd.bf16 %v1587, 1065369472
    %v1589 = vrcp.bf16.pop %v1588
    %v1590 = vmul.bf16 1065369472, %v1589
    %v1592 = vrot.slane %v1578, 4
    %v1594 = vadd.bf16 %v1592, %v1581
    %v1595 = vxor.u32 %v1594, 2147516416
    %v1597 = vmul.bf16 %v1595, 1069105081
    %v1598 = vpow.bf16.pop %v1597
    %v1599 = vadd.bf16 %v1598, 1065369472
    %v1600 = vrcp.bf16.pop %v1599
    %v1601 = vmul.bf16 1065369472, %v1600
    %v1602 = vadd.bf16 %v1582, %v76
    %v1603 = vmul.bf16 %v1590, %v1602
    %v1604 = vadd.bf16 %v1579, %v1603
    %v1605 = vtanh.bf16.pop %v1604
    %v1606 = vunpack.c.l.bf16 %v1601
    %v1607 = vsub.f32 1.0, %v1606
    %v1608 = vunpack.c.l.bf16 %v1605
    %v1609 = vmul.f32 %v1607, %v1608
    %v1610 = vmul.f32 %v1606, %v1442
    %v1611 = vadd.f32 %v1609, %v1610
    %s1612 = scalar_lea.vmem [#allocation3], 72
    %v1613 = vld [vmem:[%s1612] sm:$0xff]
    %v1614 = vld [vmem:[%s1612 + $0x8] sm:$0xf]
    %v1615 = vpack.c.bf16 %v1532, %v1532
    %v1616 = vpack.c.bf16 %v1571, %v1571
    %v1617 = vpack.c.bf16 %v1573, %v1573
    %v1618 = vadd.bf16 %v1613, %v1615
    %v1619 = vxor.u32 %v1618, 2147516416
    %v1621 = vmul.bf16 %v1619, 1069105081
    %v1622 = vpow.bf16.pop %v1621
    %v1623 = vadd.bf16 %v1622, 1065369472
    %v1624 = vrcp.bf16.pop %v1623
    %v1625 = vmul.bf16 1065369472, %v1624
    %v1627 = vrot.slane %v1613, 4
    %v1629 = vadd.bf16 %v1627, %v1616
    %v1630 = vxor.u32 %v1629, 2147516416
    %v1632 = vmul.bf16 %v1630, 1069105081
    %v1633 = vpow.bf16.pop %v1632
    %v1634 = vadd.bf16 %v1633, 1065369472
    %v1635 = vrcp.bf16.pop %v1634
    %v1636 = vmul.bf16 1065369472, %v1635
    %v1637 = vadd.bf16 %v1617, %v85
    %v1638 = vmul.bf16 %v1625, %v1637
    %v1639 = vadd.bf16 %v1614, %v1638
    %v1640 = vtanh.bf16.pop %v1639
    %v1641 = vunpack.c.l.bf16 %v1636
    %v1642 = vsub.f32 1.0, %v1641
    %v1643 = vunpack.c.l.bf16 %v1640
    %v1644 = vmul.f32 %v1642, %v1643
    %v1645 = vmul.f32 %v1641, %v1448
    %v1646 = vadd.f32 %v1644, %v1645
    %s1647 = scalar_lea.vmem %s1, 8
    %v1648 = vld [vmem:[%s1647] sm:$0xff]
    %vm1649 = vcmp.gt.f32.partialorder %v1648, 0.0
    %s1650 = scalar_lea.vmem %s1, 48
    %v1651 = vld [vmem:[%s1650] sm:$0xff]
    %vm1652 = vcmp.gt.f32.partialorder %v1651, 0.0
    %v1653 = vsel %vm1649, 1, 0
    %1654 = vset.pattern.permute.xlu0 0
    %1655 = vperm.xlu0 %1654, %v1653
    %v1656 = vpop.permute.xlu0 %1655
    %vm1657 = vcmp.eq.s32.totalorder %v1656, 1
    %v1658 = vsel %vm1657, %v1611, %v1442
    %v1659 = vsel %vm1652, 1, 0
    %1660 = vset.pattern.permute.xlu0 0
    %1661 = vperm.xlu0 %1660, %v1659
    %v1662 = vpop.permute.xlu0 %1661
    %vm1663 = vcmp.eq.s32.totalorder %v1662, 1
    %v1664 = vsel %vm1663, %v1646, %v1448
    %v1665 = vsel %vm1657, %v1611, 0.0
    %v1666 = vpack.c.bf16 %v1665, %v1665
    %s1667 = scalar_lea.vmem [#allocation10], 4
    %1668 = vst [vmem:[%s1667] sm:$0xf] %v1666
    %v1669 = vsel %vm1663, %v1646, 0.0
    %v1670 = vpack.c.bf16 %v1669, %v1669
    %s1671 = scalar_lea.vmem [#allocation4], 24
    %1672 = vst [vmem:[%s1671] sm:$0xf] %v1670
    %v1673 = vpack.c.bf16 %v1658, %v1658
    %v1674 = vpack.c.bf16 %v1664, %v1664
    %1675 = vmatprep.subr.bf16.mxu0 %v1091
    %1676 = vmatpush1.bf16.msra.mxu0 %v1090
    %1677 = vmatprep.subr.bf16.mxu0 %v1085
    %1678 = vmatpush1.bf16.msra.mxu0 %v1084
    %1679 = vmatprep.subr.bf16.mxu0 %v1079
    %1680 = vmatpush1.bf16.msra.mxu0 %v1078
    %1681 = vmatprep.subr.bf16.mxu0 %v1073
    %1682 = vmatpush1.bf16.msra.mxu0 %v1072
    %1683 = vmatprep.subr.bf16.mxu0 %v1067
    %1684 = vmatpush1.bf16.msra.mxu0 %v1066
    %1685 = vmatprep.subr.bf16.mxu0 %v1061
    %1686 = vmatpush1.bf16.msra.mxu0 %v1060
    %1687 = vmatprep.subr.bf16.mxu0 %v1055
    %1688 = vmatpush1.bf16.msra.mxu0 %v1054
    %1689 = vmatprep.subr.bf16.mxu0 %v1049
    %1690 = vmatpush1.bf16.msra.mxu0 %v1048
    %1691 = vmatprep.subr.bf16.mxu0 %v1139
    %1692 = vmatpush2.bf16.msra.mxu0 %v1138
    %1693 = vmatprep.subr.bf16.mxu0 %v1133
    %1694 = vmatpush2.bf16.msra.mxu0 %v1132
    %1695 = vmatprep.subr.bf16.mxu0 %v1127
    %1696 = vmatpush2.bf16.msra.mxu0 %v1126
    %1697 = vmatprep.subr.bf16.mxu0 %v1121
    %1698 = vmatpush2.bf16.msra.mxu0 %v1120
    %1699 = vmatprep.subr.bf16.mxu0 %v1115
    %1700 = vmatpush2.bf16.msra.mxu0 %v1114
    %1701 = vmatprep.subr.bf16.mxu0 %v1109
    %1702 = vmatpush2.bf16.msra.mxu0 %v1108
    %1703 = vmatprep.subr.bf16.mxu0 %v1103
    %1704 = vmatpush2.bf16.msra.mxu0 %v1102
    %1705 = vmatprep.subr.bf16.mxu0 %v1097
    %1706 = vmatpush2.bf16.msra.mxu0 %v1096
    %1707 = vmatprep.mubr.bf16.mxu0 %v1674
    %1708 = vmatmul.mubr.bf16.gmra.mxu0 %v1673
    %v1709 = vpop.f32.mrf.mxu0
    %v1710 = vadd.f32 0.0, %v1709
    %v1711 = vpop.f32.mrf.mxu0
    %v1712 = vadd.f32 0.0, %v1711
    %v1713 = vpop.f32.mrf.mxu0
    %v1714 = vpop.f32.mrf.mxu0
    %1715 = vdwg.mxu0
    %1716 = vmatprep.subr.bf16.mxu0 %v1093
    %1717 = vmatpush1.bf16.msra.mxu0 %v1092
    %1718 = vmatprep.subr.bf16.mxu0 %v1087
    %1719 = vmatpush1.bf16.msra.mxu0 %v1086
    %1720 = vmatprep.subr.bf16.mxu0 %v1081
    %1721 = vmatpush1.bf16.msra.mxu0 %v1080
    %1722 = vmatprep.subr.bf16.mxu0 %v1075
    %1723 = vmatpush1.bf16.msra.mxu0 %v1074
    %1724 = vmatprep.subr.bf16.mxu0 %v1069
    %1725 = vmatpush1.bf16.msra.mxu0 %v1068
    %1726 = vmatprep.subr.bf16.mxu0 %v1063
    %1727 = vmatpush1.bf16.msra.mxu0 %v1062
    %1728 = vmatprep.subr.bf16.mxu0 %v1057
    %1729 = vmatpush1.bf16.msra.mxu0 %v1056
    %1730 = vmatprep.subr.bf16.mxu0 %v1051
    %1731 = vmatpush1.bf16.msra.mxu0 %v1050
    %1732 = vmatprep.subr.bf16.mxu0 %v1141
    %1733 = vmatpush2.bf16.msra.mxu0 %v1140
    %1734 = vmatprep.subr.bf16.mxu0 %v1135
    %1735 = vmatpush2.bf16.msra.mxu0 %v1134
    %1736 = vmatprep.subr.bf16.mxu0 %v1129
    %1737 = vmatpush2.bf16.msra.mxu0 %v1128
    %1738 = vmatprep.subr.bf16.mxu0 %v1123
    %1739 = vmatpush2.bf16.msra.mxu0 %v1122
    %1740 = vmatprep.subr.bf16.mxu0 %v1117
    %1741 = vmatpush2.bf16.msra.mxu0 %v1116
    %1742 = vmatprep.subr.bf16.mxu0 %v1111
    %1743 = vmatpush2.bf16.msra.mxu0 %v1110
    %1744 = vmatprep.subr.bf16.mxu0 %v1105
    %1745 = vmatpush2.bf16.msra.mxu0 %v1104
    %1746 = vmatprep.subr.bf16.mxu0 %v1099
    %1747 = vmatpush2.bf16.msra.mxu0 %v1098
    %1748 = vmatprep.mubr.bf16.mxu0 %v1674
    %1749 = vmatmul.mubr.bf16.gmra.mxu0 %v1673
    %v1750 = vpop.f32.mrf.mxu0
    %v1751 = vadd.f32 0.0, %v1750
    %v1752 = vpop.f32.mrf.mxu0
    %v1753 = vadd.f32 0.0, %v1752
    %v1754 = vpop.f32.mrf.mxu0
    %v1755 = vpop.f32.mrf.mxu0
    %1756 = vdwg.mxu0
    %1757 = vmatprep.subr.bf16.mxu0 %v1095
    %1758 = vmatpush1.bf16.msra.mxu0 %v1094
    %1759 = vmatprep.subr.bf16.mxu0 %v1089
    %1760 = vmatpush1.bf16.msra.mxu0 %v1088
    %1761 = vmatprep.subr.bf16.mxu0 %v1083
    %1762 = vmatpush1.bf16.msra.mxu0 %v1082
    %1763 = vmatprep.subr.bf16.mxu0 %v1077
    %1764 = vmatpush1.bf16.msra.mxu0 %v1076
    %1765 = vmatprep.subr.bf16.mxu0 %v1071
    %1766 = vmatpush1.bf16.msra.mxu0 %v1070
    %1767 = vmatprep.subr.bf16.mxu0 %v1065
    %1768 = vmatpush1.bf16.msra.mxu0 %v1064
    %1769 = vmatprep.subr.bf16.mxu0 %v1059
    %1770 = vmatpush1.bf16.msra.mxu0 %v1058
    %1771 = vmatprep.subr.bf16.mxu0 %v1053
    %1772 = vmatpush1.bf16.msra.mxu0 %v1052
    %1773 = vmatprep.subr.bf16.mxu0 %v1143
    %1774 = vmatpush2.bf16.msra.mxu0 %v1142
    %1775 = vmatprep.subr.bf16.mxu0 %v1137
    %1776 = vmatpush2.bf16.msra.mxu0 %v1136
    %1777 = vmatprep.subr.bf16.mxu0 %v1131
    %1778 = vmatpush2.bf16.msra.mxu0 %v1130
    %1779 = vmatprep.subr.bf16.mxu0 %v1125
    %1780 = vmatpush2.bf16.msra.mxu0 %v1124
    %1781 = vmatprep.subr.bf16.mxu0 %v1119
    %1782 = vmatpush2.bf16.msra.mxu0 %v1118
    %1783 = vmatprep.subr.bf16.mxu0 %v1113
    %1784 = vmatpush2.bf16.msra.mxu0 %v1112
    %1785 = vmatprep.subr.bf16.mxu0 %v1107
    %1786 = vmatpush2.bf16.msra.mxu0 %v1106
    %1787 = vmatprep.subr.bf16.mxu0 %v1101
    %1788 = vmatpush2.bf16.msra.mxu0 %v1100
    %1789 = vmatprep.mubr.bf16.mxu0 %v1674
    %1790 = vmatmul.mubr.bf16.gmra.mxu0 %v1673
    %v1791 = vpop.f32.mrf.mxu0
    %v1792 = vadd.f32 0.0, %v1791
    %v1793 = vpop.f32.mrf.mxu0
    %v1794 = vadd.f32 0.0, %v1793
    %v1795 = vpop.f32.mrf.mxu0
    %v1796 = vpop.f32.mrf.mxu0
    %1797 = vdwg.mxu0
    %s1798 = scalar_lea.vmem [#allocation2], 24
    %v1799 = vld [vmem:[%s1798] sm:$0xff]
    %v1800 = vld [vmem:[%s1798 + $0x8] sm:$0xf]
    %v1801 = vpack.c.bf16 %v1710, %v1710
    %v1802 = vpack.c.bf16 %v1712, %v1712
    %v1803 = vpack.c.bf16 %v1751, %v1751
    %v1804 = vadd.bf16 %v1799, %v1801
    %v1805 = vxor.u32 %v1804, 2147516416
    %v1807 = vmul.bf16 %v1805, 1069105081
    %v1808 = vpow.bf16.pop %v1807
    %v1809 = vadd.bf16 %v1808, 1065369472
    %v1810 = vrcp.bf16.pop %v1809
    %v1811 = vmul.bf16 1065369472, %v1810
    %v1813 = vrot.slane %v1799, 4
    %v1815 = vadd.bf16 %v1813, %v1802
    %v1816 = vxor.u32 %v1815, 2147516416
    %v1818 = vmul.bf16 %v1816, 1069105081
    %v1819 = vpow.bf16.pop %v1818
    %v1820 = vadd.bf16 %v1819, 1065369472
    %v1821 = vrcp.bf16.pop %v1820
    %v1822 = vmul.bf16 1065369472, %v1821
    %v1823 = vadd.bf16 %v1803, %v76
    %v1824 = vmul.bf16 %v1811, %v1823
    %v1825 = vadd.bf16 %v1800, %v1824
    %v1826 = vtanh.bf16.pop %v1825
    %v1827 = vunpack.c.l.bf16 %v1822
    %v1828 = vsub.f32 1.0, %v1827
    %v1829 = vunpack.c.l.bf16 %v1826
    %v1830 = vmul.f32 %v1828, %v1829
    %v1831 = vmul.f32 %v1827, %v1658
    %v1832 = vadd.f32 %v1830, %v1831
    %s1833 = scalar_lea.vmem [#allocation3], 60
    %v1834 = vld [vmem:[%s1833] sm:$0xff]
    %v1835 = vld [vmem:[%s1833 + $0x8] sm:$0xf]
    %v1836 = vpack.c.bf16 %v1753, %v1753
    %v1837 = vpack.c.bf16 %v1792, %v1792
    %v1838 = vpack.c.bf16 %v1794, %v1794
    %v1839 = vadd.bf16 %v1834, %v1836
    %v1840 = vxor.u32 %v1839, 2147516416
    %v1842 = vmul.bf16 %v1840, 1069105081
    %v1843 = vpow.bf16.pop %v1842
    %v1844 = vadd.bf16 %v1843, 1065369472
    %v1845 = vrcp.bf16.pop %v1844
    %v1846 = vmul.bf16 1065369472, %v1845
    %v1848 = vrot.slane %v1834, 4
    %v1850 = vadd.bf16 %v1848, %v1837
    %v1851 = vxor.u32 %v1850, 2147516416
    %v1853 = vmul.bf16 %v1851, 1069105081
    %v1854 = vpow.bf16.pop %v1853
    %v1855 = vadd.bf16 %v1854, 1065369472
    %v1856 = vrcp.bf16.pop %v1855
    %v1857 = vmul.bf16 1065369472, %v1856
    %v1858 = vadd.bf16 %v1838, %v85
    %v1859 = vmul.bf16 %v1846, %v1858
    %v1860 = vadd.bf16 %v1835, %v1859
    %v1861 = vtanh.bf16.pop %v1860
    %v1862 = vunpack.c.l.bf16 %v1857
    %v1863 = vsub.f32 1.0, %v1862
    %v1864 = vunpack.c.l.bf16 %v1861
    %v1865 = vmul.f32 %v1863, %v1864
    %v1866 = vmul.f32 %v1862, %v1664
    %v1867 = vadd.f32 %v1865, %v1866
    %s1868 = scalar_lea.vmem %s1, 16
    %v1869 = vld [vmem:[%s1868] sm:$0xff]
    %vm1870 = vcmp.gt.f32.partialorder %v1869, 0.0
    %s1871 = scalar_lea.vmem %s1, 40
    %v1872 = vld [vmem:[%s1871] sm:$0xff]
    %vm1873 = vcmp.gt.f32.partialorder %v1872, 0.0
    %v1874 = vsel %vm1870, 1, 0
    %1875 = vset.pattern.permute.xlu0 0
    %1876 = vperm.xlu0 %1875, %v1874
    %v1877 = vpop.permute.xlu0 %1876
    %vm1878 = vcmp.eq.s32.totalorder %v1877, 1
    %v1879 = vsel %vm1878, %v1832, %v1658
    %v1880 = vsel %vm1873, 1, 0
    %1881 = vset.pattern.permute.xlu0 0
    %1882 = vperm.xlu0 %1881, %v1880
    %v1883 = vpop.permute.xlu0 %1882
    %vm1884 = vcmp.eq.s32.totalorder %v1883, 1
    %v1885 = vsel %vm1884, %v1867, %v1664
    %v1886 = vsel %vm1878, %v1832, 0.0
    %v1887 = vpack.c.bf16 %v1886, %v1886
    %s1888 = scalar_lea.vmem [#allocation10], 8
    %1889 = vst [vmem:[%s1888] sm:$0xf] %v1887
    %v1890 = vsel %vm1884, %v1867, 0.0
    %v1891 = vpack.c.bf16 %v1890, %v1890
    %s1892 = scalar_lea.vmem [#allocation4], 20
    %1893 = vst [vmem:[%s1892] sm:$0xf] %v1891
    %v1894 = vpack.c.bf16 %v1879, %v1879
    %v1895 = vpack.c.bf16 %v1885, %v1885
    %1896 = vmatprep.subr.bf16.mxu0 %v1091
    %1897 = vmatpush1.bf16.msra.mxu0 %v1090
    %1898 = vmatprep.subr.bf16.mxu0 %v1085
    %1899 = vmatpush1.bf16.msra.mxu0 %v1084
    %1900 = vmatprep.subr.bf16.mxu0 %v1079
    %1901 = vmatpush1.bf16.msra.mxu0 %v1078
    %1902 = vmatprep.subr.bf16.mxu0 %v1073
    %1903 = vmatpush1.bf16.msra.mxu0 %v1072
    %1904 = vmatprep.subr.bf16.mxu0 %v1067
    %1905 = vmatpush1.bf16.msra.mxu0 %v1066
    %1906 = vmatprep.subr.bf16.mxu0 %v1061
    %1907 = vmatpush1.bf16.msra.mxu0 %v1060
    %1908 = vmatprep.subr.bf16.mxu0 %v1055
    %1909 = vmatpush1.bf16.msra.mxu0 %v1054
    %1910 = vmatprep.subr.bf16.mxu0 %v1049
    %1911 = vmatpush1.bf16.msra.mxu0 %v1048
    %1912 = vmatprep.subr.bf16.mxu0 %v1139
    %1913 = vmatpush2.bf16.msra.mxu0 %v1138
    %1914 = vmatprep.subr.bf16.mxu0 %v1133
    %1915 = vmatpush2.bf16.msra.mxu0 %v1132
    %1916 = vmatprep.subr.bf16.mxu0 %v1127
    %1917 = vmatpush2.bf16.msra.mxu0 %v1126
    %1918 = vmatprep.subr.bf16.mxu0 %v1121
    %1919 = vmatpush2.bf16.msra.mxu0 %v1120
    %1920 = vmatprep.subr.bf16.mxu0 %v1115
    %1921 = vmatpush2.bf16.msra.mxu0 %v1114
    %1922 = vmatprep.subr.bf16.mxu0 %v1109
    %1923 = vmatpush2.bf16.msra.mxu0 %v1108
    %1924 = vmatprep.subr.bf16.mxu0 %v1103
    %1925 = vmatpush2.bf16.msra.mxu0 %v1102
    %1926 = vmatprep.subr.bf16.mxu0 %v1097
    %1927 = vmatpush2.bf16.msra.mxu0 %v1096
    %1928 = vmatprep.mubr.bf16.mxu0 %v1895
    %1929 = vmatmul.mubr.bf16.gmra.mxu0 %v1894
    %v1930 = vpop.f32.mrf.mxu0
    %v1931 = vadd.f32 0.0, %v1930
    %v1932 = vpop.f32.mrf.mxu0
    %v1933 = vadd.f32 0.0, %v1932
    %v1934 = vpop.f32.mrf.mxu0
    %v1935 = vpop.f32.mrf.mxu0
    %1936 = vdwg.mxu0
    %1937 = vmatprep.subr.bf16.mxu0 %v1093
    %1938 = vmatpush1.bf16.msra.mxu0 %v1092
    %1939 = vmatprep.subr.bf16.mxu0 %v1087
    %1940 = vmatpush1.bf16.msra.mxu0 %v1086
    %1941 = vmatprep.subr.bf16.mxu0 %v1081
    %1942 = vmatpush1.bf16.msra.mxu0 %v1080
    %1943 = vmatprep.subr.bf16.mxu0 %v1075
    %1944 = vmatpush1.bf16.msra.mxu0 %v1074
    %1945 = vmatprep.subr.bf16.mxu0 %v1069
    %1946 = vmatpush1.bf16.msra.mxu0 %v1068
    %1947 = vmatprep.subr.bf16.mxu0 %v1063
    %1948 = vmatpush1.bf16.msra.mxu0 %v1062
    %1949 = vmatprep.subr.bf16.mxu0 %v1057
    %1950 = vmatpush1.bf16.msra.mxu0 %v1056
    %1951 = vmatprep.subr.bf16.mxu0 %v1051
    %1952 = vmatpush1.bf16.msra.mxu0 %v1050
    %1953 = vmatprep.subr.bf16.mxu0 %v1141
    %1954 = vmatpush2.bf16.msra.mxu0 %v1140
    %1955 = vmatprep.subr.bf16.mxu0 %v1135
    %1956 = vmatpush2.bf16.msra.mxu0 %v1134
    %1957 = vmatprep.subr.bf16.mxu0 %v1129
    %1958 = vmatpush2.bf16.msra.mxu0 %v1128
    %1959 = vmatprep.subr.bf16.mxu0 %v1123
    %1960 = vmatpush2.bf16.msra.mxu0 %v1122
    %1961 = vmatprep.subr.bf16.mxu0 %v1117
    %1962 = vmatpush2.bf16.msra.mxu0 %v1116
    %1963 = vmatprep.subr.bf16.mxu0 %v1111
    %1964 = vmatpush2.bf16.msra.mxu0 %v1110
    %1965 = vmatprep.subr.bf16.mxu0 %v1105
    %1966 = vmatpush2.bf16.msra.mxu0 %v1104
    %1967 = vmatprep.subr.bf16.mxu0 %v1099
    %1968 = vmatpush2.bf16.msra.mxu0 %v1098
    %1969 = vmatprep.mubr.bf16.mxu0 %v1895
    %1970 = vmatmul.mubr.bf16.gmra.mxu0 %v1894
    %v1971 = vpop.f32.mrf.mxu0
    %v1972 = vadd.f32 0.0, %v1971
    %v1973 = vpop.f32.mrf.mxu0
    %v1974 = vadd.f32 0.0, %v1973
    %v1975 = vpop.f32.mrf.mxu0
    %v1976 = vpop.f32.mrf.mxu0
    %1977 = vdwg.mxu0
    %1978 = vmatprep.subr.bf16.mxu0 %v1095
    %1979 = vmatpush1.bf16.msra.mxu0 %v1094
    %1980 = vmatprep.subr.bf16.mxu0 %v1089
    %1981 = vmatpush1.bf16.msra.mxu0 %v1088
    %1982 = vmatprep.subr.bf16.mxu0 %v1083
    %1983 = vmatpush1.bf16.msra.mxu0 %v1082
    %1984 = vmatprep.subr.bf16.mxu0 %v1077
    %1985 = vmatpush1.bf16.msra.mxu0 %v1076
    %1986 = vmatprep.subr.bf16.mxu0 %v1071
    %1987 = vmatpush1.bf16.msra.mxu0 %v1070
    %1988 = vmatprep.subr.bf16.mxu0 %v1065
    %1989 = vmatpush1.bf16.msra.mxu0 %v1064
    %1990 = vmatprep.subr.bf16.mxu0 %v1059
    %1991 = vmatpush1.bf16.msra.mxu0 %v1058
    %1992 = vmatprep.subr.bf16.mxu0 %v1053
    %1993 = vmatpush1.bf16.msra.mxu0 %v1052
    %1994 = vmatprep.subr.bf16.mxu0 %v1143
    %1995 = vmatpush2.bf16.msra.mxu0 %v1142
    %1996 = vmatprep.subr.bf16.mxu0 %v1137
    %1997 = vmatpush2.bf16.msra.mxu0 %v1136
    %1998 = vmatprep.subr.bf16.mxu0 %v1131
    %1999 = vmatpush2.bf16.msra.mxu0 %v1130
    %2000 = vmatprep.subr.bf16.mxu0 %v1125
    %2001 = vmatpush2.bf16.msra.mxu0 %v1124
    %2002 = vmatprep.subr.bf16.mxu0 %v1119
    %2003 = vmatpush2.bf16.msra.mxu0 %v1118
    %2004 = vmatprep.subr.bf16.mxu0 %v1113
    %2005 = vmatpush2.bf16.msra.mxu0 %v1112
    %2006 = vmatprep.subr.bf16.mxu0 %v1107
    %2007 = vmatpush2.bf16.msra.mxu0 %v1106
    %2008 = vmatprep.subr.bf16.mxu0 %v1101
    %2009 = vmatpush2.bf16.msra.mxu0 %v1100
    %2010 = vmatprep.mubr.bf16.mxu0 %v1895
    %2011 = vmatmul.mubr.bf16.gmra.mxu0 %v1894
    %v2012 = vpop.f32.mrf.mxu0
    %v2013 = vadd.f32 0.0, %v2012
    %v2014 = vpop.f32.mrf.mxu0
    %v2015 = vadd.f32 0.0, %v2014
    %v2016 = vpop.f32.mrf.mxu0
    %v2017 = vpop.f32.mrf.mxu0
    %2018 = vdwg.mxu0
    %s2019 = scalar_lea.vmem [#allocation2], 36
    %v2020 = vld [vmem:[%s2019] sm:$0xff]
    %v2021 = vld [vmem:[%s2019 + $0x8] sm:$0xf]
    %v2022 = vpack.c.bf16 %v1931, %v1931
    %v2023 = vpack.c.bf16 %v1933, %v1933
    %v2024 = vpack.c.bf16 %v1972, %v1972
    %v2025 = vadd.bf16 %v2020, %v2022
    %v2026 = vxor.u32 %v2025, 2147516416
    %v2028 = vmul.bf16 %v2026, 1069105081
    %v2029 = vpow.bf16.pop %v2028
    %v2030 = vadd.bf16 %v2029, 1065369472
    %v2031 = vrcp.bf16.pop %v2030
    %v2032 = vmul.bf16 1065369472, %v2031
    %v2034 = vrot.slane %v2020, 4
    %v2036 = vadd.bf16 %v2034, %v2023
    %v2037 = vxor.u32 %v2036, 2147516416
    %v2039 = vmul.bf16 %v2037, 1069105081
    %v2040 = vpow.bf16.pop %v2039
    %v2041 = vadd.bf16 %v2040, 1065369472
    %v2042 = vrcp.bf16.pop %v2041
    %v2043 = vmul.bf16 1065369472, %v2042
    %v2044 = vadd.bf16 %v2024, %v76
    %v2045 = vmul.bf16 %v2032, %v2044
    %v2046 = vadd.bf16 %v2021, %v2045
    %v2047 = vtanh.bf16.pop %v2046
    %v2048 = vunpack.c.l.bf16 %v2043
    %v2049 = vsub.f32 1.0, %v2048
    %v2050 = vunpack.c.l.bf16 %v2047
    %v2051 = vmul.f32 %v2049, %v2050
    %v2052 = vmul.f32 %v2048, %v1879
    %v2053 = vadd.f32 %v2051, %v2052
    %s2054 = scalar_lea.vmem [#allocation3], 48
    %v2055 = vld [vmem:[%s2054] sm:$0xff]
    %v2056 = vld [vmem:[%s2054 + $0x8] sm:$0xf]
    %v2057 = vpack.c.bf16 %v1974, %v1974
    %v2058 = vpack.c.bf16 %v2013, %v2013
    %v2059 = vpack.c.bf16 %v2015, %v2015
    %v2060 = vadd.bf16 %v2055, %v2057
    %v2061 = vxor.u32 %v2060, 2147516416
    %v2063 = vmul.bf16 %v2061, 1069105081
    %v2064 = vpow.bf16.pop %v2063
    %v2065 = vadd.bf16 %v2064, 1065369472
    %v2066 = vrcp.bf16.pop %v2065
    %v2067 = vmul.bf16 1065369472, %v2066
    %v2069 = vrot.slane %v2055, 4
    %v2071 = vadd.bf16 %v2069, %v2058
    %v2072 = vxor.u32 %v2071, 2147516416
    %v2074 = vmul.bf16 %v2072, 1069105081
    %v2075 = vpow.bf16.pop %v2074
    %v2076 = vadd.bf16 %v2075, 1065369472
    %v2077 = vrcp.bf16.pop %v2076
    %v2078 = vmul.bf16 1065369472, %v2077
    %v2079 = vadd.bf16 %v2059, %v85
    %v2080 = vmul.bf16 %v2067, %v2079
    %v2081 = vadd.bf16 %v2056, %v2080
    %v2082 = vtanh.bf16.pop %v2081
    %v2083 = vunpack.c.l.bf16 %v2078
    %v2084 = vsub.f32 1.0, %v2083
    %v2085 = vunpack.c.l.bf16 %v2082
    %v2086 = vmul.f32 %v2084, %v2085
    %v2087 = vmul.f32 %v2083, %v1885
    %v2088 = vadd.f32 %v2086, %v2087
    %s2089 = scalar_lea.vmem %s1, 24
    %v2090 = vld [vmem:[%s2089] sm:$0xff]
    %vm2091 = vcmp.gt.f32.partialorder %v2090, 0.0
    %s2092 = scalar_lea.vmem %s1, 32
    %v2093 = vld [vmem:[%s2092] sm:$0xff]
    %vm2094 = vcmp.gt.f32.partialorder %v2093, 0.0
    %v2095 = vsel %vm2091, 1, 0
    %2096 = vset.pattern.permute.xlu0 0
    %2097 = vperm.xlu0 %2096, %v2095
    %v2098 = vpop.permute.xlu0 %2097
    %vm2099 = vcmp.eq.s32.totalorder %v2098, 1
    %v2100 = vsel %vm2099, %v2053, %v1879
    %v2101 = vsel %vm2094, 1, 0
    %2102 = vset.pattern.permute.xlu0 0
    %2103 = vperm.xlu0 %2102, %v2101
    %v2104 = vpop.permute.xlu0 %2103
    %vm2105 = vcmp.eq.s32.totalorder %v2104, 1
    %v2106 = vsel %vm2105, %v2088, %v1885
    %v2107 = vsel %vm2099, %v2053, 0.0
    %v2108 = vpack.c.bf16 %v2107, %v2107
    %s2109 = scalar_lea.vmem [#allocation10], 12
    %2110 = vst [vmem:[%s2109] sm:$0xf] %v2108
    %v2111 = vsel %vm2105, %v2088, 0.0
    %v2112 = vpack.c.bf16 %v2111, %v2111
    %s2113 = scalar_lea.vmem [#allocation4], 16
    %2114 = vst [vmem:[%s2113] sm:$0xf] %v2112
    %v2115 = vpack.c.bf16 %v2100, %v2100
    %v2116 = vpack.c.bf16 %v2106, %v2106
    %2117 = vmatprep.subr.bf16.mxu0 %v1091
    %2118 = vmatpush1.bf16.msra.mxu0 %v1090
    %2119 = vmatprep.subr.bf16.mxu0 %v1085
    %2120 = vmatpush1.bf16.msra.mxu0 %v1084
    %2121 = vmatprep.subr.bf16.mxu0 %v1079
    %2122 = vmatpush1.bf16.msra.mxu0 %v1078
    %2123 = vmatprep.subr.bf16.mxu0 %v1073
    %2124 = vmatpush1.bf16.msra.mxu0 %v1072
    %2125 = vmatprep.subr.bf16.mxu0 %v1067
    %2126 = vmatpush1.bf16.msra.mxu0 %v1066
    %2127 = vmatprep.subr.bf16.mxu0 %v1061
    %2128 = vmatpush1.bf16.msra.mxu0 %v1060
    %2129 = vmatprep.subr.bf16.mxu0 %v1055
    %2130 = vmatpush1.bf16.msra.mxu0 %v1054
    %2131 = vmatprep.subr.bf16.mxu0 %v1049
    %2132 = vmatpush1.bf16.msra.mxu0 %v1048
    %2133 = vmatprep.subr.bf16.mxu0 %v1139
    %2134 = vmatpush2.bf16.msra.mxu0 %v1138
    %2135 = vmatprep.subr.bf16.mxu0 %v1133
    %2136 = vmatpush2.bf16.msra.mxu0 %v1132
    %2137 = vmatprep.subr.bf16.mxu0 %v1127
    %2138 = vmatpush2.bf16.msra.mxu0 %v1126
    %2139 = vmatprep.subr.bf16.mxu0 %v1121
    %2140 = vmatpush2.bf16.msra.mxu0 %v1120
    %2141 = vmatprep.subr.bf16.mxu0 %v1115
    %2142 = vmatpush2.bf16.msra.mxu0 %v1114
    %2143 = vmatprep.subr.bf16.mxu0 %v1109
    %2144 = vmatpush2.bf16.msra.mxu0 %v1108
    %2145 = vmatprep.subr.bf16.mxu0 %v1103
    %2146 = vmatpush2.bf16.msra.mxu0 %v1102
    %2147 = vmatprep.subr.bf16.mxu0 %v1097
    %2148 = vmatpush2.bf16.msra.mxu0 %v1096
    %2149 = vmatprep.mubr.bf16.mxu0 %v2116
    %2150 = vmatmul.mubr.bf16.gmra.mxu0 %v2115
    %v2151 = vpop.f32.mrf.mxu0
    %v2152 = vadd.f32 0.0, %v2151
    %v2153 = vpop.f32.mrf.mxu0
    %v2154 = vadd.f32 0.0, %v2153
    %v2155 = vpop.f32.mrf.mxu0
    %v2156 = vpop.f32.mrf.mxu0
    %2157 = vdwg.mxu0
    %2158 = vmatprep.subr.bf16.mxu0 %v1093
    %2159 = vmatpush1.bf16.msra.mxu0 %v1092
    %2160 = vmatprep.subr.bf16.mxu0 %v1087
    %2161 = vmatpush1.bf16.msra.mxu0 %v1086
    %2162 = vmatprep.subr.bf16.mxu0 %v1081
    %2163 = vmatpush1.bf16.msra.mxu0 %v1080
    %2164 = vmatprep.subr.bf16.mxu0 %v1075
    %2165 = vmatpush1.bf16.msra.mxu0 %v1074
    %2166 = vmatprep.subr.bf16.mxu0 %v1069
    %2167 = vmatpush1.bf16.msra.mxu0 %v1068
    %2168 = vmatprep.subr.bf16.mxu0 %v1063
    %2169 = vmatpush1.bf16.msra.mxu0 %v1062
    %2170 = vmatprep.subr.bf16.mxu0 %v1057
    %2171 = vmatpush1.bf16.msra.mxu0 %v1056
    %2172 = vmatprep.subr.bf16.mxu0 %v1051
    %2173 = vmatpush1.bf16.msra.mxu0 %v1050
    %2174 = vmatprep.subr.bf16.mxu0 %v1141
    %2175 = vmatpush2.bf16.msra.mxu0 %v1140
    %2176 = vmatprep.subr.bf16.mxu0 %v1135
    %2177 = vmatpush2.bf16.msra.mxu0 %v1134
    %2178 = vmatprep.subr.bf16.mxu0 %v1129
    %2179 = vmatpush2.bf16.msra.mxu0 %v1128
    %2180 = vmatprep.subr.bf16.mxu0 %v1123
    %2181 = vmatpush2.bf16.msra.mxu0 %v1122
    %2182 = vmatprep.subr.bf16.mxu0 %v1117
    %2183 = vmatpush2.bf16.msra.mxu0 %v1116
    %2184 = vmatprep.subr.bf16.mxu0 %v1111
    %2185 = vmatpush2.bf16.msra.mxu0 %v1110
    %2186 = vmatprep.subr.bf16.mxu0 %v1105
    %2187 = vmatpush2.bf16.msra.mxu0 %v1104
    %2188 = vmatprep.subr.bf16.mxu0 %v1099
    %2189 = vmatpush2.bf16.msra.mxu0 %v1098
    %2190 = vmatprep.mubr.bf16.mxu0 %v2116
    %2191 = vmatmul.mubr.bf16.gmra.mxu0 %v2115
    %v2192 = vpop.f32.mrf.mxu0
    %v2193 = vadd.f32 0.0, %v2192
    %v2194 = vpop.f32.mrf.mxu0
    %v2195 = vadd.f32 0.0, %v2194
    %v2196 = vpop.f32.mrf.mxu0
    %v2197 = vpop.f32.mrf.mxu0
    %2198 = vdwg.mxu0
    %2199 = vmatprep.subr.bf16.mxu0 %v1095
    %2200 = vmatpush1.bf16.msra.mxu0 %v1094
    %2201 = vmatprep.subr.bf16.mxu0 %v1089
    %2202 = vmatpush1.bf16.msra.mxu0 %v1088
    %2203 = vmatprep.subr.bf16.mxu0 %v1083
    %2204 = vmatpush1.bf16.msra.mxu0 %v1082
    %2205 = vmatprep.subr.bf16.mxu0 %v1077
    %2206 = vmatpush1.bf16.msra.mxu0 %v1076
    %2207 = vmatprep.subr.bf16.mxu0 %v1071
    %2208 = vmatpush1.bf16.msra.mxu0 %v1070
    %2209 = vmatprep.subr.bf16.mxu0 %v1065
    %2210 = vmatpush1.bf16.msra.mxu0 %v1064
    %2211 = vmatprep.subr.bf16.mxu0 %v1059
    %2212 = vmatpush1.bf16.msra.mxu0 %v1058
    %2213 = vmatprep.subr.bf16.mxu0 %v1053
    %2214 = vmatpush1.bf16.msra.mxu0 %v1052
    %2215 = vmatprep.subr.bf16.mxu0 %v1143
    %2216 = vmatpush2.bf16.msra.mxu0 %v1142
    %2217 = vmatprep.subr.bf16.mxu0 %v1137
    %2218 = vmatpush2.bf16.msra.mxu0 %v1136
    %2219 = vmatprep.subr.bf16.mxu0 %v1131
    %2220 = vmatpush2.bf16.msra.mxu0 %v1130
    %2221 = vmatprep.subr.bf16.mxu0 %v1125
    %2222 = vmatpush2.bf16.msra.mxu0 %v1124
    %2223 = vmatprep.subr.bf16.mxu0 %v1119
    %2224 = vmatpush2.bf16.msra.mxu0 %v1118
    %2225 = vmatprep.subr.bf16.mxu0 %v1113
    %2226 = vmatpush2.bf16.msra.mxu0 %v1112
    %2227 = vmatprep.subr.bf16.mxu0 %v1107
    %2228 = vmatpush2.bf16.msra.mxu0 %v1106
    %2229 = vmatprep.subr.bf16.mxu0 %v1101
    %2230 = vmatpush2.bf16.msra.mxu0 %v1100
    %2231 = vmatprep.mubr.bf16.mxu0 %v2116
    %2232 = vmatmul.mubr.bf16.gmra.mxu0 %v2115
    %v2233 = vpop.f32.mrf.mxu0
    %v2234 = vadd.f32 0.0, %v2233
    %v2235 = vpop.f32.mrf.mxu0
    %v2236 = vadd.f32 0.0, %v2235
    %v2237 = vpop.f32.mrf.mxu0
    %v2238 = vpop.f32.mrf.mxu0
    %2239 = vdwg.mxu0
    %s2240 = scalar_lea.vmem [#allocation2], 48
    %v2241 = vld [vmem:[%s2240] sm:$0xff]
    %v2242 = vld [vmem:[%s2240 + $0x8] sm:$0xf]
    %v2243 = vpack.c.bf16 %v2152, %v2152
    %v2244 = vpack.c.bf16 %v2154, %v2154
    %v2245 = vpack.c.bf16 %v2193, %v2193
    %v2246 = vadd.bf16 %v2241, %v2243
    %v2247 = vxor.u32 %v2246, 2147516416
    %v2249 = vmul.bf16 %v2247, 1069105081
    %v2250 = vpow.bf16.pop %v2249
    %v2251 = vadd.bf16 %v2250, 1065369472
    %v2252 = vrcp.bf16.pop %v2251
    %v2253 = vmul.bf16 1065369472, %v2252
    %v2255 = vrot.slane %v2241, 4
    %v2257 = vadd.bf16 %v2255, %v2244
    %v2258 = vxor.u32 %v2257, 2147516416
    %v2260 = vmul.bf16 %v2258, 1069105081
    %v2261 = vpow.bf16.pop %v2260
    %v2262 = vadd.bf16 %v2261, 1065369472
    %v2263 = vrcp.bf16.pop %v2262
    %v2264 = vmul.bf16 1065369472, %v2263
    %v2265 = vadd.bf16 %v2245, %v76
    %v2266 = vmul.bf16 %v2253, %v2265
    %v2267 = vadd.bf16 %v2242, %v2266
    %v2268 = vtanh.bf16.pop %v2267
    %v2269 = vunpack.c.l.bf16 %v2264
    %v2270 = vsub.f32 1.0, %v2269
    %v2271 = vunpack.c.l.bf16 %v2268
    %v2272 = vmul.f32 %v2270, %v2271
    %v2273 = vmul.f32 %v2269, %v2100
    %v2274 = vadd.f32 %v2272, %v2273
    %s2275 = scalar_lea.vmem [#allocation3], 36
    %v2276 = vld [vmem:[%s2275] sm:$0xff]
    %v2277 = vld [vmem:[%s2275 + $0x8] sm:$0xf]
    %v2278 = vpack.c.bf16 %v2195, %v2195
    %v2279 = vpack.c.bf16 %v2234, %v2234
    %v2280 = vpack.c.bf16 %v2236, %v2236
    %v2281 = vadd.bf16 %v2276, %v2278
    %v2282 = vxor.u32 %v2281, 2147516416
    %v2284 = vmul.bf16 %v2282, 1069105081
    %v2285 = vpow.bf16.pop %v2284
    %v2286 = vadd.bf16 %v2285, 1065369472
    %v2287 = vrcp.bf16.pop %v2286
    %v2288 = vmul.bf16 1065369472, %v2287
    %v2290 = vrot.slane %v2276, 4
    %v2292 = vadd.bf16 %v2290, %v2279
    %v2293 = vxor.u32 %v2292, 2147516416
    %v2295 = vmul.bf16 %v2293, 1069105081
    %v2296 = vpow.bf16.pop %v2295
    %v2297 = vadd.bf16 %v2296, 1065369472
    %v2298 = vrcp.bf16.pop %v2297
    %v2299 = vmul.bf16 1065369472, %v2298
    %v2300 = vadd.bf16 %v2280, %v85
    %v2301 = vmul.bf16 %v2288, %v2300
    %v2302 = vadd.bf16 %v2277, %v2301
    %v2303 = vtanh.bf16.pop %v2302
    %v2304 = vunpack.c.l.bf16 %v2299
    %v2305 = vsub.f32 1.0, %v2304
    %v2306 = vunpack.c.l.bf16 %v2303
    %v2307 = vmul.f32 %v2305, %v2306
    %v2308 = vmul.f32 %v2304, %v2106
    %v2309 = vadd.f32 %v2307, %v2308
    %v2310 = vld [vmem:[%s2092] sm:$0xff]
    %vm2311 = vcmp.gt.f32.partialorder %v2310, 0.0
    %v2312 = vld [vmem:[%s2089] sm:$0xff]
    %vm2313 = vcmp.gt.f32.partialorder %v2312, 0.0
    %v2314 = vsel %vm2311, 1, 0
    %2315 = vset.pattern.permute.xlu0 0
    %2316 = vperm.xlu0 %2315, %v2314
    %v2317 = vpop.permute.xlu0 %2316
    %vm2318 = vcmp.eq.s32.totalorder %v2317, 1
    %v2319 = vsel %vm2318, %v2274, %v2100
    %v2320 = vsel %vm2313, 1, 0
    %2321 = vset.pattern.permute.xlu0 0
    %2322 = vperm.xlu0 %2321, %v2320
    %v2323 = vpop.permute.xlu0 %2322
    %vm2324 = vcmp.eq.s32.totalorder %v2323, 1
    %v2325 = vsel %vm2324, %v2309, %v2106
    %v2326 = vsel %vm2318, %v2274, 0.0
    %v2327 = vpack.c.bf16 %v2326, %v2326
    %s2328 = scalar_lea.vmem [#allocation10], 16
    %2329 = vst [vmem:[%s2328] sm:$0xf] %v2327
    %v2330 = vsel %vm2324, %v2309, 0.0
    %v2331 = vpack.c.bf16 %v2330, %v2330
    %s2332 = scalar_lea.vmem [#allocation4], 12
    %2333 = vst [vmem:[%s2332] sm:$0xf] %v2331
    %v2334 = vpack.c.bf16 %v2319, %v2319
    %v2335 = vpack.c.bf16 %v2325, %v2325
    %2336 = vmatprep.subr.bf16.mxu0 %v1091
    %2337 = vmatpush1.bf16.msra.mxu0 %v1090
    %2338 = vmatprep.subr.bf16.mxu0 %v1085
    %2339 = vmatpush1.bf16.msra.mxu0 %v1084
    %2340 = vmatprep.subr.bf16.mxu0 %v1079
    %2341 = vmatpush1.bf16.msra.mxu0 %v1078
    %2342 = vmatprep.subr.bf16.mxu0 %v1073
    %2343 = vmatpush1.bf16.msra.mxu0 %v1072
    %2344 = vmatprep.subr.bf16.mxu0 %v1067
    %2345 = vmatpush1.bf16.msra.mxu0 %v1066
    %2346 = vmatprep.subr.bf16.mxu0 %v1061
    %2347 = vmatpush1.bf16.msra.mxu0 %v1060
    %2348 = vmatprep.subr.bf16.mxu0 %v1055
    %2349 = vmatpush1.bf16.msra.mxu0 %v1054
    %2350 = vmatprep.subr.bf16.mxu0 %v1049
    %2351 = vmatpush1.bf16.msra.mxu0 %v1048
    %2352 = vmatprep.subr.bf16.mxu0 %v1139
    %2353 = vmatpush2.bf16.msra.mxu0 %v1138
    %2354 = vmatprep.subr.bf16.mxu0 %v1133
    %2355 = vmatpush2.bf16.msra.mxu0 %v1132
    %2356 = vmatprep.subr.bf16.mxu0 %v1127
    %2357 = vmatpush2.bf16.msra.mxu0 %v1126
    %2358 = vmatprep.subr.bf16.mxu0 %v1121
    %2359 = vmatpush2.bf16.msra.mxu0 %v1120
    %2360 = vmatprep.subr.bf16.mxu0 %v1115
    %2361 = vmatpush2.bf16.msra.mxu0 %v1114
    %2362 = vmatprep.subr.bf16.mxu0 %v1109
    %2363 = vmatpush2.bf16.msra.mxu0 %v1108
    %2364 = vmatprep.subr.bf16.mxu0 %v1103
    %2365 = vmatpush2.bf16.msra.mxu0 %v1102
    %2366 = vmatprep.subr.bf16.mxu0 %v1097
    %2367 = vmatpush2.bf16.msra.mxu0 %v1096
    %2368 = vmatprep.mubr.bf16.mxu0 %v2335
    %2369 = vmatmul.mubr.bf16.gmra.mxu0 %v2334
    %v2370 = vpop.f32.mrf.mxu0
    %v2371 = vadd.f32 0.0, %v2370
    %v2372 = vpop.f32.mrf.mxu0
    %v2373 = vadd.f32 0.0, %v2372
    %v2374 = vpop.f32.mrf.mxu0
    %v2375 = vpop.f32.mrf.mxu0
    %2376 = vdwg.mxu0
    %2377 = vmatprep.subr.bf16.mxu0 %v1093
    %2378 = vmatpush1.bf16.msra.mxu0 %v1092
    %2379 = vmatprep.subr.bf16.mxu0 %v1087
    %2380 = vmatpush1.bf16.msra.mxu0 %v1086
    %2381 = vmatprep.subr.bf16.mxu0 %v1081
    %2382 = vmatpush1.bf16.msra.mxu0 %v1080
    %2383 = vmatprep.subr.bf16.mxu0 %v1075
    %2384 = vmatpush1.bf16.msra.mxu0 %v1074
    %2385 = vmatprep.subr.bf16.mxu0 %v1069
    %2386 = vmatpush1.bf16.msra.mxu0 %v1068
    %2387 = vmatprep.subr.bf16.mxu0 %v1063
    %2388 = vmatpush1.bf16.msra.mxu0 %v1062
    %2389 = vmatprep.subr.bf16.mxu0 %v1057
    %2390 = vmatpush1.bf16.msra.mxu0 %v1056
    %2391 = vmatprep.subr.bf16.mxu0 %v1051
    %2392 = vmatpush1.bf16.msra.mxu0 %v1050
    %2393 = vmatprep.subr.bf16.mxu0 %v1141
    %2394 = vmatpush2.bf16.msra.mxu0 %v1140
    %2395 = vmatprep.subr.bf16.mxu0 %v1135
    %2396 = vmatpush2.bf16.msra.mxu0 %v1134
    %2397 = vmatprep.subr.bf16.mxu0 %v1129
    %2398 = vmatpush2.bf16.msra.mxu0 %v1128
    %2399 = vmatprep.subr.bf16.mxu0 %v1123
    %2400 = vmatpush2.bf16.msra.mxu0 %v1122
    %2401 = vmatprep.subr.bf16.mxu0 %v1117
    %2402 = vmatpush2.bf16.msra.mxu0 %v1116
    %2403 = vmatprep.subr.bf16.mxu0 %v1111
    %2404 = vmatpush2.bf16.msra.mxu0 %v1110
    %2405 = vmatprep.subr.bf16.mxu0 %v1105
    %2406 = vmatpush2.bf16.msra.mxu0 %v1104
    %2407 = vmatprep.subr.bf16.mxu0 %v1099
    %2408 = vmatpush2.bf16.msra.mxu0 %v1098
    %2409 = vmatprep.mubr.bf16.mxu0 %v2335
    %2410 = vmatmul.mubr.bf16.gmra.mxu0 %v2334
    %v2411 = vpop.f32.mrf.mxu0
    %v2412 = vadd.f32 0.0, %v2411
    %v2413 = vpop.f32.mrf.mxu0
    %v2414 = vadd.f32 0.0, %v2413
    %v2415 = vpop.f32.mrf.mxu0
    %v2416 = vpop.f32.mrf.mxu0
    %2417 = vdwg.mxu0
    %2418 = vmatprep.subr.bf16.mxu0 %v1095
    %2419 = vmatpush1.bf16.msra.mxu0 %v1094
    %2420 = vmatprep.subr.bf16.mxu0 %v1089
    %2421 = vmatpush1.bf16.msra.mxu0 %v1088
    %2422 = vmatprep.subr.bf16.mxu0 %v1083
    %2423 = vmatpush1.bf16.msra.mxu0 %v1082
    %2424 = vmatprep.subr.bf16.mxu0 %v1077
    %2425 = vmatpush1.bf16.msra.mxu0 %v1076
    %2426 = vmatprep.subr.bf16.mxu0 %v1071
    %2427 = vmatpush1.bf16.msra.mxu0 %v1070
    %2428 = vmatprep.subr.bf16.mxu0 %v1065
    %2429 = vmatpush1.bf16.msra.mxu0 %v1064
    %2430 = vmatprep.subr.bf16.mxu0 %v1059
    %2431 = vmatpush1.bf16.msra.mxu0 %v1058
    %2432 = vmatprep.subr.bf16.mxu0 %v1053
    %2433 = vmatpush1.bf16.msra.mxu0 %v1052
    %2434 = vmatprep.subr.bf16.mxu0 %v1143
    %2435 = vmatpush2.bf16.msra.mxu0 %v1142
    %2436 = vmatprep.subr.bf16.mxu0 %v1137
    %2437 = vmatpush2.bf16.msra.mxu0 %v1136
    %2438 = vmatprep.subr.bf16.mxu0 %v1131
    %2439 = vmatpush2.bf16.msra.mxu0 %v1130
    %2440 = vmatprep.subr.bf16.mxu0 %v1125
    %2441 = vmatpush2.bf16.msra.mxu0 %v1124
    %2442 = vmatprep.subr.bf16.mxu0 %v1119
    %2443 = vmatpush2.bf16.msra.mxu0 %v1118
    %2444 = vmatprep.subr.bf16.mxu0 %v1113
    %2445 = vmatpush2.bf16.msra.mxu0 %v1112
    %2446 = vmatprep.subr.bf16.mxu0 %v1107
    %2447 = vmatpush2.bf16.msra.mxu0 %v1106
    %2448 = vmatprep.subr.bf16.mxu0 %v1101
    %2449 = vmatpush2.bf16.msra.mxu0 %v1100
    %2450 = vmatprep.mubr.bf16.mxu0 %v2335
    %2451 = vmatmul.mubr.bf16.gmra.mxu0 %v2334
    %v2452 = vpop.f32.mrf.mxu0
    %v2453 = vadd.f32 0.0, %v2452
    %v2454 = vpop.f32.mrf.mxu0
    %v2455 = vadd.f32 0.0, %v2454
    %v2456 = vpop.f32.mrf.mxu0
    %v2457 = vpop.f32.mrf.mxu0
    %2458 = vdwg.mxu0
    %s2459 = scalar_lea.vmem [#allocation2], 60
    %v2460 = vld [vmem:[%s2459] sm:$0xff]
    %v2461 = vld [vmem:[%s2459 + $0x8] sm:$0xf]
    %v2462 = vpack.c.bf16 %v2371, %v2371
    %v2463 = vpack.c.bf16 %v2373, %v2373
    %v2464 = vpack.c.bf16 %v2412, %v2412
    %v2465 = vadd.bf16 %v2460, %v2462
    %v2466 = vxor.u32 %v2465, 2147516416
    %v2468 = vmul.bf16 %v2466, 1069105081
    %v2469 = vpow.bf16.pop %v2468
    %v2470 = vadd.bf16 %v2469, 1065369472
    %v2471 = vrcp.bf16.pop %v2470
    %v2472 = vmul.bf16 1065369472, %v2471
    %v2474 = vrot.slane %v2460, 4
    %v2476 = vadd.bf16 %v2474, %v2463
    %v2477 = vxor.u32 %v2476, 2147516416
    %v2479 = vmul.bf16 %v2477, 1069105081
    %v2480 = vpow.bf16.pop %v2479
    %v2481 = vadd.bf16 %v2480, 1065369472
    %v2482 = vrcp.bf16.pop %v2481
    %v2483 = vmul.bf16 1065369472, %v2482
    %v2484 = vadd.bf16 %v2464, %v76
    %v2485 = vmul.bf16 %v2472, %v2484
    %v2486 = vadd.bf16 %v2461, %v2485
    %v2487 = vtanh.bf16.pop %v2486
    %v2488 = vunpack.c.l.bf16 %v2483
    %v2489 = vsub.f32 1.0, %v2488
    %v2490 = vunpack.c.l.bf16 %v2487
    %v2491 = vmul.f32 %v2489, %v2490
    %v2492 = vmul.f32 %v2488, %v2319
    %v2493 = vadd.f32 %v2491, %v2492
    %s2494 = scalar_lea.vmem [#allocation3], 24
    %v2495 = vld [vmem:[%s2494] sm:$0xff]
    %v2496 = vld [vmem:[%s2494 + $0x8] sm:$0xf]
    %v2497 = vpack.c.bf16 %v2414, %v2414
    %v2498 = vpack.c.bf16 %v2453, %v2453
    %v2499 = vpack.c.bf16 %v2455, %v2455
    %v2500 = vadd.bf16 %v2495, %v2497
    %v2501 = vxor.u32 %v2500, 2147516416
    %v2503 = vmul.bf16 %v2501, 1069105081
    %v2504 = vpow.bf16.pop %v2503
    %v2505 = vadd.bf16 %v2504, 1065369472
    %v2506 = vrcp.bf16.pop %v2505
    %v2507 = vmul.bf16 1065369472, %v2506
    %v2509 = vrot.slane %v2495, 4
    %v2511 = vadd.bf16 %v2509, %v2498
    %v2512 = vxor.u32 %v2511, 2147516416
    %v2514 = vmul.bf16 %v2512, 1069105081
    %v2515 = vpow.bf16.pop %v2514
    %v2516 = vadd.bf16 %v2515, 1065369472
    %v2517 = vrcp.bf16.pop %v2516
    %v2518 = vmul.bf16 1065369472, %v2517
    %v2519 = vadd.bf16 %v2499, %v85
    %v2520 = vmul.bf16 %v2507, %v2519
    %v2521 = vadd.bf16 %v2496, %v2520
    %v2522 = vtanh.bf16.pop %v2521
    %v2523 = vunpack.c.l.bf16 %v2518
    %v2524 = vsub.f32 1.0, %v2523
    %v2525 = vunpack.c.l.bf16 %v2522
    %v2526 = vmul.f32 %v2524, %v2525
    %v2527 = vmul.f32 %v2523, %v2325
    %v2528 = vadd.f32 %v2526, %v2527
    %v2529 = vld [vmem:[%s1871] sm:$0xff]
    %vm2530 = vcmp.gt.f32.partialorder %v2529, 0.0
    %v2531 = vld [vmem:[%s1868] sm:$0xff]
    %vm2532 = vcmp.gt.f32.partialorder %v2531, 0.0
    %v2533 = vsel %vm2530, 1, 0
    %2534 = vset.pattern.permute.xlu0 0
    %2535 = vperm.xlu0 %2534, %v2533
    %v2536 = vpop.permute.xlu0 %2535
    %vm2537 = vcmp.eq.s32.totalorder %v2536, 1
    %v2538 = vsel %vm2537, %v2493, %v2319
    %v2539 = vsel %vm2532, 1, 0
    %2540 = vset.pattern.permute.xlu0 0
    %2541 = vperm.xlu0 %2540, %v2539
    %v2542 = vpop.permute.xlu0 %2541
    %vm2543 = vcmp.eq.s32.totalorder %v2542, 1
    %v2544 = vsel %vm2543, %v2528, %v2325
    %v2545 = vsel %vm2537, %v2493, 0.0
    %v2546 = vpack.c.bf16 %v2545, %v2545
    %s2547 = scalar_lea.vmem [#allocation10], 20
    %2548 = vst [vmem:[%s2547] sm:$0xf] %v2546
    %v2549 = vsel %vm2543, %v2528, 0.0
    %v2550 = vpack.c.bf16 %v2549, %v2549
    %s2551 = scalar_lea.vmem [#allocation4], 8
    %2552 = vst [vmem:[%s2551] sm:$0xf] %v2550
    %v2553 = vpack.c.bf16 %v2538, %v2538
    %v2554 = vpack.c.bf16 %v2544, %v2544
    %2555 = vmatprep.subr.bf16.mxu0 %v1091
    %2556 = vmatpush1.bf16.msra.mxu0 %v1090
    %2557 = vmatprep.subr.bf16.mxu0 %v1085
    %2558 = vmatpush1.bf16.msra.mxu0 %v1084
    %2559 = vmatprep.subr.bf16.mxu0 %v1079
    %2560 = vmatpush1.bf16.msra.mxu0 %v1078
    %2561 = vmatprep.subr.bf16.mxu0 %v1073
    %2562 = vmatpush1.bf16.msra.mxu0 %v1072
    %2563 = vmatprep.subr.bf16.mxu0 %v1067
    %2564 = vmatpush1.bf16.msra.mxu0 %v1066
    %2565 = vmatprep.subr.bf16.mxu0 %v1061
    %2566 = vmatpush1.bf16.msra.mxu0 %v1060
    %2567 = vmatprep.subr.bf16.mxu0 %v1055
    %2568 = vmatpush1.bf16.msra.mxu0 %v1054
    %2569 = vmatprep.subr.bf16.mxu0 %v1049
    %2570 = vmatpush1.bf16.msra.mxu0 %v1048
    %2571 = vmatprep.subr.bf16.mxu0 %v1139
    %2572 = vmatpush2.bf16.msra.mxu0 %v1138
    %2573 = vmatprep.subr.bf16.mxu0 %v1133
    %2574 = vmatpush2.bf16.msra.mxu0 %v1132
    %2575 = vmatprep.subr.bf16.mxu0 %v1127
    %2576 = vmatpush2.bf16.msra.mxu0 %v1126
    %2577 = vmatprep.subr.bf16.mxu0 %v1121
    %2578 = vmatpush2.bf16.msra.mxu0 %v1120
    %2579 = vmatprep.subr.bf16.mxu0 %v1115
    %2580 = vmatpush2.bf16.msra.mxu0 %v1114
    %2581 = vmatprep.subr.bf16.mxu0 %v1109
    %2582 = vmatpush2.bf16.msra.mxu0 %v1108
    %2583 = vmatprep.subr.bf16.mxu0 %v1103
    %2584 = vmatpush2.bf16.msra.mxu0 %v1102
    %2585 = vmatprep.subr.bf16.mxu0 %v1097
    %2586 = vmatpush2.bf16.msra.mxu0 %v1096
    %2587 = vmatprep.mubr.bf16.mxu0 %v2554
    %2588 = vmatmul.mubr.bf16.gmra.mxu0 %v2553
    %v2589 = vpop.f32.mrf.mxu0
    %v2590 = vadd.f32 0.0, %v2589
    %v2591 = vpop.f32.mrf.mxu0
    %v2592 = vadd.f32 0.0, %v2591
    %v2593 = vpop.f32.mrf.mxu0
    %v2594 = vpop.f32.mrf.mxu0
    %2595 = vdwg.mxu0
    %2596 = vmatprep.subr.bf16.mxu0 %v1093
    %2597 = vmatpush1.bf16.msra.mxu0 %v1092
    %2598 = vmatprep.subr.bf16.mxu0 %v1087
    %2599 = vmatpush1.bf16.msra.mxu0 %v1086
    %2600 = vmatprep.subr.bf16.mxu0 %v1081
    %2601 = vmatpush1.bf16.msra.mxu0 %v1080
    %2602 = vmatprep.subr.bf16.mxu0 %v1075
    %2603 = vmatpush1.bf16.msra.mxu0 %v1074
    %2604 = vmatprep.subr.bf16.mxu0 %v1069
    %2605 = vmatpush1.bf16.msra.mxu0 %v1068
    %2606 = vmatprep.subr.bf16.mxu0 %v1063
    %2607 = vmatpush1.bf16.msra.mxu0 %v1062
    %2608 = vmatprep.subr.bf16.mxu0 %v1057
    %2609 = vmatpush1.bf16.msra.mxu0 %v1056
    %2610 = vmatprep.subr.bf16.mxu0 %v1051
    %2611 = vmatpush1.bf16.msra.mxu0 %v1050
    %2612 = vmatprep.subr.bf16.mxu0 %v1141
    %2613 = vmatpush2.bf16.msra.mxu0 %v1140
    %2614 = vmatprep.subr.bf16.mxu0 %v1135
    %2615 = vmatpush2.bf16.msra.mxu0 %v1134
    %2616 = vmatprep.subr.bf16.mxu0 %v1129
    %2617 = vmatpush2.bf16.msra.mxu0 %v1128
    %2618 = vmatprep.subr.bf16.mxu0 %v1123
    %2619 = vmatpush2.bf16.msra.mxu0 %v1122
    %2620 = vmatprep.subr.bf16.mxu0 %v1117
    %2621 = vmatpush2.bf16.msra.mxu0 %v1116
    %2622 = vmatprep.subr.bf16.mxu0 %v1111
    %2623 = vmatpush2.bf16.msra.mxu0 %v1110
    %2624 = vmatprep.subr.bf16.mxu0 %v1105
    %2625 = vmatpush2.bf16.msra.mxu0 %v1104
    %2626 = vmatprep.subr.bf16.mxu0 %v1099
    %2627 = vmatpush2.bf16.msra.mxu0 %v1098
    %2628 = vmatprep.mubr.bf16.mxu0 %v2554
    %2629 = vmatmul.mubr.bf16.gmra.mxu0 %v2553
    %v2630 = vpop.f32.mrf.mxu0
    %v2631 = vadd.f32 0.0, %v2630
    %v2632 = vpop.f32.mrf.mxu0
    %v2633 = vadd.f32 0.0, %v2632
    %v2634 = vpop.f32.mrf.mxu0
    %v2635 = vpop.f32.mrf.mxu0
    %2636 = vdwg.mxu0
    %2637 = vmatprep.subr.bf16.mxu0 %v1095
    %2638 = vmatpush1.bf16.msra.mxu0 %v1094
    %2639 = vmatprep.subr.bf16.mxu0 %v1089
    %2640 = vmatpush1.bf16.msra.mxu0 %v1088
    %2641 = vmatprep.subr.bf16.mxu0 %v1083
    %2642 = vmatpush1.bf16.msra.mxu0 %v1082
    %2643 = vmatprep.subr.bf16.mxu0 %v1077
    %2644 = vmatpush1.bf16.msra.mxu0 %v1076
    %2645 = vmatprep.subr.bf16.mxu0 %v1071
    %2646 = vmatpush1.bf16.msra.mxu0 %v1070
    %2647 = vmatprep.subr.bf16.mxu0 %v1065
    %2648 = vmatpush1.bf16.msra.mxu0 %v1064
    %2649 = vmatprep.subr.bf16.mxu0 %v1059
    %2650 = vmatpush1.bf16.msra.mxu0 %v1058
    %2651 = vmatprep.subr.bf16.mxu0 %v1053
    %2652 = vmatpush1.bf16.msra.mxu0 %v1052
    %2653 = vmatprep.subr.bf16.mxu0 %v1143
    %2654 = vmatpush2.bf16.msra.mxu0 %v1142
    %2655 = vmatprep.subr.bf16.mxu0 %v1137
    %2656 = vmatpush2.bf16.msra.mxu0 %v1136
    %2657 = vmatprep.subr.bf16.mxu0 %v1131
    %2658 = vmatpush2.bf16.msra.mxu0 %v1130
    %2659 = vmatprep.subr.bf16.mxu0 %v1125
    %2660 = vmatpush2.bf16.msra.mxu0 %v1124
    %2661 = vmatprep.subr.bf16.mxu0 %v1119
    %2662 = vmatpush2.bf16.msra.mxu0 %v1118
    %2663 = vmatprep.subr.bf16.mxu0 %v1113
    %2664 = vmatpush2.bf16.msra.mxu0 %v1112
    %2665 = vmatprep.subr.bf16.mxu0 %v1107
    %2666 = vmatpush2.bf16.msra.mxu0 %v1106
    %2667 = vmatprep.subr.bf16.mxu0 %v1101
    %2668 = vmatpush2.bf16.msra.mxu0 %v1100
    %2669 = vmatprep.mubr.bf16.mxu0 %v2554
    %2670 = vmatmul.mubr.bf16.gmra.mxu0 %v2553
    %v2671 = vpop.f32.mrf.mxu0
    %v2672 = vadd.f32 0.0, %v2671
    %v2673 = vpop.f32.mrf.mxu0
    %v2674 = vadd.f32 0.0, %v2673
    %v2675 = vpop.f32.mrf.mxu0
    %v2676 = vpop.f32.mrf.mxu0
    %2677 = vdwg.mxu0
    %s2678 = scalar_lea.vmem [#allocation2], 72
    %v2679 = vld [vmem:[%s2678] sm:$0xff]
    %v2680 = vld [vmem:[%s2678 + $0x8] sm:$0xf]
    %v2681 = vpack.c.bf16 %v2590, %v2590
    %v2682 = vpack.c.bf16 %v2592, %v2592
    %v2683 = vpack.c.bf16 %v2631, %v2631
    %v2684 = vadd.bf16 %v2679, %v2681
    %v2685 = vxor.u32 %v2684, 2147516416
    %v2687 = vmul.bf16 %v2685, 1069105081
    %v2688 = vpow.bf16.pop %v2687
    %v2689 = vadd.bf16 %v2688, 1065369472
    %v2690 = vrcp.bf16.pop %v2689
    %v2691 = vmul.bf16 1065369472, %v2690
    %v2693 = vrot.slane %v2679, 4
    %v2695 = vadd.bf16 %v2693, %v2682
    %v2696 = vxor.u32 %v2695, 2147516416
    %v2698 = vmul.bf16 %v2696, 1069105081
    %v2699 = vpow.bf16.pop %v2698
    %v2700 = vadd.bf16 %v2699, 1065369472
    %v2701 = vrcp.bf16.pop %v2700
    %v2702 = vmul.bf16 1065369472, %v2701
    %v2703 = vadd.bf16 %v2683, %v76
    %v2704 = vmul.bf16 %v2691, %v2703
    %v2705 = vadd.bf16 %v2680, %v2704
    %v2706 = vtanh.bf16.pop %v2705
    %v2707 = vunpack.c.l.bf16 %v2702
    %v2708 = vsub.f32 1.0, %v2707
    %v2709 = vunpack.c.l.bf16 %v2706
    %v2710 = vmul.f32 %v2708, %v2709
    %v2711 = vmul.f32 %v2707, %v2538
    %v2712 = vadd.f32 %v2710, %v2711
    %s2713 = scalar_lea.vmem [#allocation3], 12
    %v2714 = vld [vmem:[%s2713] sm:$0xff]
    %v2715 = vld [vmem:[%s2713 + $0x8] sm:$0xf]
    %v2716 = vpack.c.bf16 %v2633, %v2633
    %v2717 = vpack.c.bf16 %v2672, %v2672
    %v2718 = vpack.c.bf16 %v2674, %v2674
    %v2719 = vadd.bf16 %v2714, %v2716
    %v2720 = vxor.u32 %v2719, 2147516416
    %v2722 = vmul.bf16 %v2720, 1069105081
    %v2723 = vpow.bf16.pop %v2722
    %v2724 = vadd.bf16 %v2723, 1065369472
    %v2725 = vrcp.bf16.pop %v2724
    %v2726 = vmul.bf16 1065369472, %v2725
    %v2728 = vrot.slane %v2714, 4
    %v2730 = vadd.bf16 %v2728, %v2717
    %v2731 = vxor.u32 %v2730, 2147516416
    %v2733 = vmul.bf16 %v2731, 1069105081
    %v2734 = vpow.bf16.pop %v2733
    %v2735 = vadd.bf16 %v2734, 1065369472
    %v2736 = vrcp.bf16.pop %v2735
    %v2737 = vmul.bf16 1065369472, %v2736
    %v2738 = vadd.bf16 %v2718, %v85
    %v2739 = vmul.bf16 %v2726, %v2738
    %v2740 = vadd.bf16 %v2715, %v2739
    %v2741 = vtanh.bf16.pop %v2740
    %v2742 = vunpack.c.l.bf16 %v2737
    %v2743 = vsub.f32 1.0, %v2742
    %v2744 = vunpack.c.l.bf16 %v2741
    %v2745 = vmul.f32 %v2743, %v2744
    %v2746 = vmul.f32 %v2742, %v2544
    %v2747 = vadd.f32 %v2745, %v2746
    %v2748 = vld [vmem:[%s1650] sm:$0xff]
    %vm2749 = vcmp.gt.f32.partialorder %v2748, 0.0
    %v2750 = vld [vmem:[%s1647] sm:$0xff]
    %vm2751 = vcmp.gt.f32.partialorder %v2750, 0.0
    %v2752 = vsel %vm2749, 1, 0
    %2753 = vset.pattern.permute.xlu0 0
    %2754 = vperm.xlu0 %2753, %v2752
    %v2755 = vpop.permute.xlu0 %2754
    %vm2756 = vcmp.eq.s32.totalorder %v2755, 1
    %v2757 = vsel %vm2756, %v2712, %v2538
    %v2758 = vsel %vm2751, 1, 0
    %2759 = vset.pattern.permute.xlu0 0
    %2760 = vperm.xlu0 %2759, %v2758
    %v2761 = vpop.permute.xlu0 %2760
    %vm2762 = vcmp.eq.s32.totalorder %v2761, 1
    %v2763 = vsel %vm2762, %v2747, %v2544
    %v2764 = vsel %vm2756, %v2712, 0.0
    %v2765 = vpack.c.bf16 %v2764, %v2764
    %s2766 = scalar_lea.vmem [#allocation10], 24
    %2767 = vst [vmem:[%s2766] sm:$0xf] %v2765
    %v2768 = vsel %vm2762, %v2747, 0.0
    %v2769 = vpack.c.bf16 %v2768, %v2768
    %s2770 = scalar_lea.vmem [#allocation4], 4
    %2771 = vst [vmem:[%s2770] sm:$0xf] %v2769
    %v2772 = vpack.c.bf16 %v2757, %v2757
    %v2773 = vpack.c.bf16 %v2763, %v2763
    %2774 = vmatprep.subr.bf16.mxu0 %v1091
    %2775 = vmatpush1.bf16.msra.mxu0 %v1090
    %2776 = vmatprep.subr.bf16.mxu0 %v1085
    %2777 = vmatpush1.bf16.msra.mxu0 %v1084
    %2778 = vmatprep.subr.bf16.mxu0 %v1079
    %2779 = vmatpush1.bf16.msra.mxu0 %v1078
    %2780 = vmatprep.subr.bf16.mxu0 %v1073
    %2781 = vmatpush1.bf16.msra.mxu0 %v1072
    %2782 = vmatprep.subr.bf16.mxu0 %v1067
    %2783 = vmatpush1.bf16.msra.mxu0 %v1066
    %2784 = vmatprep.subr.bf16.mxu0 %v1061
    %2785 = vmatpush1.bf16.msra.mxu0 %v1060
    %2786 = vmatprep.subr.bf16.mxu0 %v1055
    %2787 = vmatpush1.bf16.msra.mxu0 %v1054
    %2788 = vmatprep.subr.bf16.mxu0 %v1049
    %2789 = vmatpush1.bf16.msra.mxu0 %v1048
    %2790 = vmatprep.subr.bf16.mxu0 %v1139
    %2791 = vmatpush2.bf16.msra.mxu0 %v1138
    %2792 = vmatprep.subr.bf16.mxu0 %v1133
    %2793 = vmatpush2.bf16.msra.mxu0 %v1132
    %2794 = vmatprep.subr.bf16.mxu0 %v1127
    %2795 = vmatpush2.bf16.msra.mxu0 %v1126
    %2796 = vmatprep.subr.bf16.mxu0 %v1121
    %2797 = vmatpush2.bf16.msra.mxu0 %v1120
    %2798 = vmatprep.subr.bf16.mxu0 %v1115
    %2799 = vmatpush2.bf16.msra.mxu0 %v1114
    %2800 = vmatprep.subr.bf16.mxu0 %v1109
    %2801 = vmatpush2.bf16.msra.mxu0 %v1108
    %2802 = vmatprep.subr.bf16.mxu0 %v1103
    %2803 = vmatpush2.bf16.msra.mxu0 %v1102
    %2804 = vmatprep.subr.bf16.mxu0 %v1097
    %2805 = vmatpush2.bf16.msra.mxu0 %v1096
    %2806 = vmatprep.mubr.bf16.mxu0 %v2773
    %2807 = vmatmul.mubr.bf16.gmra.mxu0 %v2772
    %v2808 = vpop.f32.mrf.mxu0
    %v2809 = vadd.f32 0.0, %v2808
    %v2810 = vpop.f32.mrf.mxu0
    %v2811 = vadd.f32 0.0, %v2810
    %v2812 = vpop.f32.mrf.mxu0
    %v2813 = vpop.f32.mrf.mxu0
    %2814 = vdwg.mxu0
    %2815 = vmatprep.subr.bf16.mxu0 %v1093
    %2816 = vmatpush1.bf16.msra.mxu0 %v1092
    %2817 = vmatprep.subr.bf16.mxu0 %v1087
    %2818 = vmatpush1.bf16.msra.mxu0 %v1086
    %2819 = vmatprep.subr.bf16.mxu0 %v1081
    %2820 = vmatpush1.bf16.msra.mxu0 %v1080
    %2821 = vmatprep.subr.bf16.mxu0 %v1075
    %2822 = vmatpush1.bf16.msra.mxu0 %v1074
    %2823 = vmatprep.subr.bf16.mxu0 %v1069
    %2824 = vmatpush1.bf16.msra.mxu0 %v1068
    %2825 = vmatprep.subr.bf16.mxu0 %v1063
    %2826 = vmatpush1.bf16.msra.mxu0 %v1062
    %2827 = vmatprep.subr.bf16.mxu0 %v1057
    %2828 = vmatpush1.bf16.msra.mxu0 %v1056
    %2829 = vmatprep.subr.bf16.mxu0 %v1051
    %2830 = vmatpush1.bf16.msra.mxu0 %v1050
    %2831 = vmatprep.subr.bf16.mxu0 %v1141
    %2832 = vmatpush2.bf16.msra.mxu0 %v1140
    %2833 = vmatprep.subr.bf16.mxu0 %v1135
    %2834 = vmatpush2.bf16.msra.mxu0 %v1134
    %2835 = vmatprep.subr.bf16.mxu0 %v1129
    %2836 = vmatpush2.bf16.msra.mxu0 %v1128
    %2837 = vmatprep.subr.bf16.mxu0 %v1123
    %2838 = vmatpush2.bf16.msra.mxu0 %v1122
    %2839 = vmatprep.subr.bf16.mxu0 %v1117
    %2840 = vmatpush2.bf16.msra.mxu0 %v1116
    %2841 = vmatprep.subr.bf16.mxu0 %v1111
    %2842 = vmatpush2.bf16.msra.mxu0 %v1110
    %2843 = vmatprep.subr.bf16.mxu0 %v1105
    %2844 = vmatpush2.bf16.msra.mxu0 %v1104
    %2845 = vmatprep.subr.bf16.mxu0 %v1099
    %2846 = vmatpush2.bf16.msra.mxu0 %v1098
    %2847 = vmatprep.mubr.bf16.mxu0 %v2773
    %2848 = vmatmul.mubr.bf16.gmra.mxu0 %v2772
    %v2849 = vpop.f32.mrf.mxu0
    %v2850 = vadd.f32 0.0, %v2849
    %v2851 = vpop.f32.mrf.mxu0
    %v2852 = vadd.f32 0.0, %v2851
    %v2853 = vpop.f32.mrf.mxu0
    %v2854 = vpop.f32.mrf.mxu0
    %2855 = vdwg.mxu0
    %2856 = vmatprep.subr.bf16.mxu0 %v1095
    %2857 = vmatpush1.bf16.msra.mxu0 %v1094
    %2858 = vmatprep.subr.bf16.mxu0 %v1089
    %2859 = vmatpush1.bf16.msra.mxu0 %v1088
    %2860 = vmatprep.subr.bf16.mxu0 %v1083
    %2861 = vmatpush1.bf16.msra.mxu0 %v1082
    %2862 = vmatprep.subr.bf16.mxu0 %v1077
    %2863 = vmatpush1.bf16.msra.mxu0 %v1076
    %2864 = vmatprep.subr.bf16.mxu0 %v1071
    %2865 = vmatpush1.bf16.msra.mxu0 %v1070
    %2866 = vmatprep.subr.bf16.mxu0 %v1065
    %2867 = vmatpush1.bf16.msra.mxu0 %v1064
    %2868 = vmatprep.subr.bf16.mxu0 %v1059
    %2869 = vmatpush1.bf16.msra.mxu0 %v1058
    %2870 = vmatprep.subr.bf16.mxu0 %v1053
    %2871 = vmatpush1.bf16.msra.mxu0 %v1052
    %2872 = vmatprep.subr.bf16.mxu0 %v1143
    %2873 = vmatpush2.bf16.msra.mxu0 %v1142
    %2874 = vmatprep.subr.bf16.mxu0 %v1137
    %2875 = vmatpush2.bf16.msra.mxu0 %v1136
    %2876 = vmatprep.subr.bf16.mxu0 %v1131
    %2877 = vmatpush2.bf16.msra.mxu0 %v1130
    %2878 = vmatprep.subr.bf16.mxu0 %v1125
    %2879 = vmatpush2.bf16.msra.mxu0 %v1124
    %2880 = vmatprep.subr.bf16.mxu0 %v1119
    %2881 = vmatpush2.bf16.msra.mxu0 %v1118
    %2882 = vmatprep.subr.bf16.mxu0 %v1113
    %2883 = vmatpush2.bf16.msra.mxu0 %v1112
    %2884 = vmatprep.subr.bf16.mxu0 %v1107
    %2885 = vmatpush2.bf16.msra.mxu0 %v1106
    %2886 = vmatprep.subr.bf16.mxu0 %v1101
    %2887 = vmatpush2.bf16.msra.mxu0 %v1100
    %2888 = vmatprep.mubr.bf16.mxu0 %v2773
    %2889 = vmatmul.mubr.bf16.gmra.mxu0 %v2772
    %v2890 = vpop.f32.mrf.mxu0
    %v2891 = vadd.f32 0.0, %v2890
    %v2892 = vpop.f32.mrf.mxu0
    %v2893 = vadd.f32 0.0, %v2892
    %v2894 = vpop.f32.mrf.mxu0
    %v2895 = vpop.f32.mrf.mxu0
    %2896 = vdwg.mxu0
    %s2897 = scalar_lea.vmem [#allocation2], 84
    %v2898 = vld [vmem:[%s2897] sm:$0xff]
    %v2899 = vld [vmem:[%s2897 + $0x8] sm:$0xf]
    %v2900 = vpack.c.bf16 %v2809, %v2809
    %v2901 = vpack.c.bf16 %v2811, %v2811
    %v2902 = vpack.c.bf16 %v2850, %v2850
    %v2903 = vadd.bf16 %v2898, %v2900
    %v2904 = vxor.u32 %v2903, 2147516416
    %v2906 = vmul.bf16 %v2904, 1069105081
    %v2907 = vpow.bf16.pop %v2906
    %v2908 = vadd.bf16 %v2907, 1065369472
    %v2909 = vrcp.bf16.pop %v2908
    %v2910 = vmul.bf16 1065369472, %v2909
    %v2912 = vrot.slane %v2898, 4
    %v2914 = vadd.bf16 %v2912, %v2901
    %v2915 = vxor.u32 %v2914, 2147516416
    %v2917 = vmul.bf16 %v2915, 1069105081
    %v2918 = vpow.bf16.pop %v2917
    %v2919 = vadd.bf16 %v2918, 1065369472
    %v2920 = vrcp.bf16.pop %v2919
    %v2921 = vmul.bf16 1065369472, %v2920
    %v2922 = vadd.bf16 %v2902, %v76
    %v2923 = vmul.bf16 %v2910, %v2922
    %v2924 = vadd.bf16 %v2899, %v2923
    %v2925 = vtanh.bf16.pop %v2924
    %v2926 = vunpack.c.l.bf16 %v2921
    %v2927 = vsub.f32 1.0, %v2926
    %v2928 = vunpack.c.l.bf16 %v2925
    %v2929 = vmul.f32 %v2927, %v2928
    %v2930 = vmul.f32 %v2926, %v2757
    %v2931 = vadd.f32 %v2929, %v2930
    %v2932 = vld [vmem:[#allocation3] sm:$0xff]
    %v2933 = vld [vmem:[#allocation3 + $0x8] sm:$0xf]
    %v2934 = vpack.c.bf16 %v2852, %v2852
    %v2935 = vpack.c.bf16 %v2891, %v2891
    %v2936 = vpack.c.bf16 %v2893, %v2893
    %v2937 = vadd.bf16 %v2932, %v2934
    %v2938 = vxor.u32 %v2937, 2147516416
    %v2940 = vmul.bf16 %v2938, 1069105081
    %v2941 = vpow.bf16.pop %v2940
    %v2942 = vadd.bf16 %v2941, 1065369472
    %v2943 = vrcp.bf16.pop %v2942
    %v2944 = vmul.bf16 1065369472, %v2943
    %v2946 = vrot.slane %v2932, 4
    %v2948 = vadd.bf16 %v2946, %v2935
    %v2949 = vxor.u32 %v2948, 2147516416
    %v2951 = vmul.bf16 %v2949, 1069105081
    %v2952 = vpow.bf16.pop %v2951
    %v2953 = vadd.bf16 %v2952, 1065369472
    %v2954 = vrcp.bf16.pop %v2953
    %v2955 = vmul.bf16 1065369472, %v2954
    %v2956 = vadd.bf16 %v2936, %v85
    %v2957 = vmul.bf16 %v2944, %v2956
    %v2958 = vadd.bf16 %v2933, %v2957
    %v2959 = vtanh.bf16.pop %v2958
    %v2960 = vunpack.c.l.bf16 %v2955
    %v2961 = vsub.f32 1.0, %v2960
    %v2962 = vunpack.c.l.bf16 %v2959
    %v2963 = vmul.f32 %v2961, %v2962
    %v2964 = vmul.f32 %v2960, %v2763
    %v2965 = vadd.f32 %v2963, %v2964
    %v2966 = vld [vmem:[%s1434] sm:$0xff]
    %vm2967 = vcmp.gt.f32.partialorder %v2966, 0.0
    %v2968 = vld [vmem:[%s1] sm:$0xff]
    %vm2969 = vcmp.gt.f32.partialorder %v2968, 0.0
    %v2970 = vsel %vm2967, 1, 0
    %2971 = vset.pattern.permute.xlu0 0
    %2972 = vperm.xlu0 %2971, %v2970
    %v2973 = vpop.permute.xlu0 %2972
    %vm2974 = vcmp.eq.s32.totalorder %v2973, 1
    %v2975 = vsel %vm2969, 1, 0
    %2976 = vset.pattern.permute.xlu0 0
    %2977 = vperm.xlu0 %2976, %v2975
    %v2978 = vpop.permute.xlu0 %2977
    %vm2979 = vcmp.eq.s32.totalorder %v2978, 1
    %v2980 = vsel %vm2974, %v2931, 0.0
    %v2981 = vpack.c.bf16 %v2980, %v2980
    %s2982 = scalar_lea.vmem [#allocation10], 28
    %2983 = vst [vmem:[%s2982] sm:$0xf] %v2981
    %v2984 = vsel %vm2979, %v2965, 0.0
    %v2985 = vpack.c.bf16 %v2984, %v2984
    %2986 = vst [vmem:[#allocation4] sm:$0xf] %v2985
    %v2987 = vld [vmem:[#allocation10] sm:$0xf]
    %v2988 = vld [vmem:[#allocation10 + $0x4] sm:$0xf]
    %v2989 = vld [vmem:[#allocation10 + $0x8] sm:$0xf]
    %v2990 = vld [vmem:[#allocation10 + $0xc] sm:$0xf]
    %v2991 = vld [vmem:[#allocation10 + $0x10] sm:$0xf]
    %v2992 = vld [vmem:[#allocation10 + $0x14] sm:$0xf]
    %v2993 = vld [vmem:[#allocation10 + $0x18] sm:$0xf]
    %v2994 = vld [vmem:[#allocation10 + $0x1c] sm:$0xf]
    %v2995 = vld [vmem:[#allocation4] sm:$0xf]
    %v2996 = vld [vmem:[#allocation4 + $0x4] sm:$0xf]
    %v2997 = vld [vmem:[#allocation4 + $0x8] sm:$0xf]
    %v2998 = vld [vmem:[#allocation4 + $0xc] sm:$0xf]
    %v2999 = vld [vmem:[#allocation4 + $0x10] sm:$0xf]
    %v3000 = vld [vmem:[#allocation4 + $0x14] sm:$0xf]
    %v3001 = vld [vmem:[#allocation4 + $0x18] sm:$0xf]
    %v3002 = vld [vmem:[#allocation4 + $0x1c] sm:$0xf]
    %v3003 = vadd.bf16 %v2987, %v2995
    %v3004 = vadd.bf16 %v2988, %v2996
    %v3005 = vadd.bf16 %v2989, %v2997
    %v3006 = vadd.bf16 %v2990, %v2998
    %v3007 = vadd.bf16 %v2991, %v2999
    %v3008 = vadd.bf16 %v2992, %v3000
    %v3009 = vadd.bf16 %v2993, %v3001
    %v3010 = vadd.bf16 %v2994, %v3002
    %v3011 = vmul.bf16 %v3003, 1056980736
    %v3012 = vmul.bf16 %v3004, 1056980736
    %v3013 = vmul.bf16 %v3005, 1056980736
    %v3014 = vmul.bf16 %v3006, 1056980736
    %v3015 = vmul.bf16 %v3007, 1056980736
    %v3016 = vmul.bf16 %v3008, 1056980736
    %v3017 = vmul.bf16 %v3009, 1056980736
    %v3018 = vmul.bf16 %v3010, 1056980736
    %3019 = vst [vmem:[#allocation10] sm:$0xf] %v3011
    %3020 = vst [vmem:[#allocation10 + $0x4] sm:$0xf] %v3012
    %3021 = vst [vmem:[#allocation10 + $0x8] sm:$0xf] %v3013
    %3022 = vst [vmem:[#allocation10 + $0xc] sm:$0xf] %v3014
    %3023 = vst [vmem:[#allocation10 + $0x10] sm:$0xf] %v3015
    %3024 = vst [vmem:[#allocation10 + $0x14] sm:$0xf] %v3016
    %3025 = vst [vmem:[#allocation10 + $0x18] sm:$0xf] %v3017
    %3026 = vst [vmem:[#allocation10 + $0x1c] sm:$0xf] %v3018
    // Predicated region
    $region38: #{tpu_custom_call.1} parent=1 // pred_check
      _
    $region39: #{tpu_custom_call.1} parent=1 // pred_check_branch
      %3028 = sbr.rel (0) target = $region41
    $region40: #{tpu_custom_call.1} parent=1 // pred_region
      %s3030 = ssub.s32 512, 512
      %3031 = vsyncadd [#allocation7], %s3030
      %s3032 = sshll.u32 [#allocation10], 4
      %s3033 = int_to_ptr.vmem [resolvable:$true] %s3032
      %3038 = dma.vmem_to_hbm [thread:$0]  %s3033, 512, %s7, [#allocation7], 64, 64, 4
    $region41: #{tpu_custom_call.1} parent=1 // pred_fallthru
      _
    // Predicated region
    $region42: #{tpu_custom_call.1} parent=1 // pred_check
      _
    $region43: #{tpu_custom_call.1} parent=1 // pred_check_branch
      %3040 = sbr.rel (0) target = $region45
    $region44: #{tpu_custom_call.1} parent=1 // pred_region
      %3041 = dma.done [#allocation7], 512
    $region45: #{tpu_custom_call.1} parent=1 // pred_fallthru
      _
    %3042 = vsyncpa [#allocation6], 1
    %3043 = vsyncpa [#allocation9], 1
    %3044 = vsyncpa [#allocation7], 1

</llo_original>
